<compile_context>
chip_gen: v7x
topology: tpu7x:2x2x1
jax: 0.10.0
libtpu: 0.0.40
codegen_flags: <defaults>
</compile_context>

<pallas_src>
import jax
import jax.numpy as jnp
from jax import lax
from jax.experimental import pallas as pl
from jax.experimental.pallas import tpu as pltpu

# ----- shapes: hidden/heads/experts follow the PyTorch module spec;
#       batch/seq kept small per instructions -----
B, S = 2, 8                 # batch, seq
H = 128                     # hidden size (module spec)
NH = 8                      # num heads   (module spec)
HD = H // NH                # head dim = 16
HD2 = HD // 2               # = 8
NE = 6                      # num experts (module spec)
TOP_K = 2
EPS = 1e-6
SCALE = HD ** -0.5
BS = B * S                  # flattened tokens


# --------------------------------------------------------------------------
# Single fused kernel:  out = moe_block(attn_block(x))
# --------------------------------------------------------------------------
def _block_kernel(x_ref, nw1_ref, wqkv_ref, bqkv_ref, cos_ref, sin_ref,
                  bmask_ref, woT_ref, bo_ref, nw2_ref, wgT_ref, bg_ref,
                  wecatT_ref, becat_ref, ones_ref, o_ref):
    f32 = jnp.float32
    x = x_ref[...]                                        # (BS, H)

    # ---------------- RMSNorm 1 ----------------
    ms = jnp.mean(x * x, axis=-1, keepdims=True)
    xn = x * lax.rsqrt(ms + EPS) * nw1_ref[...]

    # ---------------- fused QKV projection ----------------
    # columns: [ s*Q_perm | s*Q_perm_swapped | K_perm | K_perm_swapped | V ]
    qkv = jnp.dot(xn, wqkv_ref[...], preferred_element_type=f32) + bqkv_ref[...]
    qp = qkv[:, 0 * H:1 * H]
    qs = qkv[:, 1 * H:2 * H]
    kp = qkv[:, 2 * H:3 * H]
    ks = qkv[:, 3 * H:4 * H]
    v = qkv[:, 4 * H:5 * H]

    # ---------------- RoPE: two full-width VPU passes ----------------
    # per-head layout [x1 | x2]; swapped copy is [x2 | x1];
    # cos table = [cos | cos], sin table = [-sin | sin]  (signs baked in)
    cos = cos_ref[...]
    sin = sin_ref[...]
    q_rot = qp * cos + qs * sin                           # (BS, H), scaled
    k_rot = kp * cos + ks * sin                           # (BS, H)

    # ---------------- per-head attention over all tokens ----------------
    bmask = bmask_ref[...]                                # (BS, BS) additive
    dn = (((1,), (1,)), ((), ()))                         # contract last dims
    ctx = []
    for h in range(NH):                                   # unrolled (8 heads)
        c = h * HD
        s_h = lax.dot_general(q_rot[:, c:c + HD], k_rot[:, c:c + HD],
                              dn, preferred_element_type=f32) + bmask
        s_h = s_h - jnp.max(s_h, axis=-1, keepdims=True)
        e_h = jnp.exp(s_h)
        p_h = e_h / jnp.sum(e_h, axis=-1, keepdims=True)
        ctx.append(jnp.dot(p_h, v[:, c:c + HD],
                           preferred_element_type=f32))   # (BS, HD)
    ctx = jnp.concatenate(ctx, axis=-1)                   # (BS, H) in regs

    # ---------------- out-projection + residual ----------------
    x = x + jnp.dot(ctx, woT_ref[...],
                    preferred_element_type=f32) + bo_ref[...]

    # ---------------- RMSNorm 2 ----------------
    ms2 = jnp.mean(x * x, axis=-1, keepdims=True)
    xn2 = x * lax.rsqrt(ms2 + EPS) * nw2_ref[...]

    # ---------------- MoE gate: softmax over experts ----------------
    g = jnp.dot(xn2, wgT_ref[...], preferred_element_type=f32) + bg_ref[...]
    g = g - jnp.max(g, axis=-1, keepdims=True)
    eg = jnp.exp(g)
    gates = eg / jnp.sum(eg, axis=-1, keepdims=True)      # (BS, NE)

    # top-2 selection (first-occurrence tie-break, like torch.topk)
    iota = lax.broadcasted_iota(jnp.int32, (BS, NE), 1)
    m1 = jnp.max(gates, axis=-1, keepdims=True)
    idx1 = jnp.min(jnp.where(gates == m1, iota, NE), axis=-1, keepdims=True)
    g2 = jnp.where(iota == idx1, -1.0, gates)
    m2 = jnp.max(g2, axis=-1, keepdims=True)
    idx2 = jnp.min(jnp.where(g2 == m2, iota, NE), axis=-1, keepdims=True)
    wsel = jnp.where((iota == idx1) | (iota == idx2), gates, 0.0)   # (BS, NE)

    # ---------------- dense experts, stacked formulation ----------------
    # one (BS,H)@(H,NE*H) matmul for all experts (biases folded in), then
    # gates broadcast across each expert's 128-lane block via a tiny matmul.
    ycat = jnp.dot(xn2, wecatT_ref[...],
                   preferred_element_type=f32) + becat_ref[...]     # (BS, NE*H)
    wsel_b = jnp.dot(wsel, ones_ref[...],
                     preferred_element_type=f32)                    # (BS, NE*H)
    prod = wsel_b * ycat
    acc = prod[:, 0:H]
    for e in range(1, NE):                                # 128-lane aligned adds
        acc = acc + prod[:, e * H:(e + 1) * H]

    o_ref[...] = x + acc


# --------------------------------------------------------------------------
# Wrapper: single pallas_call, single grid step, full-array blocks
# --------------------------------------------------------------------------
def _spec(shape):
    return pl.BlockSpec(shape, lambda i: (0,) * len(shape))


def transformer_block(x, p):
    x2d = x.reshape(BS, H)
    args = (x2d, p["nw1_2d"], p["w_qkv"], p["b_qkv"], p["cos_full"],
            p["sin_full"], p["bmask"], p["woT"], p["bo_2d"], p["nw2_2d"],
            p["wgT"], p["bg_2d"], p["wecatT"], p["becat"], p["ones_block"])
    out2d = pl.pallas_call(
        _block_kernel,
        out_shape=jax.ShapeDtypeStruct((BS, H), jnp.float32),
        grid_spec=pltpu.PrefetchScalarGridSpec(
            num_scalar_prefetch=0,
            grid=(1,),
            in_specs=[_spec(a.shape) for a in args],
            out_specs=_spec((BS, H)),
        ),
        compiler_params=pltpu.CompilerParams(
            dimension_semantics=("arbitrary",)),
    )(*args)
    return out2d.reshape(B, S, H)


# --------------------------------------------------------------------------
# Pure-JAX reference (mirrors the PyTorch forward exactly)
# --------------------------------------------------------------------------
def reference(x, p):
    def rms(t, w):
        return t * lax.rsqrt(jnp.mean(t * t, -1, keepdims=True) + EPS) * w

    # attention
    xn = rms(x, p["nw1"])
    q = xn @ p["wq"].T + p["bq"]
    k = xn @ p["wk"].T + p["bk"]
    v = xn @ p["wv"].T + p["bv"]

    def split(t):
        return t.reshape(B, S, NH, HD).transpose(0, 2, 1, 3)   # (B,NH,S,HD)

    q, k, v = split(q), split(k), split(v)
    cos = p["cos"][None, None]
    sin = p["sin"][None, None]

    def rope(t):
        t1, t2 = t[..., 0::2], t[..., 1::2]
        return jnp.concatenate([t1 * cos - t2 * sin, t1 * sin + t2 * cos], -1)

    q = rope(q) * SCALE
    k = rope(k)
    s = q @ jnp.swapaxes(k, -1, -2)
    pm = jax.nn.softmax(s, axis=-1)
    o = (pm @ v).transpose(0, 2, 1, 3).reshape(B, S, H)
    x = x + o @ p["wo"].T + p["bo"]

    # MoE
    xn2 = rms(x, p["nw2"])
    gates = jax.nn.softmax(xn2 @ p["wg"].T + p["bg"], axis=-1)
    tg, ti = lax.top_k(gates, TOP_K)
    out = jnp.zeros_like(x)
    for i in range(TOP_K):
        for e in range(NE):
            w = jnp.where(ti[..., i] == e, tg[..., i], 0.0)[..., None]
            out = out + w * (xn2 @ p["we"][e].T + p["be"][e])
    return x + out


# --------------------------------------------------------------------------
def make_params(key):
    ks = jax.random.split(key, 16)
    nrm = lambda k, shape, s=0.05: (jax.random.normal(k, shape, jnp.float32) * s)

    p = {}
    p["nw1"] = 1.0 + 0.1 * jax.random.normal(ks[0], (H,), jnp.float32)
    p["nw2"] = 1.0 + 0.1 * jax.random.normal(ks[1], (H,), jnp.float32)
    p["wq"], p["bq"] = nrm(ks[2], (H, H)), nrm(ks[3], (H,))
    p["wk"], p["bk"] = nrm(ks[4], (H, H)), nrm(ks[5], (H,))
    p["wv"], p["bv"] = nrm(ks[6], (H, H)), nrm(ks[7], (H,))
    p["wo"], p["bo"] = nrm(ks[8], (H, H)), nrm(ks[9], (H,))
    p["wg"], p["bg"] = nrm(ks[10], (NE, H)), nrm(ks[11], (NE,))
    p["we"] = nrm(ks[12], (NE, H, H))
    p["be"] = nrm(ks[13], (NE, H))

    # RoPE tables: cos/sin of freqs, shape (S, HD2)
    inv_freq = 1.0 / (10000.0 ** (jnp.arange(0, HD, 2, dtype=jnp.float32) / HD))
    t = jnp.arange(S, dtype=jnp.float32)
    freqs = jnp.einsum("i,j->ij", t, inv_freq)
    p["cos"], p["sin"] = jnp.cos(freqs), jnp.sin(freqs)

    # ----- kernel-side prepared parameters -----
    # per-head column permutation: [even (x1) | odd (x2)] within each head,
    # plus the half-swapped layout [odd | even] used for the RoPE rotation.
    even_l = jnp.arange(0, HD, 2)
    odd_l = jnp.arange(1, HD, 2)
    perm_head = jnp.concatenate([even_l, odd_l])
    perm_head_sw = jnp.concatenate([odd_l, even_l])
    perm = jnp.concatenate([h * HD + perm_head for h in range(NH)])
    perm_sw = jnp.concatenate([h * HD + perm_head_sw for h in range(NH)])

    wqT, wkT, wvT = p["wq"].T, p["wk"].T, p["wv"].T
    p["w_qkv"] = jnp.concatenate(
        [SCALE * wqT[:, perm], SCALE * wqT[:, perm_sw],
         wkT[:, perm], wkT[:, perm_sw], wvT], axis=1)               # (H, 5H)
    p["b_qkv"] = jnp.concatenate(
        [SCALE * p["bq"][perm], SCALE * p["bq"][perm_sw],
         p["bk"][perm], p["bk"][perm_sw], p["bv"]])[None, :]        # (1, 5H)

    # RoPE tables, per-head-contiguous rotated layout, signs baked into sin
    p["cos_full"] = jnp.tile(
        jnp.concatenate([p["cos"], p["cos"]], axis=1), (B, NH))      # (BS, H)
    p["sin_full"] = jnp.tile(
        jnp.concatenate([-p["sin"], p["sin"]], axis=1), (B, NH))     # (BS, H)

    p["nw1_2d"] = p["nw1"][None, :]
    p["nw2_2d"] = p["nw2"][None, :]
    p["woT"] = p["wo"].T
    p["bo_2d"] = p["bo"][None, :]
    p["wgT"] = p["wg"].T
    p["bg_2d"] = p["bg"][None, :]
    # experts concatenated along output columns: (H, NE*H); biases too
    p["wecatT"] = jnp.concatenate([p["we"][e].T for e in range(NE)], axis=1)
    p["becat"] = p["be"].reshape(1, NE * H)
    # block-ones matrix broadcasting gate e across that expert's 128 lanes
    p["ones_block"] = jnp.repeat(jnp.eye(NE, dtype=jnp.float32), H, axis=1)

    # cross-batch additive attention mask on flattened (B*S) rows
    rb = jnp.arange(BS) // S
    p["bmask"] = jnp.where(rb[:, None] == rb[None, :],
                           0.0, -1e30).astype(jnp.float32)
    return p


if __name__ == "__main__":
    key = jax.random.PRNGKey(0)
    kx, kp = jax.random.split(key)
    x = jax.random.normal(kx, (B, S, H), jnp.float32)
    params = make_params(kp)

    out = jax.block_until_ready(transformer_block(x, params))
    ref = jax.block_until_ready(reference(x, params))

    assert out.shape == (B, S, H)
    err = float(jnp.max(jnp.abs(out - ref)))
    assert jnp.allclose(out, ref, rtol=2e-4, atol=2e-4), err
    print("KERNEL_OK")
</pallas_src>

<mosaic_0001>
module attributes {stable_mosaic.version = 11 : i64} {
  func.func @_block_kernel(%arg0: i32, %arg1: memref<16x128xf32, #tpu.memory_space<vmem>>, %arg2: memref<1x128xf32, #tpu.memory_space<vmem>>, %arg3: memref<128x640xf32, #tpu.memory_space<vmem>>, %arg4: memref<1x640xf32, #tpu.memory_space<vmem>>, %arg5: memref<16x128xf32, #tpu.memory_space<vmem>>, %arg6: memref<16x128xf32, #tpu.memory_space<vmem>>, %arg7: memref<16x16xf32, #tpu.memory_space<vmem>>, %arg8: memref<128x128xf32, #tpu.memory_space<vmem>>, %arg9: memref<1x128xf32, #tpu.memory_space<vmem>>, %arg10: memref<1x128xf32, #tpu.memory_space<vmem>>, %arg11: memref<128x6xf32, #tpu.memory_space<vmem>>, %arg12: memref<1x6xf32, #tpu.memory_space<vmem>>, %arg13: memref<128x768xf32, #tpu.memory_space<vmem>>, %arg14: memref<1x768xf32, #tpu.memory_space<vmem>>, %arg15: memref<6x768xf32, #tpu.memory_space<vmem>>, %arg16: memref<16x128xf32, #tpu.memory_space<vmem>>) attributes {dimension_semantics = [#tpu.dimension_semantics<arbitrary>], iteration_bounds = array<i64: 1>, scalar_prefetch = 0 : i64, scratch_operands = 0 : i64, tpu.core_type = #tpu.core_type<tc>, window_params = [{pipeline_mode = #tpu.pipeline_mode<synchronous>, transform_indices = @transform_0, window_bounds = array<i64: 16, 128>}, {pipeline_mode = #tpu.pipeline_mode<synchronous>, transform_indices = @transform_1, window_bounds = array<i64: 1, 128>}, {pipeline_mode = #tpu.pipeline_mode<synchronous>, transform_indices = @transform_2, window_bounds = array<i64: 128, 640>}, {pipeline_mode = #tpu.pipeline_mode<synchronous>, transform_indices = @transform_3, window_bounds = array<i64: 1, 640>}, {pipeline_mode = #tpu.pipeline_mode<synchronous>, transform_indices = @transform_4, window_bounds = array<i64: 16, 128>}, {pipeline_mode = #tpu.pipeline_mode<synchronous>, transform_indices = @transform_5, window_bounds = array<i64: 16, 128>}, {pipeline_mode = #tpu.pipeline_mode<synchronous>, transform_indices = @transform_6, window_bounds = array<i64: 16, 16>}, {pipeline_mode = #tpu.pipeline_mode<synchronous>, transform_indices = @transform_7, window_bounds = array<i64: 128, 128>}, {pipeline_mode = #tpu.pipeline_mode<synchronous>, transform_indices = @transform_8, window_bounds = array<i64: 1, 128>}, {pipeline_mode = #tpu.pipeline_mode<synchronous>, transform_indices = @transform_9, window_bounds = array<i64: 1, 128>}, {pipeline_mode = #tpu.pipeline_mode<synchronous>, transform_indices = @transform_10, window_bounds = array<i64: 128, 6>}, {pipeline_mode = #tpu.pipeline_mode<synchronous>, transform_indices = @transform_11, window_bounds = array<i64: 1, 6>}, {pipeline_mode = #tpu.pipeline_mode<synchronous>, transform_indices = @transform_12, window_bounds = array<i64: 128, 768>}, {pipeline_mode = #tpu.pipeline_mode<synchronous>, transform_indices = @transform_13, window_bounds = array<i64: 1, 768>}, {pipeline_mode = #tpu.pipeline_mode<synchronous>, transform_indices = @transform_14, window_bounds = array<i64: 6, 768>}, {pipeline_mode = #tpu.pipeline_mode<synchronous>, transform_indices = @transform_15, window_bounds = array<i64: 16, 128>}]} {
    %c0 = arith.constant 0 : index
    %c0_0 = arith.constant 0 : index
    %0 = vector.load %arg1[%c0, %c0_0] : memref<16x128xf32, #tpu.memory_space<vmem>>, vector<16x128xf32>
    %1 = arith.mulf %0, %0 : vector<16x128xf32>
    %cst = arith.constant dense<0.000000e+00> : vector<16xf32>
    %2 = vector.multi_reduction <add>, %1, %cst [1] : vector<16x128xf32> to vector<16xf32>
    %3 = vector.shape_cast %2 : vector<16xf32> to vector<16x1xf32>
    %cst_1 = arith.constant 1.280000e+02 : f32
    %4 = vector.broadcast %cst_1 : f32 to vector<16x1xf32>
    %5 = arith.divf %3, %4 : vector<16x1xf32>
    %cst_2 = arith.constant 9.99999997E-7 : f32
    %6 = vector.broadcast %cst_2 : f32 to vector<16x1xf32>
    %7 = arith.addf %5, %6 : vector<16x1xf32>
    %8 = math.rsqrt %7 : vector<16x1xf32>
    %9 = vector.broadcast %8 : vector<16x1xf32> to vector<16x128xf32>
    %10 = arith.mulf %0, %9 : vector<16x128xf32>
    %c0_3 = arith.constant 0 : index
    %c0_4 = arith.constant 0 : index
    %11 = vector.load %arg2[%c0_3, %c0_4] : memref<1x128xf32, #tpu.memory_space<vmem>>, vector<1x128xf32>
    %12 = vector.broadcast %11 : vector<1x128xf32> to vector<16x128xf32>
    %13 = arith.mulf %10, %12 : vector<16x128xf32>
    %c0_5 = arith.constant 0 : index
    %c0_6 = arith.constant 0 : index
    %14 = vector.load %arg3[%c0_5, %c0_6] : memref<128x640xf32, #tpu.memory_space<vmem>>, vector<128x640xf32>
    %cst_7 = arith.constant dense<0.000000e+00> : vector<16x640xf32>
    %15 = tpu.matmul %13, %14, %cst_7 {dimension_numbers = #tpu.dot_dimension_numbers<[1], [0], [0], [1], [0, 0, 1, 1], [], []>} : vector<16x128xf32>, vector<128x640xf32>, vector<16x640xf32> -> vector<16x640xf32>
    %c0_8 = arith.constant 0 : index
    %c0_9 = arith.constant 0 : index
    %16 = vector.load %arg4[%c0_8, %c0_9] : memref<1x640xf32, #tpu.memory_space<vmem>>, vector<1x640xf32>
    %17 = vector.broadcast %16 : vector<1x640xf32> to vector<16x640xf32>
    %18 = arith.addf %15, %17 : vector<16x640xf32>
    %19 = vector.extract_strided_slice %18 {offsets = [0, 0], sizes = [16, 128], strides = [1, 1]} : vector<16x640xf32> to vector<16x128xf32>
    %20 = vector.extract_strided_slice %18 {offsets = [0, 128], sizes = [16, 128], strides = [1, 1]} : vector<16x640xf32> to vector<16x128xf32>
    %21 = vector.extract_strided_slice %18 {offsets = [0, 256], sizes = [16, 128], strides = [1, 1]} : vector<16x640xf32> to vector<16x128xf32>
    %22 = vector.extract_strided_slice %18 {offsets = [0, 384], sizes = [16, 128], strides = [1, 1]} : vector<16x640xf32> to vector<16x128xf32>
    %23 = vector.extract_strided_slice %18 {offsets = [0, 512], sizes = [16, 128], strides = [1, 1]} : vector<16x640xf32> to vector<16x128xf32>
    %c0_10 = arith.constant 0 : index
    %c0_11 = arith.constant 0 : index
    %24 = vector.load %arg5[%c0_10, %c0_11] : memref<16x128xf32, #tpu.memory_space<vmem>>, vector<16x128xf32>
    %c0_12 = arith.constant 0 : index
    %c0_13 = arith.constant 0 : index
    %25 = vector.load %arg6[%c0_12, %c0_13] : memref<16x128xf32, #tpu.memory_space<vmem>>, vector<16x128xf32>
    %26 = arith.mulf %19, %24 : vector<16x128xf32>
    %27 = arith.mulf %20, %25 : vector<16x128xf32>
    %28 = arith.addf %26, %27 : vector<16x128xf32>
    %29 = arith.mulf %21, %24 : vector<16x128xf32>
    %30 = arith.mulf %22, %25 : vector<16x128xf32>
    %31 = arith.addf %29, %30 : vector<16x128xf32>
    %c0_14 = arith.constant 0 : index
    %c0_15 = arith.constant 0 : index
    %32 = vector.load %arg7[%c0_14, %c0_15] : memref<16x16xf32, #tpu.memory_space<vmem>>, vector<16x16xf32>
    %33 = vector.extract_strided_slice %28 {offsets = [0, 0], sizes = [16, 16], strides = [1, 1]} : vector<16x128xf32> to vector<16x16xf32>
    %34 = vector.extract_strided_slice %31 {offsets = [0, 0], sizes = [16, 16], strides = [1, 1]} : vector<16x128xf32> to vector<16x16xf32>
    %cst_16 = arith.constant dense<0.000000e+00> : vector<16x16xf32>
    %35 = tpu.matmul %33, %34, %cst_16 {dimension_numbers = #tpu.dot_dimension_numbers<[1], [1], [0], [0], [0, 0, 1, 0], [], []>} : vector<16x16xf32>, vector<16x16xf32>, vector<16x16xf32> -> vector<16x16xf32>
    %36 = arith.addf %35, %32 : vector<16x16xf32>
    %cst_17 = arith.constant dense<0xFF800000> : vector<16xf32>
    %37 = vector.multi_reduction <maximumf>, %36, %cst_17 [1] : vector<16x16xf32> to vector<16xf32>
    %38 = vector.shape_cast %37 : vector<16xf32> to vector<16x1xf32>
    %39 = vector.broadcast %38 : vector<16x1xf32> to vector<16x16xf32>
    %40 = arith.subf %36, %39 : vector<16x16xf32>
    %41 = math.exp %40 : vector<16x16xf32>
    %cst_18 = arith.constant dense<0.000000e+00> : vector<16xf32>
    %42 = vector.multi_reduction <add>, %41, %cst_18 [1] : vector<16x16xf32> to vector<16xf32>
    %43 = vector.shape_cast %42 : vector<16xf32> to vector<16x1xf32>
    %44 = vector.broadcast %43 : vector<16x1xf32> to vector<16x16xf32>
    %45 = arith.divf %41, %44 : vector<16x16xf32>
    %46 = vector.extract_strided_slice %23 {offsets = [0, 0], sizes = [16, 16], strides = [1, 1]} : vector<16x128xf32> to vector<16x16xf32>
    %cst_19 = arith.constant dense<0.000000e+00> : vector<16x16xf32>
    %47 = tpu.matmul %45, %46, %cst_19 {dimension_numbers = #tpu.dot_dimension_numbers<[1], [0], [0], [1], [0, 0, 1, 1], [], []>} : vector<16x16xf32>, vector<16x16xf32>, vector<16x16xf32> -> vector<16x16xf32>
    %48 = vector.extract_strided_slice %28 {offsets = [0, 16], sizes = [16, 16], strides = [1, 1]} : vector<16x128xf32> to vector<16x16xf32>
    %49 = vector.extract_strided_slice %31 {offsets = [0, 16], sizes = [16, 16], strides = [1, 1]} : vector<16x128xf32> to vector<16x16xf32>
    %cst_20 = arith.constant dense<0.000000e+00> : vector<16x16xf32>
    %50 = tpu.matmul %48, %49, %cst_20 {dimension_numbers = #tpu.dot_dimension_numbers<[1], [1], [0], [0], [0, 0, 1, 0], [], []>} : vector<16x16xf32>, vector<16x16xf32>, vector<16x16xf32> -> vector<16x16xf32>
    %51 = arith.addf %50, %32 : vector<16x16xf32>
    %cst_21 = arith.constant dense<0xFF800000> : vector<16xf32>
    %52 = vector.multi_reduction <maximumf>, %51, %cst_21 [1] : vector<16x16xf32> to vector<16xf32>
    %53 = vector.shape_cast %52 : vector<16xf32> to vector<16x1xf32>
    %54 = vector.broadcast %53 : vector<16x1xf32> to vector<16x16xf32>
    %55 = arith.subf %51, %54 : vector<16x16xf32>
    %56 = math.exp %55 : vector<16x16xf32>
    %cst_22 = arith.constant dense<0.000000e+00> : vector<16xf32>
    %57 = vector.multi_reduction <add>, %56, %cst_22 [1] : vector<16x16xf32> to vector<16xf32>
    %58 = vector.shape_cast %57 : vector<16xf32> to vector<16x1xf32>
    %59 = vector.broadcast %58 : vector<16x1xf32> to vector<16x16xf32>
    %60 = arith.divf %56, %59 : vector<16x16xf32>
    %61 = vector.extract_strided_slice %23 {offsets = [0, 16], sizes = [16, 16], strides = [1, 1]} : vector<16x128xf32> to vector<16x16xf32>
    %cst_23 = arith.constant dense<0.000000e+00> : vector<16x16xf32>
    %62 = tpu.matmul %60, %61, %cst_23 {dimension_numbers = #tpu.dot_dimension_numbers<[1], [0], [0], [1], [0, 0, 1, 1], [], []>} : vector<16x16xf32>, vector<16x16xf32>, vector<16x16xf32> -> vector<16x16xf32>
    %63 = vector.extract_strided_slice %28 {offsets = [0, 32], sizes = [16, 16], strides = [1, 1]} : vector<16x128xf32> to vector<16x16xf32>
    %64 = vector.extract_strided_slice %31 {offsets = [0, 32], sizes = [16, 16], strides = [1, 1]} : vector<16x128xf32> to vector<16x16xf32>
    %cst_24 = arith.constant dense<0.000000e+00> : vector<16x16xf32>
    %65 = tpu.matmul %63, %64, %cst_24 {dimension_numbers = #tpu.dot_dimension_numbers<[1], [1], [0], [0], [0, 0, 1, 0], [], []>} : vector<16x16xf32>, vector<16x16xf32>, vector<16x16xf32> -> vector<16x16xf32>
    %66 = arith.addf %65, %32 : vector<16x16xf32>
    %cst_25 = arith.constant dense<0xFF800000> : vector<16xf32>
    %67 = vector.multi_reduction <maximumf>, %66, %cst_25 [1] : vector<16x16xf32> to vector<16xf32>
    %68 = vector.shape_cast %67 : vector<16xf32> to vector<16x1xf32>
    %69 = vector.broadcast %68 : vector<16x1xf32> to vector<16x16xf32>
    %70 = arith.subf %66, %69 : vector<16x16xf32>
    %71 = math.exp %70 : vector<16x16xf32>
    %cst_26 = arith.constant dense<0.000000e+00> : vector<16xf32>
    %72 = vector.multi_reduction <add>, %71, %cst_26 [1] : vector<16x16xf32> to vector<16xf32>
    %73 = vector.shape_cast %72 : vector<16xf32> to vector<16x1xf32>
    %74 = vector.broadcast %73 : vector<16x1xf32> to vector<16x16xf32>
    %75 = arith.divf %71, %74 : vector<16x16xf32>
    %76 = vector.extract_strided_slice %23 {offsets = [0, 32], sizes = [16, 16], strides = [1, 1]} : vector<16x128xf32> to vector<16x16xf32>
    %cst_27 = arith.constant dense<0.000000e+00> : vector<16x16xf32>
    %77 = tpu.matmul %75, %76, %cst_27 {dimension_numbers = #tpu.dot_dimension_numbers<[1], [0], [0], [1], [0, 0, 1, 1], [], []>} : vector<16x16xf32>, vector<16x16xf32>, vector<16x16xf32> -> vector<16x16xf32>
    %78 = vector.extract_strided_slice %28 {offsets = [0, 48], sizes = [16, 16], strides = [1, 1]} : vector<16x128xf32> to vector<16x16xf32>
    %79 = vector.extract_strided_slice %31 {offsets = [0, 48], sizes = [16, 16], strides = [1, 1]} : vector<16x128xf32> to vector<16x16xf32>
    %cst_28 = arith.constant dense<0.000000e+00> : vector<16x16xf32>
    %80 = tpu.matmul %78, %79, %cst_28 {dimension_numbers = #tpu.dot_dimension_numbers<[1], [1], [0], [0], [0, 0, 1, 0], [], []>} : vector<16x16xf32>, vector<16x16xf32>, vector<16x16xf32> -> vector<16x16xf32>
    %81 = arith.addf %80, %32 : vector<16x16xf32>
    %cst_29 = arith.constant dense<0xFF800000> : vector<16xf32>
    %82 = vector.multi_reduction <maximumf>, %81, %cst_29 [1] : vector<16x16xf32> to vector<16xf32>
    %83 = vector.shape_cast %82 : vector<16xf32> to vector<16x1xf32>
    %84 = vector.broadcast %83 : vector<16x1xf32> to vector<16x16xf32>
    %85 = arith.subf %81, %84 : vector<16x16xf32>
    %86 = math.exp %85 : vector<16x16xf32>
    %cst_30 = arith.constant dense<0.000000e+00> : vector<16xf32>
    %87 = vector.multi_reduction <add>, %86, %cst_30 [1] : vector<16x16xf32> to vector<16xf32>
    %88 = vector.shape_cast %87 : vector<16xf32> to vector<16x1xf32>
    %89 = vector.broadcast %88 : vector<16x1xf32> to vector<16x16xf32>
    %90 = arith.divf %86, %89 : vector<16x16xf32>
    %91 = vector.extract_strided_slice %23 {offsets = [0, 48], sizes = [16, 16], strides = [1, 1]} : vector<16x128xf32> to vector<16x16xf32>
    %cst_31 = arith.constant dense<0.000000e+00> : vector<16x16xf32>
    %92 = tpu.matmul %90, %91, %cst_31 {dimension_numbers = #tpu.dot_dimension_numbers<[1], [0], [0], [1], [0, 0, 1, 1], [], []>} : vector<16x16xf32>, vector<16x16xf32>, vector<16x16xf32> -> vector<16x16xf32>
    %93 = vector.extract_strided_slice %28 {offsets = [0, 64], sizes = [16, 16], strides = [1, 1]} : vector<16x128xf32> to vector<16x16xf32>
    %94 = vector.extract_strided_slice %31 {offsets = [0, 64], sizes = [16, 16], strides = [1, 1]} : vector<16x128xf32> to vector<16x16xf32>
    %cst_32 = arith.constant dense<0.000000e+00> : vector<16x16xf32>
    %95 = tpu.matmul %93, %94, %cst_32 {dimension_numbers = #tpu.dot_dimension_numbers<[1], [1], [0], [0], [0, 0, 1, 0], [], []>} : vector<16x16xf32>, vector<16x16xf32>, vector<16x16xf32> -> vector<16x16xf32>
    %96 = arith.addf %95, %32 : vector<16x16xf32>
    %cst_33 = arith.constant dense<0xFF800000> : vector<16xf32>
    %97 = vector.multi_reduction <maximumf>, %96, %cst_33 [1] : vector<16x16xf32> to vector<16xf32>
    %98 = vector.shape_cast %97 : vector<16xf32> to vector<16x1xf32>
    %99 = vector.broadcast %98 : vector<16x1xf32> to vector<16x16xf32>
    %100 = arith.subf %96, %99 : vector<16x16xf32>
    %101 = math.exp %100 : vector<16x16xf32>
    %cst_34 = arith.constant dense<0.000000e+00> : vector<16xf32>
    %102 = vector.multi_reduction <add>, %101, %cst_34 [1] : vector<16x16xf32> to vector<16xf32>
    %103 = vector.shape_cast %102 : vector<16xf32> to vector<16x1xf32>
    %104 = vector.broadcast %103 : vector<16x1xf32> to vector<16x16xf32>
    %105 = arith.divf %101, %104 : vector<16x16xf32>
    %106 = vector.extract_strided_slice %23 {offsets = [0, 64], sizes = [16, 16], strides = [1, 1]} : vector<16x128xf32> to vector<16x16xf32>
    %cst_35 = arith.constant dense<0.000000e+00> : vector<16x16xf32>
    %107 = tpu.matmul %105, %106, %cst_35 {dimension_numbers = #tpu.dot_dimension_numbers<[1], [0], [0], [1], [0, 0, 1, 1], [], []>} : vector<16x16xf32>, vector<16x16xf32>, vector<16x16xf32> -> vector<16x16xf32>
    %108 = vector.extract_strided_slice %28 {offsets = [0, 80], sizes = [16, 16], strides = [1, 1]} : vector<16x128xf32> to vector<16x16xf32>
    %109 = vector.extract_strided_slice %31 {offsets = [0, 80], sizes = [16, 16], strides = [1, 1]} : vector<16x128xf32> to vector<16x16xf32>
    %cst_36 = arith.constant dense<0.000000e+00> : vector<16x16xf32>
    %110 = tpu.matmul %108, %109, %cst_36 {dimension_numbers = #tpu.dot_dimension_numbers<[1], [1], [0], [0], [0, 0, 1, 0], [], []>} : vector<16x16xf32>, vector<16x16xf32>, vector<16x16xf32> -> vector<16x16xf32>
    %111 = arith.addf %110, %32 : vector<16x16xf32>
    %cst_37 = arith.constant dense<0xFF800000> : vector<16xf32>
    %112 = vector.multi_reduction <maximumf>, %111, %cst_37 [1] : vector<16x16xf32> to vector<16xf32>
    %113 = vector.shape_cast %112 : vector<16xf32> to vector<16x1xf32>
    %114 = vector.broadcast %113 : vector<16x1xf32> to vector<16x16xf32>
    %115 = arith.subf %111, %114 : vector<16x16xf32>
    %116 = math.exp %115 : vector<16x16xf32>
    %cst_38 = arith.constant dense<0.000000e+00> : vector<16xf32>
    %117 = vector.multi_reduction <add>, %116, %cst_38 [1] : vector<16x16xf32> to vector<16xf32>
    %118 = vector.shape_cast %117 : vector<16xf32> to vector<16x1xf32>
    %119 = vector.broadcast %118 : vector<16x1xf32> to vector<16x16xf32>
    %120 = arith.divf %116, %119 : vector<16x16xf32>
    %121 = vector.extract_strided_slice %23 {offsets = [0, 80], sizes = [16, 16], strides = [1, 1]} : vector<16x128xf32> to vector<16x16xf32>
    %cst_39 = arith.constant dense<0.000000e+00> : vector<16x16xf32>
    %122 = tpu.matmul %120, %121, %cst_39 {dimension_numbers = #tpu.dot_dimension_numbers<[1], [0], [0], [1], [0, 0, 1, 1], [], []>} : vector<16x16xf32>, vector<16x16xf32>, vector<16x16xf32> -> vector<16x16xf32>
    %123 = vector.extract_strided_slice %28 {offsets = [0, 96], sizes = [16, 16], strides = [1, 1]} : vector<16x128xf32> to vector<16x16xf32>
    %124 = vector.extract_strided_slice %31 {offsets = [0, 96], sizes = [16, 16], strides = [1, 1]} : vector<16x128xf32> to vector<16x16xf32>
    %cst_40 = arith.constant dense<0.000000e+00> : vector<16x16xf32>
    %125 = tpu.matmul %123, %124, %cst_40 {dimension_numbers = #tpu.dot_dimension_numbers<[1], [1], [0], [0], [0, 0, 1, 0], [], []>} : vector<16x16xf32>, vector<16x16xf32>, vector<16x16xf32> -> vector<16x16xf32>
    %126 = arith.addf %125, %32 : vector<16x16xf32>
    %cst_41 = arith.constant dense<0xFF800000> : vector<16xf32>
    %127 = vector.multi_reduction <maximumf>, %126, %cst_41 [1] : vector<16x16xf32> to vector<16xf32>
    %128 = vector.shape_cast %127 : vector<16xf32> to vector<16x1xf32>
    %129 = vector.broadcast %128 : vector<16x1xf32> to vector<16x16xf32>
    %130 = arith.subf %126, %129 : vector<16x16xf32>
    %131 = math.exp %130 : vector<16x16xf32>
    %cst_42 = arith.constant dense<0.000000e+00> : vector<16xf32>
    %132 = vector.multi_reduction <add>, %131, %cst_42 [1] : vector<16x16xf32> to vector<16xf32>
    %133 = vector.shape_cast %132 : vector<16xf32> to vector<16x1xf32>
    %134 = vector.broadcast %133 : vector<16x1xf32> to vector<16x16xf32>
    %135 = arith.divf %131, %134 : vector<16x16xf32>
    %136 = vector.extract_strided_slice %23 {offsets = [0, 96], sizes = [16, 16], strides = [1, 1]} : vector<16x128xf32> to vector<16x16xf32>
    %cst_43 = arith.constant dense<0.000000e+00> : vector<16x16xf32>
    %137 = tpu.matmul %135, %136, %cst_43 {dimension_numbers = #tpu.dot_dimension_numbers<[1], [0], [0], [1], [0, 0, 1, 1], [], []>} : vector<16x16xf32>, vector<16x16xf32>, vector<16x16xf32> -> vector<16x16xf32>
    %138 = vector.extract_strided_slice %28 {offsets = [0, 112], sizes = [16, 16], strides = [1, 1]} : vector<16x128xf32> to vector<16x16xf32>
    %139 = vector.extract_strided_slice %31 {offsets = [0, 112], sizes = [16, 16], strides = [1, 1]} : vector<16x128xf32> to vector<16x16xf32>
    %cst_44 = arith.constant dense<0.000000e+00> : vector<16x16xf32>
    %140 = tpu.matmul %138, %139, %cst_44 {dimension_numbers = #tpu.dot_dimension_numbers<[1], [1], [0], [0], [0, 0, 1, 0], [], []>} : vector<16x16xf32>, vector<16x16xf32>, vector<16x16xf32> -> vector<16x16xf32>
    %141 = arith.addf %140, %32 : vector<16x16xf32>
    %cst_45 = arith.constant dense<0xFF800000> : vector<16xf32>
    %142 = vector.multi_reduction <maximumf>, %141, %cst_45 [1] : vector<16x16xf32> to vector<16xf32>
    %143 = vector.shape_cast %142 : vector<16xf32> to vector<16x1xf32>
    %144 = vector.broadcast %143 : vector<16x1xf32> to vector<16x16xf32>
    %145 = arith.subf %141, %144 : vector<16x16xf32>
    %146 = math.exp %145 : vector<16x16xf32>
    %cst_46 = arith.constant dense<0.000000e+00> : vector<16xf32>
    %147 = vector.multi_reduction <add>, %146, %cst_46 [1] : vector<16x16xf32> to vector<16xf32>
    %148 = vector.shape_cast %147 : vector<16xf32> to vector<16x1xf32>
    %149 = vector.broadcast %148 : vector<16x1xf32> to vector<16x16xf32>
    %150 = arith.divf %146, %149 : vector<16x16xf32>
    %151 = vector.extract_strided_slice %23 {offsets = [0, 112], sizes = [16, 16], strides = [1, 1]} : vector<16x128xf32> to vector<16x16xf32>
    %cst_47 = arith.constant dense<0.000000e+00> : vector<16x16xf32>
    %152 = tpu.matmul %150, %151, %cst_47 {dimension_numbers = #tpu.dot_dimension_numbers<[1], [0], [0], [1], [0, 0, 1, 1], [], []>} : vector<16x16xf32>, vector<16x16xf32>, vector<16x16xf32> -> vector<16x16xf32>
    %153 = tpu.concatenate %47, %62, %77, %92, %107, %122, %137, %152 in 1 : vector<16x16xf32>, vector<16x16xf32>, vector<16x16xf32>, vector<16x16xf32>, vector<16x16xf32>, vector<16x16xf32>, vector<16x16xf32>, vector<16x16xf32> -> vector<16x128xf32>
    %c0_48 = arith.constant 0 : index
    %c0_49 = arith.constant 0 : index
    %154 = vector.load %arg8[%c0_48, %c0_49] : memref<128x128xf32, #tpu.memory_space<vmem>>, vector<128x128xf32>
    %cst_50 = arith.constant dense<0.000000e+00> : vector<16x128xf32>
    %155 = tpu.matmul %153, %154, %cst_50 {dimension_numbers = #tpu.dot_dimension_numbers<[1], [0], [0], [1], [0, 0, 1, 1], [], []>} : vector<16x128xf32>, vector<128x128xf32>, vector<16x128xf32> -> vector<16x128xf32>
    %156 = arith.addf %0, %155 : vector<16x128xf32>
    %c0_51 = arith.constant 0 : index
    %c0_52 = arith.constant 0 : index
    %157 = vector.load %arg9[%c0_51, %c0_52] : memref<1x128xf32, #tpu.memory_space<vmem>>, vector<1x128xf32>
    %158 = vector.broadcast %157 : vector<1x128xf32> to vector<16x128xf32>
    %159 = arith.addf %156, %158 : vector<16x128xf32>
    %160 = arith.mulf %159, %159 : vector<16x128xf32>
    %cst_53 = arith.constant dense<0.000000e+00> : vector<16xf32>
    %161 = vector.multi_reduction <add>, %160, %cst_53 [1] : vector<16x128xf32> to vector<16xf32>
    %162 = vector.shape_cast %161 : vector<16xf32> to vector<16x1xf32>
    %cst_54 = arith.constant 1.280000e+02 : f32
    %163 = vector.broadcast %cst_54 : f32 to vector<16x1xf32>
    %164 = arith.divf %162, %163 : vector<16x1xf32>
    %cst_55 = arith.constant 9.99999997E-7 : f32
    %165 = vector.broadcast %cst_55 : f32 to vector<16x1xf32>
    %166 = arith.addf %164, %165 : vector<16x1xf32>
    %167 = math.rsqrt %166 : vector<16x1xf32>
    %168 = vector.broadcast %167 : vector<16x1xf32> to vector<16x128xf32>
    %169 = arith.mulf %159, %168 : vector<16x128xf32>
    %c0_56 = arith.constant 0 : index
    %c0_57 = arith.constant 0 : index
    %170 = vector.load %arg10[%c0_56, %c0_57] : memref<1x128xf32, #tpu.memory_space<vmem>>, vector<1x128xf32>
    %171 = vector.broadcast %170 : vector<1x128xf32> to vector<16x128xf32>
    %172 = arith.mulf %169, %171 : vector<16x128xf32>
    %c0_58 = arith.constant 0 : index
    %c0_59 = arith.constant 0 : index
    %173 = vector.load %arg11[%c0_58, %c0_59] : memref<128x6xf32, #tpu.memory_space<vmem>>, vector<128x6xf32>
    %cst_60 = arith.constant dense<0.000000e+00> : vector<16x6xf32>
    %174 = tpu.matmul %172, %173, %cst_60 {dimension_numbers = #tpu.dot_dimension_numbers<[1], [0], [0], [1], [0, 0, 1, 1], [], []>} : vector<16x128xf32>, vector<128x6xf32>, vector<16x6xf32> -> vector<16x6xf32>
    %c0_61 = arith.constant 0 : index
    %c0_62 = arith.constant 0 : index
    %175 = vector.load %arg12[%c0_61, %c0_62] : memref<1x6xf32, #tpu.memory_space<vmem>>, vector<1x6xf32>
    %176 = vector.broadcast %175 : vector<1x6xf32> to vector<16x6xf32>
    %177 = arith.addf %174, %176 : vector<16x6xf32>
    %cst_63 = arith.constant dense<0xFF800000> : vector<16xf32>
    %178 = vector.multi_reduction <maximumf>, %177, %cst_63 [1] : vector<16x6xf32> to vector<16xf32>
    %179 = vector.shape_cast %178 : vector<16xf32> to vector<16x1xf32>
    %180 = vector.broadcast %179 : vector<16x1xf32> to vector<16x6xf32>
    %181 = arith.subf %177, %180 : vector<16x6xf32>
    %182 = math.exp %181 : vector<16x6xf32>
    %cst_64 = arith.constant dense<0.000000e+00> : vector<16xf32>
    %183 = vector.multi_reduction <add>, %182, %cst_64 [1] : vector<16x6xf32> to vector<16xf32>
    %184 = vector.shape_cast %183 : vector<16xf32> to vector<16x1xf32>
    %185 = vector.broadcast %184 : vector<16x1xf32> to vector<16x6xf32>
    %186 = arith.divf %182, %185 : vector<16x6xf32>
    %187 = tpu.iota {dimensions = array<i32: 1>} : vector<16x6xi32>
    %cst_65 = arith.constant dense<0xFF800000> : vector<16xf32>
    %188 = vector.multi_reduction <maximumf>, %186, %cst_65 [1] : vector<16x6xf32> to vector<16xf32>
    %189 = vector.shape_cast %188 : vector<16xf32> to vector<16x1xf32>
    %190 = vector.broadcast %189 : vector<16x1xf32> to vector<16x6xf32>
    %191 = arith.cmpf oeq, %186, %190 : vector<16x6xf32>
    %c6_i32 = arith.constant 6 : i32
    %192 = vector.broadcast %c6_i32 : i32 to vector<16x6xi32>
    %193 = arith.select %191, %187, %192 : vector<16x6xi1>, vector<16x6xi32>
    %cst_66 = arith.constant dense<2147483647> : vector<16xi32>
    %194 = vector.multi_reduction <minsi>, %193, %cst_66 [1] : vector<16x6xi32> to vector<16xi32>
    %195 = vector.shape_cast %194 : vector<16xi32> to vector<16x1xi32>
    %196 = vector.broadcast %195 : vector<16x1xi32> to vector<16x6xi32>
    %197 = arith.cmpi eq, %187, %196 : vector<16x6xi32>
    %cst_67 = arith.constant -1.000000e+00 : f32
    %198 = vector.broadcast %cst_67 : f32 to vector<16x6xf32>
    %199 = arith.select %197, %198, %186 : vector<16x6xi1>, vector<16x6xf32>
    %cst_68 = arith.constant dense<0xFF800000> : vector<16xf32>
    %200 = vector.multi_reduction <maximumf>, %199, %cst_68 [1] : vector<16x6xf32> to vector<16xf32>
    %201 = vector.shape_cast %200 : vector<16xf32> to vector<16x1xf32>
    %202 = vector.broadcast %201 : vector<16x1xf32> to vector<16x6xf32>
    %203 = arith.cmpf oeq, %199, %202 : vector<16x6xf32>
    %c6_i32_69 = arith.constant 6 : i32
    %204 = vector.broadcast %c6_i32_69 : i32 to vector<16x6xi32>
    %205 = arith.select %203, %187, %204 : vector<16x6xi1>, vector<16x6xi32>
    %cst_70 = arith.constant dense<2147483647> : vector<16xi32>
    %206 = vector.multi_reduction <minsi>, %205, %cst_70 [1] : vector<16x6xi32> to vector<16xi32>
    %207 = vector.shape_cast %206 : vector<16xi32> to vector<16x1xi32>
    %208 = vector.broadcast %195 : vector<16x1xi32> to vector<16x6xi32>
    %209 = arith.cmpi eq, %187, %208 : vector<16x6xi32>
    %210 = vector.broadcast %207 : vector<16x1xi32> to vector<16x6xi32>
    %211 = arith.cmpi eq, %187, %210 : vector<16x6xi32>
    %212 = arith.ori %209, %211 : vector<16x6xi1>
    %cst_71 = arith.constant 0.000000e+00 : f32
    %213 = vector.broadcast %cst_71 : f32 to vector<16x6xf32>
    %214 = arith.select %212, %186, %213 : vector<16x6xi1>, vector<16x6xf32>
    %c0_72 = arith.constant 0 : index
    %c0_73 = arith.constant 0 : index
    %215 = vector.load %arg13[%c0_72, %c0_73] : memref<128x768xf32, #tpu.memory_space<vmem>>, vector<128x768xf32>
    %cst_74 = arith.constant dense<0.000000e+00> : vector<16x768xf32>
    %216 = tpu.matmul %172, %215, %cst_74 {dimension_numbers = #tpu.dot_dimension_numbers<[1], [0], [0], [1], [0, 0, 1, 1], [], []>} : vector<16x128xf32>, vector<128x768xf32>, vector<16x768xf32> -> vector<16x768xf32>
    %c0_75 = arith.constant 0 : index
    %c0_76 = arith.constant 0 : index
    %217 = vector.load %arg14[%c0_75, %c0_76] : memref<1x768xf32, #tpu.memory_space<vmem>>, vector<1x768xf32>
    %218 = vector.broadcast %217 : vector<1x768xf32> to vector<16x768xf32>
    %219 = arith.addf %216, %218 : vector<16x768xf32>
    %c0_77 = arith.constant 0 : index
    %c0_78 = arith.constant 0 : index
    %220 = vector.load %arg15[%c0_77, %c0_78] : memref<6x768xf32, #tpu.memory_space<vmem>>, vector<6x768xf32>
    %cst_79 = arith.constant dense<0.000000e+00> : vector<16x768xf32>
    %221 = tpu.matmul %214, %220, %cst_79 {dimension_numbers = #tpu.dot_dimension_numbers<[1], [0], [0], [1], [0, 0, 1, 1], [], []>} : vector<16x6xf32>, vector<6x768xf32>, vector<16x768xf32> -> vector<16x768xf32>
    %222 = arith.mulf %221, %219 : vector<16x768xf32>
    %223 = vector.extract_strided_slice %222 {offsets = [0, 0], sizes = [16, 128], strides = [1, 1]} : vector<16x768xf32> to vector<16x128xf32>
    %224 = vector.extract_strided_slice %222 {offsets = [0, 128], sizes = [16, 128], strides = [1, 1]} : vector<16x768xf32> to vector<16x128xf32>
    %225 = arith.addf %223, %224 : vector<16x128xf32>
    %226 = vector.extract_strided_slice %222 {offsets = [0, 256], sizes = [16, 128], strides = [1, 1]} : vector<16x768xf32> to vector<16x128xf32>
    %227 = arith.addf %225, %226 : vector<16x128xf32>
    %228 = vector.extract_strided_slice %222 {offsets = [0, 384], sizes = [16, 128], strides = [1, 1]} : vector<16x768xf32> to vector<16x128xf32>
    %229 = arith.addf %227, %228 : vector<16x128xf32>
    %230 = vector.extract_strided_slice %222 {offsets = [0, 512], sizes = [16, 128], strides = [1, 1]} : vector<16x768xf32> to vector<16x128xf32>
    %231 = arith.addf %229, %230 : vector<16x128xf32>
    %232 = vector.extract_strided_slice %222 {offsets = [0, 640], sizes = [16, 128], strides = [1, 1]} : vector<16x768xf32> to vector<16x128xf32>
    %233 = arith.addf %231, %232 : vector<16x128xf32>
    %234 = arith.addf %159, %233 : vector<16x128xf32>
    %c0_80 = arith.constant 0 : index
    %c0_81 = arith.constant 0 : index
    %235 = vector.load %arg16[%c0_80, %c0_81] : memref<16x128xf32, #tpu.memory_space<vmem>>, vector<16x128xf32>
    tpu.vector_store %arg16[%c0_80, %c0_81], %234 {strides = array<i32>} : memref<16x128xf32, #tpu.memory_space<vmem>>, vector<16x128xf32>,
    return
  }
  func.func @transform_0(%arg0: i32) -> (i32, i32) {
    %c0_i32 = arith.constant 0 : i32
    %c0_i32_0 = arith.constant 0 : i32
    %c0_i32_1 = arith.constant 0 : i32
    return %c0_i32, %c0_i32_0 : i32, i32
  }
  func.func @transform_1(%arg0: i32) -> (i32, i32) {
    %c0_i32 = arith.constant 0 : i32
    %c0_i32_0 = arith.constant 0 : i32
    %c0_i32_1 = arith.constant 0 : i32
    return %c0_i32, %c0_i32_0 : i32, i32
  }
  func.func @transform_2(%arg0: i32) -> (i32, i32) {
    %c0_i32 = arith.constant 0 : i32
    %c0_i32_0 = arith.constant 0 : i32
    %c0_i32_1 = arith.constant 0 : i32
    return %c0_i32, %c0_i32_0 : i32, i32
  }
  func.func @transform_3(%arg0: i32) -> (i32, i32) {
    %c0_i32 = arith.constant 0 : i32
    %c0_i32_0 = arith.constant 0 : i32
    %c0_i32_1 = arith.constant 0 : i32
    return %c0_i32, %c0_i32_0 : i32, i32
  }
  func.func @transform_4(%arg0: i32) -> (i32, i32) {
    %c0_i32 = arith.constant 0 : i32
    %c0_i32_0 = arith.constant 0 : i32
    %c0_i32_1 = arith.constant 0 : i32
    return %c0_i32, %c0_i32_0 : i32, i32
  }
  func.func @transform_5(%arg0: i32) -> (i32, i32) {
    %c0_i32 = arith.constant 0 : i32
    %c0_i32_0 = arith.constant 0 : i32
    %c0_i32_1 = arith.constant 0 : i32
    return %c0_i32, %c0_i32_0 : i32, i32
  }
  func.func @transform_6(%arg0: i32) -> (i32, i32) {
    %c0_i32 = arith.constant 0 : i32
    %c0_i32_0 = arith.constant 0 : i32
    %c0_i32_1 = arith.constant 0 : i32
    return %c0_i32, %c0_i32_0 : i32, i32
  }
  func.func @transform_7(%arg0: i32) -> (i32, i32) {
    %c0_i32 = arith.constant 0 : i32
    %c0_i32_0 = arith.constant 0 : i32
    %c0_i32_1 = arith.constant 0 : i32
    return %c0_i32, %c0_i32_0 : i32, i32
  }
  func.func @transform_8(%arg0: i32) -> (i32, i32) {
    %c0_i32 = arith.constant 0 : i32
    %c0_i32_0 = arith.constant 0 : i32
    %c0_i32_1 = arith.constant 0 : i32
    return %c0_i32, %c0_i32_0 : i32, i32
  }
  func.func @transform_9(%arg0: i32) -> (i32, i32) {
    %c0_i32 = arith.constant 0 : i32
    %c0_i32_0 = arith.constant 0 : i32
    %c0_i32_1 = arith.constant 0 : i32
    return %c0_i32, %c0_i32_0 : i32, i32
  }
  func.func @transform_10(%arg0: i32) -> (i32, i32) {
    %c0_i32 = arith.constant 0 : i32
    %c0_i32_0 = arith.constant 0 : i32
    %c0_i32_1 = arith.constant 0 : i32
    return %c0_i32, %c0_i32_0 : i32, i32
  }
  func.func @transform_11(%arg0: i32) -> (i32, i32) {
    %c0_i32 = arith.constant 0 : i32
    %c0_i32_0 = arith.constant 0 : i32
    %c0_i32_1 = arith.constant 0 : i32
    return %c0_i32, %c0_i32_0 : i32, i32
  }
  func.func @transform_12(%arg0: i32) -> (i32, i32) {
    %c0_i32 = arith.constant 0 : i32
    %c0_i32_0 = arith.constant 0 : i32
    %c0_i32_1 = arith.constant 0 : i32
    return %c0_i32, %c0_i32_0 : i32, i32
  }
  func.func @transform_13(%arg0: i32) -> (i32, i32) {
    %c0_i32 = arith.constant 0 : i32
    %c0_i32_0 = arith.constant 0 : i32
    %c0_i32_1 = arith.constant 0 : i32
    return %c0_i32, %c0_i32_0 : i32, i32
  }
  func.func @transform_14(%arg0: i32) -> (i32, i32) {
    %c0_i32 = arith.constant 0 : i32
    %c0_i32_0 = arith.constant 0 : i32
    %c0_i32_1 = arith.constant 0 : i32
    return %c0_i32, %c0_i32_0 : i32, i32
  }
  func.func @transform_15(%arg0: i32) -> (i32, i32) {
    %c0_i32 = arith.constant 0 : i32
    %c0_i32_0 = arith.constant 0 : i32
    %c0_i32_1 = arith.constant 0 : i32
    return %c0_i32, %c0_i32_0 : i32, i32
  }
}

</mosaic_0001>

<llo_original>
// kernel: tpu_custom_call.1
$region0: #{tpu_custom_call.1}
  #allocation0 [shape = 'u32[]', space=smem, size = 0x4, offset = 0x4, fixed_abs, tag = 'smem constant byte address 0x4 - core index']
  #allocation1 [shape = 'u32[144,128]{1,0:T(1,128)}', space=vmem, size = 0x12000, scoped, tag = 'internal scratch']
  %s0 = inlined_call_operand.hbm [shape: f32[16,128], index: 0, kind: input, shape index: {}]
  %s1 = inlined_call_operand.vmem [shape: f32[1,128], index: 1, kind: input, shape index: {}]
  %s2 = inlined_call_operand.hbm [shape: f32[128,640], index: 2, kind: input, shape index: {}]
  %s3 = inlined_call_operand.hbm [shape: f32[1,640], index: 3, kind: input, shape index: {}]
  %s4 = inlined_call_operand.hbm [shape: f32[16,128], index: 4, kind: input, shape index: {}]
  %s5 = inlined_call_operand.hbm [shape: f32[16,128], index: 5, kind: input, shape index: {}]
  %s6 = inlined_call_operand.hbm [shape: f32[16,16], index: 6, kind: input, shape index: {}]
  %s7 = inlined_call_operand.vmem [shape: f32[128,128], index: 7, kind: input, shape index: {}]
  %s8 = inlined_call_operand.hbm [shape: f32[1,128], index: 8, kind: input, shape index: {}]
  %s9 = inlined_call_operand.hbm [shape: f32[1,128], index: 9, kind: input, shape index: {}]
  %s10 = inlined_call_operand.vmem [shape: f32[128,6], index: 10, kind: input, shape index: {}]
  %s11 = inlined_call_operand.hbm [shape: f32[1,6], index: 11, kind: input, shape index: {}]
  %s12 = inlined_call_operand.hbm [shape: f32[128,768], index: 12, kind: input, shape index: {}]
  %s13 = inlined_call_operand.vmem [shape: f32[1,768], index: 13, kind: input, shape index: {}]
  %s14 = inlined_call_operand.vmem [shape: f32[6,768], index: 14, kind: input, shape index: {}]
  %s15 = inlined_call_operand.hbm [shape: f32[16,128], index: 15, kind: output, shape index: {}]
  %s16 = sld [smem:[#allocation0]]
  $region110: #{tpu_custom_call.1} parent=0
    _
  %s18 = ssub.s32 1, %s16
  %s19 = scalar_select 0, %s18, %s16
  $region1: #{tpu_custom_call.1} parent=0
    #allocation2 [shape = 'u8[8192]{0}', space=vmem, size = 0x2000, scoped, tag = 'input window, operand 0, single buffered']
    #allocation3 [shape = 's32[1]{0}', space=sflag, size = 0x4, scoped, tag = 'scoped memory for tpu_custom_call.1']
    #allocation4 [shape = 's32[1]{0}', space=sflag, size = 0x4, scoped, tag = 'scoped memory for tpu_custom_call.1']
    #allocation5 [shape = 'u8[327680]{0}', space=vmem, size = 0x50000, scoped, tag = 'input window, operand 2, single buffered']
    #allocation6 [shape = 's32[1]{0}', space=sflag, size = 0x4, scoped, tag = 'scoped memory for tpu_custom_call.1']
    #allocation7 [shape = 'u8[2560]{0}', space=vmem, size = 0xc00, scoped, tag = 'input window, operand 3, single buffered']
    #allocation8 [shape = 'u8[8192]{0}', space=vmem, size = 0x2000, scoped, tag = 'input window, operand 4, single buffered']
    #allocation9 [shape = 's32[1]{0}', space=sflag, size = 0x4, scoped, tag = 'scoped memory for tpu_custom_call.1']
    #allocation10 [shape = 'u8[8192]{0}', space=vmem, size = 0x2000, scoped, tag = 'input window, operand 5, single buffered']
    #allocation11 [shape = 'u8[8192]{0}', space=vmem, size = 0x2000, scoped, tag = 'input window, operand 6, single buffered']
    #allocation12 [shape = 's32[1]{0}', space=sflag, size = 0x4, scoped, tag = 'scoped memory for tpu_custom_call.1']
    #allocation13 [shape = 'u8[512]{0}', space=vmem, size = 0x400, scoped, tag = 'input window, operand 8, single buffered']
    #allocation14 [shape = 'u8[512]{0}', space=vmem, size = 0x400, scoped, tag = 'input window, operand 9, single buffered']
    #allocation15 [shape = 's32[1]{0}', space=sflag, size = 0x4, scoped, tag = 'scoped memory for tpu_custom_call.1']
    #allocation16 [shape = 'u8[512]{0}', space=vmem, size = 0x400, scoped, tag = 'input window, operand 11, single buffered']
    #allocation17 [shape = 'u8[393216]{0}', space=vmem, size = 0x60000, scoped, tag = 'input window, operand 12, single buffered']
    #allocation18 [shape = 's32[1]{0}', space=sflag, size = 0x4, scoped, tag = 'scoped memory for tpu_custom_call.1']
    #allocation19 [shape = 'u8[8192]{0}', space=vmem, size = 0x2000, scoped, tag = 'output window, operand 0, single buffered']
    %20 = vsyncpa [#allocation3], 0
    %21 = vsyncpa [#allocation6], 0
    %22 = vsyncpa [#allocation9], 0
    %23 = vsyncpa [#allocation12], 0
    %24 = vsyncpa [#allocation15], 0
    %25 = vsyncpa [#allocation18], 0
    %26 = vsyncpa [#allocation4], 0
    // Predicated region
    $region2: #{tpu_custom_call.1} parent=1 // pred_check
      _
    $region3: #{tpu_custom_call.1} parent=1 // pred_check_branch
      %28 = sbr.rel (0) target = $region5
    $region4: #{tpu_custom_call.1} parent=1 // pred_region
      %s30 = ssub.s32 256, 256
      %31 = vsyncadd [#allocation3], %s30
      %s32 = sshll.u32 [#allocation2], 4
      %s33 = int_to_ptr.vmem [resolvable:$true] %s32
      %38 = dma.hbm_to_vmem [thread:$0]  %s0, 256, %s33, [#allocation3], 128, 128, 8
    $region5: #{tpu_custom_call.1} parent=1 // pred_fallthru
      _
    // Predicated region
    $region6: #{tpu_custom_call.1} parent=1 // pred_check
      _
    $region7: #{tpu_custom_call.1} parent=1 // pred_check_branch
      %40 = sbr.rel (0) target = $region9
    $region8: #{tpu_custom_call.1} parent=1 // pred_region
      _
    $region9: #{tpu_custom_call.1} parent=1 // pred_fallthru
      _
    // Predicated region
    $region10: #{tpu_custom_call.1} parent=1 // pred_check
      _
    $region11: #{tpu_custom_call.1} parent=1 // pred_check_branch
      %42 = sbr.rel (0) target = $region13
    $region12: #{tpu_custom_call.1} parent=1 // pred_region
      %s44 = ssub.s32 10240, 10240
      %45 = vsyncadd [#allocation6], %s44
      %s46 = sshll.u32 [#allocation5], 4
      %s47 = int_to_ptr.vmem [resolvable:$true] %s46
      %52 = dma.hbm_to_vmem [thread:$0]  %s2, 10240, %s47, [#allocation6], 640, 640, 40
    $region13: #{tpu_custom_call.1} parent=1 // pred_fallthru
      _
    // Predicated region
    $region14: #{tpu_custom_call.1} parent=1 // pred_check
      _
    $region15: #{tpu_custom_call.1} parent=1 // pred_check_branch
      %54 = sbr.rel (0) target = $region17
    $region16: #{tpu_custom_call.1} parent=1 // pred_region
      %s56 = ssub.s32 80, 80
      %57 = vsyncadd [#allocation6], %s56
      %s59 = sshll.u32 [#allocation7], 4
      %s60 = int_to_ptr.vmem [resolvable:$true] %s59
      %62 = dma.hbm_to_vmem [thread:$0]  %s3, 80, %s60, [#allocation6]
    $region17: #{tpu_custom_call.1} parent=1 // pred_fallthru
      _
    // Predicated region
    $region18: #{tpu_custom_call.1} parent=1 // pred_check
      _
    $region19: #{tpu_custom_call.1} parent=1 // pred_check_branch
      %64 = sbr.rel (0) target = $region21
    $region20: #{tpu_custom_call.1} parent=1 // pred_region
      %s66 = ssub.s32 256, 256
      %67 = vsyncadd [#allocation9], %s66
      %s68 = sshll.u32 [#allocation8], 4
      %s69 = int_to_ptr.vmem [resolvable:$true] %s68
      %74 = dma.hbm_to_vmem [thread:$0]  %s4, 256, %s69, [#allocation9], 128, 128, 8
    $region21: #{tpu_custom_call.1} parent=1 // pred_fallthru
      _
    // Predicated region
    $region22: #{tpu_custom_call.1} parent=1 // pred_check
      _
    $region23: #{tpu_custom_call.1} parent=1 // pred_check_branch
      %76 = sbr.rel (0) target = $region25
    $region24: #{tpu_custom_call.1} parent=1 // pred_region
      %s78 = ssub.s32 256, 256
      %79 = vsyncadd [#allocation9], %s78
      %s80 = sshll.u32 [#allocation10], 4
      %s81 = int_to_ptr.vmem [resolvable:$true] %s80
      %86 = dma.hbm_to_vmem [thread:$0]  %s5, 256, %s81, [#allocation9], 128, 128, 8
    $region25: #{tpu_custom_call.1} parent=1 // pred_fallthru
      _
    // Predicated region
    $region26: #{tpu_custom_call.1} parent=1 // pred_check
      _
    $region27: #{tpu_custom_call.1} parent=1 // pred_check_branch
      %88 = sbr.rel (0) target = $region29
    $region28: #{tpu_custom_call.1} parent=1 // pred_region
      %s90 = ssub.s32 256, 256
      %91 = vsyncadd [#allocation12], %s90
      %s92 = sshll.u32 [#allocation11], 4
      %s93 = int_to_ptr.vmem [resolvable:$true] %s92
      %98 = dma.hbm_to_vmem [thread:$0]  %s6, 256, %s93, [#allocation12], 128, 128, 8
    $region29: #{tpu_custom_call.1} parent=1 // pred_fallthru
      _
    // Predicated region
    $region30: #{tpu_custom_call.1} parent=1 // pred_check
      _
    $region31: #{tpu_custom_call.1} parent=1 // pred_check_branch
      %100 = sbr.rel (0) target = $region33
    $region32: #{tpu_custom_call.1} parent=1 // pred_region
      _
    $region33: #{tpu_custom_call.1} parent=1 // pred_fallthru
      _
    // Predicated region
    $region34: #{tpu_custom_call.1} parent=1 // pred_check
      _
    $region35: #{tpu_custom_call.1} parent=1 // pred_check_branch
      %102 = sbr.rel (0) target = $region37
    $region36: #{tpu_custom_call.1} parent=1 // pred_region
      %s104 = ssub.s32 16, 16
      %105 = vsyncadd [#allocation12], %s104
      %s107 = sshll.u32 [#allocation13], 4
      %s108 = int_to_ptr.vmem [resolvable:$true] %s107
      %110 = dma.hbm_to_vmem [thread:$0]  %s8, 16, %s108, [#allocation12]
    $region37: #{tpu_custom_call.1} parent=1 // pred_fallthru
      _
    // Predicated region
    $region38: #{tpu_custom_call.1} parent=1 // pred_check
      _
    $region39: #{tpu_custom_call.1} parent=1 // pred_check_branch
      %112 = sbr.rel (0) target = $region41
    $region40: #{tpu_custom_call.1} parent=1 // pred_region
      %s114 = ssub.s32 16, 16
      %115 = vsyncadd [#allocation15], %s114
      %s117 = sshll.u32 [#allocation14], 4
      %s118 = int_to_ptr.vmem [resolvable:$true] %s117
      %120 = dma.hbm_to_vmem [thread:$0]  %s9, 16, %s118, [#allocation15]
    $region41: #{tpu_custom_call.1} parent=1 // pred_fallthru
      _
    // Predicated region
    $region42: #{tpu_custom_call.1} parent=1 // pred_check
      _
    $region43: #{tpu_custom_call.1} parent=1 // pred_check_branch
      %122 = sbr.rel (0) target = $region45
    $region44: #{tpu_custom_call.1} parent=1 // pred_region
      _
    $region45: #{tpu_custom_call.1} parent=1 // pred_fallthru
      _
    // Predicated region
    $region46: #{tpu_custom_call.1} parent=1 // pred_check
      _
    $region47: #{tpu_custom_call.1} parent=1 // pred_check_branch
      %124 = sbr.rel (0) target = $region49
    $region48: #{tpu_custom_call.1} parent=1 // pred_region
      %s126 = ssub.s32 16, 16
      %127 = vsyncadd [#allocation15], %s126
      %s129 = sshll.u32 [#allocation16], 4
      %s130 = int_to_ptr.vmem [resolvable:$true] %s129
      %132 = dma.hbm_to_vmem [thread:$0]  %s11, 16, %s130, [#allocation15]
    $region49: #{tpu_custom_call.1} parent=1 // pred_fallthru
      _
    // Predicated region
    $region50: #{tpu_custom_call.1} parent=1 // pred_check
      _
    $region51: #{tpu_custom_call.1} parent=1 // pred_check_branch
      %134 = sbr.rel (0) target = $region53
    $region52: #{tpu_custom_call.1} parent=1 // pred_region
      %s136 = ssub.s32 12288, 12288
      %137 = vsyncadd [#allocation18], %s136
      %s138 = sshll.u32 [#allocation17], 4
      %s139 = int_to_ptr.vmem [resolvable:$true] %s138
      %144 = dma.hbm_to_vmem [thread:$0]  %s12, 12288, %s139, [#allocation18], 768, 768, 48
    $region53: #{tpu_custom_call.1} parent=1 // pred_fallthru
      _
    // Predicated region
    $region54: #{tpu_custom_call.1} parent=1 // pred_check
      _
    $region55: #{tpu_custom_call.1} parent=1 // pred_check_branch
      %146 = sbr.rel (0) target = $region57
    $region56: #{tpu_custom_call.1} parent=1 // pred_region
      _
    $region57: #{tpu_custom_call.1} parent=1 // pred_fallthru
      _
    // Predicated region
    $region58: #{tpu_custom_call.1} parent=1 // pred_check
      _
    $region59: #{tpu_custom_call.1} parent=1 // pred_check_branch
      %148 = sbr.rel (0) target = $region61
    $region60: #{tpu_custom_call.1} parent=1 // pred_region
      _
    $region61: #{tpu_custom_call.1} parent=1 // pred_fallthru
      _
    // Predicated region
    $region62: #{tpu_custom_call.1} parent=1 // pred_check
      _
    $region63: #{tpu_custom_call.1} parent=1 // pred_check_branch
      %150 = sbr.rel (0) target = $region65
    $region64: #{tpu_custom_call.1} parent=1 // pred_region
      %151 = dma.done [#allocation3], 256
    $region65: #{tpu_custom_call.1} parent=1 // pred_fallthru
      _
    // Predicated region
    $region66: #{tpu_custom_call.1} parent=1 // pred_check
      _
    $region67: #{tpu_custom_call.1} parent=1 // pred_check_branch
      %153 = sbr.rel (0) target = $region69
    $region68: #{tpu_custom_call.1} parent=1 // pred_region
      %154 = dma.done [#allocation6], 10240
    $region69: #{tpu_custom_call.1} parent=1 // pred_fallthru
      _
    // Predicated region
    $region70: #{tpu_custom_call.1} parent=1 // pred_check
      _
    $region71: #{tpu_custom_call.1} parent=1 // pred_check_branch
      %156 = sbr.rel (0) target = $region73
    $region72: #{tpu_custom_call.1} parent=1 // pred_region
      %157 = dma.done [#allocation6], 80
    $region73: #{tpu_custom_call.1} parent=1 // pred_fallthru
      _
    // Predicated region
    $region74: #{tpu_custom_call.1} parent=1 // pred_check
      _
    $region75: #{tpu_custom_call.1} parent=1 // pred_check_branch
      %159 = sbr.rel (0) target = $region77
    $region76: #{tpu_custom_call.1} parent=1 // pred_region
      %160 = dma.done [#allocation9], 256
    $region77: #{tpu_custom_call.1} parent=1 // pred_fallthru
      _
    // Predicated region
    $region78: #{tpu_custom_call.1} parent=1 // pred_check
      _
    $region79: #{tpu_custom_call.1} parent=1 // pred_check_branch
      %162 = sbr.rel (0) target = $region81
    $region80: #{tpu_custom_call.1} parent=1 // pred_region
      %163 = dma.done [#allocation9], 256
    $region81: #{tpu_custom_call.1} parent=1 // pred_fallthru
      _
    // Predicated region
    $region82: #{tpu_custom_call.1} parent=1 // pred_check
      _
    $region83: #{tpu_custom_call.1} parent=1 // pred_check_branch
      %165 = sbr.rel (0) target = $region85
    $region84: #{tpu_custom_call.1} parent=1 // pred_region
      %166 = dma.done [#allocation12], 256
    $region85: #{tpu_custom_call.1} parent=1 // pred_fallthru
      _
    // Predicated region
    $region86: #{tpu_custom_call.1} parent=1 // pred_check
      _
    $region87: #{tpu_custom_call.1} parent=1 // pred_check_branch
      %168 = sbr.rel (0) target = $region89
    $region88: #{tpu_custom_call.1} parent=1 // pred_region
      %169 = dma.done [#allocation12], 16
    $region89: #{tpu_custom_call.1} parent=1 // pred_fallthru
      _
    // Predicated region
    $region90: #{tpu_custom_call.1} parent=1 // pred_check
      _
    $region91: #{tpu_custom_call.1} parent=1 // pred_check_branch
      %171 = sbr.rel (0) target = $region93
    $region92: #{tpu_custom_call.1} parent=1 // pred_region
      %172 = dma.done [#allocation15], 16
    $region93: #{tpu_custom_call.1} parent=1 // pred_fallthru
      _
    // Predicated region
    $region94: #{tpu_custom_call.1} parent=1 // pred_check
      _
    $region95: #{tpu_custom_call.1} parent=1 // pred_check_branch
      %174 = sbr.rel (0) target = $region97
    $region96: #{tpu_custom_call.1} parent=1 // pred_region
      %175 = dma.done [#allocation15], 16
    $region97: #{tpu_custom_call.1} parent=1 // pred_fallthru
      _
    // Predicated region
    $region98: #{tpu_custom_call.1} parent=1 // pred_check
      _
    $region99: #{tpu_custom_call.1} parent=1 // pred_check_branch
      %177 = sbr.rel (0) target = $region101
    $region100: #{tpu_custom_call.1} parent=1 // pred_region
      %178 = dma.done [#allocation18], 12288
    $region101: #{tpu_custom_call.1} parent=1 // pred_fallthru
      _
    %v179 = vld [vmem:[#allocation2] sm:$0xff]
    %v180 = vld [vmem:[#allocation2 + $0x8] sm:$0xff]
    %v181 = vmul.f32 %v179, %v179
    %v182 = vmul.f32 %v180, %v180
    %183 = vadd.xlane.f32.xlu0 %v181
    %v184 = vpop.xlane.xlu0 %183
    %185 = vadd.xlane.f32.xlu0 %v182
    %v186 = vpop.xlane.xlu0 %185
    %v187 = vrcp.pop 128.0
    %v188 = vmul.f32 %v184, %v187
    %v189 = vmul.f32 %v186, %v187
    %v190 = vadd.f32 %v188, 1e-06
    %v191 = vadd.f32 %v189, 1e-06
    %v192 = vrsqrt.pop %v190
    %v193 = vrsqrt.pop %v191
    %v194 = vmul.f32 %v179, %v192
    %v195 = vmul.f32 %v180, %v193
    %v196 = vld [vmem:[%s1] sm:$0x1]
    %v198 = vlaneseq
    %v199 = vshrl.u32 %v198, 7
    %v200 = vsub.s32 0, %v199
    %v201 = vrot.slane %v196, %v200
    %v203 = vmul.f32 %v194, %v201
    %v204 = vmul.f32 %v195, %v201
    %v205 = vld [vmem:[#allocation5] sm:$0xff]
    %v206 = vld [vmem:[#allocation5 + $0x8] sm:$0xff]
    %v207 = vld [vmem:[#allocation5 + $0x10] sm:$0xff]
    %v208 = vld [vmem:[#allocation5 + $0x18] sm:$0xff]
    %v209 = vld [vmem:[#allocation5 + $0x20] sm:$0xff]
    %v210 = vld [vmem:[#allocation5 + $0x28] sm:$0xff]
    %v211 = vld [vmem:[#allocation5 + $0x30] sm:$0xff]
    %v212 = vld [vmem:[#allocation5 + $0x38] sm:$0xff]
    %v213 = vld [vmem:[#allocation5 + $0x40] sm:$0xff]
    %v214 = vld [vmem:[#allocation5 + $0x48] sm:$0xff]
    %v215 = vld [vmem:[#allocation5 + $0x50] sm:$0xff]
    %v216 = vld [vmem:[#allocation5 + $0x58] sm:$0xff]
    %v217 = vld [vmem:[#allocation5 + $0x60] sm:$0xff]
    %v218 = vld [vmem:[#allocation5 + $0x68] sm:$0xff]
    %v219 = vld [vmem:[#allocation5 + $0x70] sm:$0xff]
    %v220 = vld [vmem:[#allocation5 + $0x78] sm:$0xff]
    %v221 = vld [vmem:[#allocation5 + $0x80] sm:$0xff]
    %v222 = vld [vmem:[#allocation5 + $0x88] sm:$0xff]
    %v223 = vld [vmem:[#allocation5 + $0x90] sm:$0xff]
    %v224 = vld [vmem:[#allocation5 + $0x98] sm:$0xff]
    %v225 = vld [vmem:[#allocation5 + $0xa0] sm:$0xff]
    %v226 = vld [vmem:[#allocation5 + $0xa8] sm:$0xff]
    %v227 = vld [vmem:[#allocation5 + $0xb0] sm:$0xff]
    %v228 = vld [vmem:[#allocation5 + $0xb8] sm:$0xff]
    %v229 = vld [vmem:[#allocation5 + $0xc0] sm:$0xff]
    %v230 = vld [vmem:[#allocation5 + $0xc8] sm:$0xff]
    %v231 = vld [vmem:[#allocation5 + $0xd0] sm:$0xff]
    %v232 = vld [vmem:[#allocation5 + $0xd8] sm:$0xff]
    %v233 = vld [vmem:[#allocation5 + $0xe0] sm:$0xff]
    %v234 = vld [vmem:[#allocation5 + $0xe8] sm:$0xff]
    %v235 = vld [vmem:[#allocation5 + $0xf0] sm:$0xff]
    %v236 = vld [vmem:[#allocation5 + $0xf8] sm:$0xff]
    %v237 = vld [vmem:[#allocation5 + $0x100] sm:$0xff]
    %v238 = vld [vmem:[#allocation5 + $0x108] sm:$0xff]
    %v239 = vld [vmem:[#allocation5 + $0x110] sm:$0xff]
    %v240 = vld [vmem:[#allocation5 + $0x118] sm:$0xff]
    %v241 = vld [vmem:[#allocation5 + $0x120] sm:$0xff]
    %v242 = vld [vmem:[#allocation5 + $0x128] sm:$0xff]
    %v243 = vld [vmem:[#allocation5 + $0x130] sm:$0xff]
    %v244 = vld [vmem:[#allocation5 + $0x138] sm:$0xff]
    %v245 = vld [vmem:[#allocation5 + $0x140] sm:$0xff]
    %v246 = vld [vmem:[#allocation5 + $0x148] sm:$0xff]
    %v247 = vld [vmem:[#allocation5 + $0x150] sm:$0xff]
    %v248 = vld [vmem:[#allocation5 + $0x158] sm:$0xff]
    %v249 = vld [vmem:[#allocation5 + $0x160] sm:$0xff]
    %v250 = vld [vmem:[#allocation5 + $0x168] sm:$0xff]
    %v251 = vld [vmem:[#allocation5 + $0x170] sm:$0xff]
    %v252 = vld [vmem:[#allocation5 + $0x178] sm:$0xff]
    %v253 = vld [vmem:[#allocation5 + $0x180] sm:$0xff]
    %v254 = vld [vmem:[#allocation5 + $0x188] sm:$0xff]
    %v255 = vld [vmem:[#allocation5 + $0x190] sm:$0xff]
    %v256 = vld [vmem:[#allocation5 + $0x198] sm:$0xff]
    %v257 = vld [vmem:[#allocation5 + $0x1a0] sm:$0xff]
    %v258 = vld [vmem:[#allocation5 + $0x1a8] sm:$0xff]
    %v259 = vld [vmem:[#allocation5 + $0x1b0] sm:$0xff]
    %v260 = vld [vmem:[#allocation5 + $0x1b8] sm:$0xff]
    %v261 = vld [vmem:[#allocation5 + $0x1c0] sm:$0xff]
    %v262 = vld [vmem:[#allocation5 + $0x1c8] sm:$0xff]
    %v263 = vld [vmem:[#allocation5 + $0x1d0] sm:$0xff]
    %v264 = vld [vmem:[#allocation5 + $0x1d8] sm:$0xff]
    %v265 = vld [vmem:[#allocation5 + $0x1e0] sm:$0xff]
    %v266 = vld [vmem:[#allocation5 + $0x1e8] sm:$0xff]
    %v267 = vld [vmem:[#allocation5 + $0x1f0] sm:$0xff]
    %v268 = vld [vmem:[#allocation5 + $0x1f8] sm:$0xff]
    %v269 = vld [vmem:[#allocation5 + $0x200] sm:$0xff]
    %v270 = vld [vmem:[#allocation5 + $0x208] sm:$0xff]
    %v271 = vld [vmem:[#allocation5 + $0x210] sm:$0xff]
    %v272 = vld [vmem:[#allocation5 + $0x218] sm:$0xff]
    %v273 = vld [vmem:[#allocation5 + $0x220] sm:$0xff]
    %v274 = vld [vmem:[#allocation5 + $0x228] sm:$0xff]
    %v275 = vld [vmem:[#allocation5 + $0x230] sm:$0xff]
    %v276 = vld [vmem:[#allocation5 + $0x238] sm:$0xff]
    %v277 = vld [vmem:[#allocation5 + $0x240] sm:$0xff]
    %v278 = vld [vmem:[#allocation5 + $0x248] sm:$0xff]
    %v279 = vld [vmem:[#allocation5 + $0x250] sm:$0xff]
    %v280 = vld [vmem:[#allocation5 + $0x258] sm:$0xff]
    %v281 = vld [vmem:[#allocation5 + $0x260] sm:$0xff]
    %v282 = vld [vmem:[#allocation5 + $0x268] sm:$0xff]
    %v283 = vld [vmem:[#allocation5 + $0x270] sm:$0xff]
    %v284 = vld [vmem:[#allocation5 + $0x278] sm:$0xff]
    %v285 = vld [vmem:[#allocation7] sm:$0x1f]
    %v287 = vlaneseq
    %v288 = vshrl.u32 %v287, 7
    %v289 = vsub.s32 0, %v288
    %v290 = vrot.slane %v285, %v289
    %v291 = vlaneseq
    %v292 = vshrl.u32 %v291, 7
    %v293 = vsub.s32 1, %v292
    %v294 = vrot.slane %v285, %v293
    %v295 = vlaneseq
    %v296 = vshrl.u32 %v295, 7
    %v297 = vsub.s32 2, %v296
    %v298 = vrot.slane %v285, %v297
    %v299 = vlaneseq
    %v300 = vshrl.u32 %v299, 7
    %v301 = vsub.s32 3, %v300
    %v302 = vrot.slane %v285, %v301
    %v303 = vlaneseq
    %v304 = vshrl.u32 %v303, 7
    %v305 = vsub.s32 4, %v304
    %v306 = vrot.slane %v285, %v305
    %312 = vmatprep.subr.mxu0 %v206
    %313 = vmatpush1.msra.mxu0 %v205
    %314 = vmatprep.subr.mxu0 %v211
    %315 = vmatpush1.msra.mxu0 %v210
    %316 = vmatprep.subr.mxu0 %v216
    %317 = vmatpush1.msra.mxu0 %v215
    %318 = vmatprep.subr.mxu0 %v221
    %319 = vmatpush1.msra.mxu0 %v220
    %320 = vmatprep.subr.mxu0 %v226
    %321 = vmatpush1.msra.mxu0 %v225
    %322 = vmatprep.subr.mxu0 %v231
    %323 = vmatpush1.msra.mxu0 %v230
    %324 = vmatprep.subr.mxu0 %v236
    %325 = vmatpush1.msra.mxu0 %v235
    %326 = vmatprep.subr.mxu0 %v241
    %327 = vmatpush1.msra.mxu0 %v240
    %328 = vmatprep.subr.mxu0 %v246
    %329 = vmatpush1.msra.mxu0 %v245
    %330 = vmatprep.subr.mxu0 %v251
    %331 = vmatpush1.msra.mxu0 %v250
    %332 = vmatprep.subr.mxu0 %v256
    %333 = vmatpush1.msra.mxu0 %v255
    %334 = vmatprep.subr.mxu0 %v261
    %335 = vmatpush1.msra.mxu0 %v260
    %336 = vmatprep.subr.mxu0 %v266
    %337 = vmatpush1.msra.mxu0 %v265
    %338 = vmatprep.subr.mxu0 %v271
    %339 = vmatpush1.msra.mxu0 %v270
    %340 = vmatprep.subr.mxu0 %v276
    %341 = vmatpush1.msra.mxu0 %v275
    %342 = vmatprep.subr.mxu0 %v281
    %343 = vmatpush1.msra.mxu0 %v280
    %344 = vmatprep.subr.mxu0 0.0
    %345 = vmatpush1.msra.mxu0 0.0
    %346 = vmatprep.subr.mxu0 0.0
    %347 = vmatpush1.msra.mxu0 0.0
    %348 = vmatprep.subr.mxu0 0.0
    %349 = vmatpush1.msra.mxu0 0.0
    %350 = vmatprep.subr.mxu0 0.0
    %351 = vmatpush1.msra.mxu0 0.0
    %352 = vmatprep.subr.mxu0 0.0
    %353 = vmatpush1.msra.mxu0 0.0
    %354 = vmatprep.subr.mxu0 0.0
    %355 = vmatpush1.msra.mxu0 0.0
    %356 = vmatprep.subr.mxu0 0.0
    %357 = vmatpush1.msra.mxu0 0.0
    %358 = vmatprep.subr.mxu0 0.0
    %359 = vmatpush1.msra.mxu0 0.0
    %360 = vmatprep.subr.mxu0 0.0
    %361 = vmatpush1.msra.mxu0 0.0
    %362 = vmatprep.subr.mxu0 0.0
    %363 = vmatpush1.msra.mxu0 0.0
    %364 = vmatprep.subr.mxu0 0.0
    %365 = vmatpush1.msra.mxu0 0.0
    %366 = vmatprep.subr.mxu0 0.0
    %367 = vmatpush1.msra.mxu0 0.0
    %368 = vmatprep.subr.mxu0 0.0
    %369 = vmatpush1.msra.mxu0 0.0
    %370 = vmatprep.subr.mxu0 0.0
    %371 = vmatpush1.msra.mxu0 0.0
    %372 = vmatprep.subr.mxu0 0.0
    %373 = vmatpush1.msra.mxu0 0.0
    %374 = vmatprep.subr.mxu0 0.0
    %375 = vmatpush1.msra.mxu0 0.0
    %376 = vmatprep.mubr.f32.mxu0 0.0
    %377 = vmatmul.mubr.f32.gmra.mrb[0].mxu0 %v203
    %v378 = vpop.f32.mrb[0].mxu0
    %v379 = vadd.f32 %v290, %v378
    %v380 = vpop.f32.mrb[0].mxu0
    %v381 = vadd.f32 %v294, %v380
    %382 = vmatprep.mubr.f32.mxu0 0.0
    %383 = vmatmul.mubr.f32.gmra.mrb[0].mxu0 %v204
    %v384 = vpop.f32.mrb[0].mxu0
    %v385 = vadd.f32 %v290, %v384
    %v386 = vpop.f32.mrb[0].mxu0
    %v387 = vadd.f32 %v294, %v386
    %388 = vdwg.mxu0
    %389 = vmatprep.subr.mxu0 %v208
    %390 = vmatpush1.msra.mxu0 %v207
    %391 = vmatprep.subr.mxu0 %v213
    %392 = vmatpush1.msra.mxu0 %v212
    %393 = vmatprep.subr.mxu0 %v218
    %394 = vmatpush1.msra.mxu0 %v217
    %395 = vmatprep.subr.mxu0 %v223
    %396 = vmatpush1.msra.mxu0 %v222
    %397 = vmatprep.subr.mxu0 %v228
    %398 = vmatpush1.msra.mxu0 %v227
    %399 = vmatprep.subr.mxu0 %v233
    %400 = vmatpush1.msra.mxu0 %v232
    %401 = vmatprep.subr.mxu0 %v238
    %402 = vmatpush1.msra.mxu0 %v237
    %403 = vmatprep.subr.mxu0 %v243
    %404 = vmatpush1.msra.mxu0 %v242
    %405 = vmatprep.subr.mxu0 %v248
    %406 = vmatpush1.msra.mxu0 %v247
    %407 = vmatprep.subr.mxu0 %v253
    %408 = vmatpush1.msra.mxu0 %v252
    %409 = vmatprep.subr.mxu0 %v258
    %410 = vmatpush1.msra.mxu0 %v257
    %411 = vmatprep.subr.mxu0 %v263
    %412 = vmatpush1.msra.mxu0 %v262
    %413 = vmatprep.subr.mxu0 %v268
    %414 = vmatpush1.msra.mxu0 %v267
    %415 = vmatprep.subr.mxu0 %v273
    %416 = vmatpush1.msra.mxu0 %v272
    %417 = vmatprep.subr.mxu0 %v278
    %418 = vmatpush1.msra.mxu0 %v277
    %419 = vmatprep.subr.mxu0 %v283
    %420 = vmatpush1.msra.mxu0 %v282
    %421 = vmatprep.subr.mxu0 0.0
    %422 = vmatpush1.msra.mxu0 0.0
    %423 = vmatprep.subr.mxu0 0.0
    %424 = vmatpush1.msra.mxu0 0.0
    %425 = vmatprep.subr.mxu0 0.0
    %426 = vmatpush1.msra.mxu0 0.0
    %427 = vmatprep.subr.mxu0 0.0
    %428 = vmatpush1.msra.mxu0 0.0
    %429 = vmatprep.subr.mxu0 0.0
    %430 = vmatpush1.msra.mxu0 0.0
    %431 = vmatprep.subr.mxu0 0.0
    %432 = vmatpush1.msra.mxu0 0.0
    %433 = vmatprep.subr.mxu0 0.0
    %434 = vmatpush1.msra.mxu0 0.0
    %435 = vmatprep.subr.mxu0 0.0
    %436 = vmatpush1.msra.mxu0 0.0
    %437 = vmatprep.subr.mxu0 0.0
    %438 = vmatpush1.msra.mxu0 0.0
    %439 = vmatprep.subr.mxu0 0.0
    %440 = vmatpush1.msra.mxu0 0.0
    %441 = vmatprep.subr.mxu0 0.0
    %442 = vmatpush1.msra.mxu0 0.0
    %443 = vmatprep.subr.mxu0 0.0
    %444 = vmatpush1.msra.mxu0 0.0
    %445 = vmatprep.subr.mxu0 0.0
    %446 = vmatpush1.msra.mxu0 0.0
    %447 = vmatprep.subr.mxu0 0.0
    %448 = vmatpush1.msra.mxu0 0.0
    %449 = vmatprep.subr.mxu0 0.0
    %450 = vmatpush1.msra.mxu0 0.0
    %451 = vmatprep.subr.mxu0 0.0
    %452 = vmatpush1.msra.mxu0 0.0
    %453 = vmatprep.mubr.f32.mxu0 0.0
    %454 = vmatmul.mubr.f32.gmra.mrb[0].mxu0 %v203
    %v455 = vpop.f32.mrb[0].mxu0
    %v456 = vadd.f32 %v298, %v455
    %v457 = vpop.f32.mrb[0].mxu0
    %v458 = vadd.f32 %v302, %v457
    %459 = vmatprep.mubr.f32.mxu0 0.0
    %460 = vmatmul.mubr.f32.gmra.mrb[0].mxu0 %v204
    %v461 = vpop.f32.mrb[0].mxu0
    %v462 = vadd.f32 %v298, %v461
    %v463 = vpop.f32.mrb[0].mxu0
    %v464 = vadd.f32 %v302, %v463
    %465 = vdwg.mxu0
    %466 = vmatprep.subr.mxu0 0.0
    %467 = vmatpush1.msra.mxu0 %v209
    %468 = vmatprep.subr.mxu0 0.0
    %469 = vmatpush1.msra.mxu0 %v214
    %470 = vmatprep.subr.mxu0 0.0
    %471 = vmatpush1.msra.mxu0 %v219
    %472 = vmatprep.subr.mxu0 0.0
    %473 = vmatpush1.msra.mxu0 %v224
    %474 = vmatprep.subr.mxu0 0.0
    %475 = vmatpush1.msra.mxu0 %v229
    %476 = vmatprep.subr.mxu0 0.0
    %477 = vmatpush1.msra.mxu0 %v234
    %478 = vmatprep.subr.mxu0 0.0
    %479 = vmatpush1.msra.mxu0 %v239
    %480 = vmatprep.subr.mxu0 0.0
    %481 = vmatpush1.msra.mxu0 %v244
    %482 = vmatprep.subr.mxu0 0.0
    %483 = vmatpush1.msra.mxu0 %v249
    %484 = vmatprep.subr.mxu0 0.0
    %485 = vmatpush1.msra.mxu0 %v254
    %486 = vmatprep.subr.mxu0 0.0
    %487 = vmatpush1.msra.mxu0 %v259
    %488 = vmatprep.subr.mxu0 0.0
    %489 = vmatpush1.msra.mxu0 %v264
    %490 = vmatprep.subr.mxu0 0.0
    %491 = vmatpush1.msra.mxu0 %v269
    %492 = vmatprep.subr.mxu0 0.0
    %493 = vmatpush1.msra.mxu0 %v274
    %494 = vmatprep.subr.mxu0 0.0
    %495 = vmatpush1.msra.mxu0 %v279
    %496 = vmatprep.subr.mxu0 0.0
    %497 = vmatpush1.msra.mxu0 %v284
    %498 = vmatprep.subr.mxu0 0.0
    %499 = vmatpush1.msra.mxu0 0.0
    %500 = vmatprep.subr.mxu0 0.0
    %501 = vmatpush1.msra.mxu0 0.0
    %502 = vmatprep.subr.mxu0 0.0
    %503 = vmatpush1.msra.mxu0 0.0
    %504 = vmatprep.subr.mxu0 0.0
    %505 = vmatpush1.msra.mxu0 0.0
    %506 = vmatprep.subr.mxu0 0.0
    %507 = vmatpush1.msra.mxu0 0.0
    %508 = vmatprep.subr.mxu0 0.0
    %509 = vmatpush1.msra.mxu0 0.0
    %510 = vmatprep.subr.mxu0 0.0
    %511 = vmatpush1.msra.mxu0 0.0
    %512 = vmatprep.subr.mxu0 0.0
    %513 = vmatpush1.msra.mxu0 0.0
    %514 = vmatprep.subr.mxu0 0.0
    %515 = vmatpush1.msra.mxu0 0.0
    %516 = vmatprep.subr.mxu0 0.0
    %517 = vmatpush1.msra.mxu0 0.0
    %518 = vmatprep.subr.mxu0 0.0
    %519 = vmatpush1.msra.mxu0 0.0
    %520 = vmatprep.subr.mxu0 0.0
    %521 = vmatpush1.msra.mxu0 0.0
    %522 = vmatprep.subr.mxu0 0.0
    %523 = vmatpush1.msra.mxu0 0.0
    %524 = vmatprep.subr.mxu0 0.0
    %525 = vmatpush1.msra.mxu0 0.0
    %526 = vmatprep.subr.mxu0 0.0
    %527 = vmatpush1.msra.mxu0 0.0
    %528 = vmatprep.subr.mxu0 0.0
    %529 = vmatpush1.msra.mxu0 0.0
    %530 = vmatprep.mubr.f32.mxu0 0.0
    %531 = vmatmul.mubr.f32.gmra.mrb[0].mxu0 %v203
    %v532 = vpop.f32.mrb[0].mxu0
    %v533 = vadd.f32 %v306, %v532
    %v534 = vpop.f32.mrb[0].mxu0
    %535 = vmatprep.mubr.f32.mxu0 0.0
    %536 = vmatmul.mubr.f32.gmra.mrb[0].mxu0 %v204
    %v537 = vpop.f32.mrb[0].mxu0
    %v538 = vadd.f32 %v306, %v537
    %v539 = vpop.f32.mrb[0].mxu0
    %540 = vdwg.mxu0
    %v541 = vld [vmem:[#allocation8] sm:$0xff]
    %v542 = vld [vmem:[#allocation8 + $0x8] sm:$0xff]
    %v543 = vld [vmem:[#allocation10] sm:$0xff]
    %v544 = vld [vmem:[#allocation10 + $0x8] sm:$0xff]
    %v545 = vmul.f32 %v379, %v541
    %v546 = vmul.f32 %v385, %v542
    %v547 = vmul.f32 %v381, %v543
    %v548 = vmul.f32 %v387, %v544
    %v549 = vadd.f32 %v545, %v547
    %v550 = vadd.f32 %v546, %v548
    %v551 = vmul.f32 %v456, %v541
    %v552 = vmul.f32 %v462, %v542
    %v553 = vmul.f32 %v458, %v543
    %v554 = vmul.f32 %v464, %v544
    %v555 = vadd.f32 %v551, %v553
    %v556 = vadd.f32 %v552, %v554
    %v557 = vld [vmem:[#allocation11] sm:$0xff]
    %v558 = vld [vmem:[#allocation11 + $0x8] sm:$0xff]
    %vm559 = vcmask 130048
    %v561 = vsel %vm559, %v549, 0
    %v564 = vsel %vm559, %v550, 0
    %v567 = vsel %vm559, %v555, 0
    %v570 = vsel %vm559, %v556, 0
    %572 = vmatprep.subr.mxu0 0.0
    %573 = vmatpush1.xpose.msra.mxu0 %v567
    %574 = vmatprep.subr.mxu0 0.0
    %575 = vmatpush1.xpose.msra.mxu0 %v570
    %576 = vmatprep.subr.mxu0 0.0
    %577 = vmatpush1.xpose.msra.mxu0 0.0
    %578 = vmatprep.subr.mxu0 0.0
    %579 = vmatpush1.xpose.msra.mxu0 0.0
    %580 = vmatprep.subr.mxu0 0.0
    %581 = vmatpush1.xpose.msra.mxu0 0.0
    %582 = vmatprep.subr.mxu0 0.0
    %583 = vmatpush1.xpose.msra.mxu0 0.0
    %584 = vmatprep.subr.mxu0 0.0
    %585 = vmatpush1.xpose.msra.mxu0 0.0
    %586 = vmatprep.subr.mxu0 0.0
    %587 = vmatpush1.xpose.msra.mxu0 0.0
    %588 = vmatprep.subr.mxu0 0.0
    %589 = vmatpush1.xpose.msra.mxu0 0.0
    %590 = vmatprep.subr.mxu0 0.0
    %591 = vmatpush1.xpose.msra.mxu0 0.0
    %592 = vmatprep.subr.mxu0 0.0
    %593 = vmatpush1.xpose.msra.mxu0 0.0
    %594 = vmatprep.subr.mxu0 0.0
    %595 = vmatpush1.xpose.msra.mxu0 0.0
    %596 = vmatprep.subr.mxu0 0.0
    %597 = vmatpush1.xpose.msra.mxu0 0.0
    %598 = vmatprep.subr.mxu0 0.0
    %599 = vmatpush1.xpose.msra.mxu0 0.0
    %600 = vmatprep.subr.mxu0 0.0
    %601 = vmatpush1.xpose.msra.mxu0 0.0
    %602 = vmatprep.subr.mxu0 0.0
    %603 = vmatpush1.xpose.msra.mxu0 0.0
    %604 = vmatprep.subr.mxu0 0.0
    %605 = vmatpush1.xpose.msra.mxu0 0.0
    %606 = vmatprep.subr.mxu0 0.0
    %607 = vmatpush1.xpose.msra.mxu0 0.0
    %608 = vmatprep.subr.mxu0 0.0
    %609 = vmatpush1.xpose.msra.mxu0 0.0
    %610 = vmatprep.subr.mxu0 0.0
    %611 = vmatpush1.xpose.msra.mxu0 0.0
    %612 = vmatprep.subr.mxu0 0.0
    %613 = vmatpush1.xpose.msra.mxu0 0.0
    %614 = vmatprep.subr.mxu0 0.0
    %615 = vmatpush1.xpose.msra.mxu0 0.0
    %616 = vmatprep.subr.mxu0 0.0
    %617 = vmatpush1.xpose.msra.mxu0 0.0
    %618 = vmatprep.subr.mxu0 0.0
    %619 = vmatpush1.xpose.msra.mxu0 0.0
    %620 = vmatprep.subr.mxu0 0.0
    %621 = vmatpush1.xpose.msra.mxu0 0.0
    %622 = vmatprep.subr.mxu0 0.0
    %623 = vmatpush1.xpose.msra.mxu0 0.0
    %624 = vmatprep.subr.mxu0 0.0
    %625 = vmatpush1.xpose.msra.mxu0 0.0
    %626 = vmatprep.subr.mxu0 0.0
    %627 = vmatpush1.xpose.msra.mxu0 0.0
    %628 = vmatprep.subr.mxu0 0.0
    %629 = vmatpush1.xpose.msra.mxu0 0.0
    %630 = vmatprep.subr.mxu0 0.0
    %631 = vmatpush1.xpose.msra.mxu0 0.0
    %632 = vmatprep.subr.mxu0 0.0
    %633 = vmatpush1.xpose.msra.mxu0 0.0
    %634 = vmatprep.subr.mxu0 0.0
    %635 = vmatpush1.xpose.msra.mxu0 0.0
    %636 = vmatprep.mubr.f32.mxu0 0.0
    %637 = vmatmul.mubr.f32.gmra.mrb[0].mxu0 %v561
    %v638 = vpop.f32.mrb[0].mxu0
    %v639 = vadd.f32 %v557, %v638
    %v640 = vpop.f32.mrb[0].mxu0
    %641 = vmatprep.mubr.f32.mxu0 0.0
    %642 = vmatmul.mubr.f32.gmra.mrb[0].mxu0 %v564
    %v643 = vpop.f32.mrb[0].mxu0
    %v644 = vadd.f32 %v558, %v643
    %v645 = vpop.f32.mrb[0].mxu0
    %646 = vdwg.mxu0
    %v647 = vsel %vm559, %v639, -inf
    %648 = vmax.xlane.f32.xlu0 %v647
    %v649 = vpop.xlane.xlu0 %648
    %v650 = vsel %vm559, %v644, -inf
    %651 = vmax.xlane.f32.xlu0 %v650
    %v652 = vpop.xlane.xlu0 %651
    %v653 = vsub.f32 %v639, %v649
    %v654 = vsub.f32 %v644, %v652
    %v655 = vmul.f32 %v653, 1.442695
    %v656 = vpow.pop %v655
    %v657 = vmul.f32 %v654, 1.442695
    %v658 = vpow.pop %v657
    %v659 = vsel %vm559, %v656, 0.0
    %660 = vadd.xlane.f32.xlu0 %v659
    %v661 = vpop.xlane.xlu0 %660
    %v662 = vsel %vm559, %v658, 0.0
    %663 = vadd.xlane.f32.xlu0 %v662
    %v664 = vpop.xlane.xlu0 %663
    %v665 = vrcp.pop %v661
    %v666 = vmul.f32 %v656, %v665
    %v667 = vrcp.pop %v664
    %v668 = vmul.f32 %v658, %v667
    %v670 = vsel %vm559, %v666, 0
    %v673 = vsel %vm559, %v668, 0
    %675 = vmatprep.subr.mxu0 0.0
    %676 = vmatpush1.msra.mxu0 %v533
    %677 = vmatprep.subr.mxu0 0.0
    %678 = vmatpush1.msra.mxu0 %v538
    %679 = vmatprep.subr.mxu0 0.0
    %680 = vmatpush1.msra.mxu0 0.0
    %681 = vmatprep.subr.mxu0 0.0
    %682 = vmatpush1.msra.mxu0 0.0
    %683 = vmatprep.subr.mxu0 0.0
    %684 = vmatpush1.msra.mxu0 0.0
    %685 = vmatprep.subr.mxu0 0.0
    %686 = vmatpush1.msra.mxu0 0.0
    %687 = vmatprep.subr.mxu0 0.0
    %688 = vmatpush1.msra.mxu0 0.0
    %689 = vmatprep.subr.mxu0 0.0
    %690 = vmatpush1.msra.mxu0 0.0
    %691 = vmatprep.subr.mxu0 0.0
    %692 = vmatpush1.msra.mxu0 0.0
    %693 = vmatprep.subr.mxu0 0.0
    %694 = vmatpush1.msra.mxu0 0.0
    %695 = vmatprep.subr.mxu0 0.0
    %696 = vmatpush1.msra.mxu0 0.0
    %697 = vmatprep.subr.mxu0 0.0
    %698 = vmatpush1.msra.mxu0 0.0
    %699 = vmatprep.subr.mxu0 0.0
    %700 = vmatpush1.msra.mxu0 0.0
    %701 = vmatprep.subr.mxu0 0.0
    %702 = vmatpush1.msra.mxu0 0.0
    %703 = vmatprep.subr.mxu0 0.0
    %704 = vmatpush1.msra.mxu0 0.0
    %705 = vmatprep.subr.mxu0 0.0
    %706 = vmatpush1.msra.mxu0 0.0
    %707 = vmatprep.subr.mxu0 0.0
    %708 = vmatpush1.msra.mxu0 0.0
    %709 = vmatprep.subr.mxu0 0.0
    %710 = vmatpush1.msra.mxu0 0.0
    %711 = vmatprep.subr.mxu0 0.0
    %712 = vmatpush1.msra.mxu0 0.0
    %713 = vmatprep.subr.mxu0 0.0
    %714 = vmatpush1.msra.mxu0 0.0
    %715 = vmatprep.subr.mxu0 0.0
    %716 = vmatpush1.msra.mxu0 0.0
    %717 = vmatprep.subr.mxu0 0.0
    %718 = vmatpush1.msra.mxu0 0.0
    %719 = vmatprep.subr.mxu0 0.0
    %720 = vmatpush1.msra.mxu0 0.0
    %721 = vmatprep.subr.mxu0 0.0
    %722 = vmatpush1.msra.mxu0 0.0
    %723 = vmatprep.subr.mxu0 0.0
    %724 = vmatpush1.msra.mxu0 0.0
    %725 = vmatprep.subr.mxu0 0.0
    %726 = vmatpush1.msra.mxu0 0.0
    %727 = vmatprep.subr.mxu0 0.0
    %728 = vmatpush1.msra.mxu0 0.0
    %729 = vmatprep.subr.mxu0 0.0
    %730 = vmatpush1.msra.mxu0 0.0
    %731 = vmatprep.subr.mxu0 0.0
    %732 = vmatpush1.msra.mxu0 0.0
    %733 = vmatprep.subr.mxu0 0.0
    %734 = vmatpush1.msra.mxu0 0.0
    %735 = vmatprep.subr.mxu0 0.0
    %736 = vmatpush1.msra.mxu0 0.0
    %737 = vmatprep.subr.mxu0 0.0
    %738 = vmatpush1.msra.mxu0 0.0
    %739 = vmatprep.mubr.f32.mxu0 0.0
    %740 = vmatmul.mubr.f32.gmra.mrb[0].mxu0 %v670
    %v741 = vpop.f32.mrb[0].mxu0
    %v742 = vadd.f32 0.0, %v741
    %v743 = vpop.f32.mrb[0].mxu0
    %744 = vmatprep.mubr.f32.mxu0 0.0
    %745 = vmatmul.mubr.f32.gmra.mrb[0].mxu0 %v673
    %v746 = vpop.f32.mrb[0].mxu0
    %v747 = vadd.f32 0.0, %v746
    %v748 = vpop.f32.mrb[0].mxu0
    %749 = vdwg.mxu0
    %750 = vrot.lane.b32.xlu0 %v549, 112
    %v751 = vpop.permute.xlu0 %750
    %752 = vrot.lane.b32.xlu0 %v550, 112
    %v753 = vpop.permute.xlu0 %752
    %754 = vrot.lane.b32.xlu0 %v555, 112
    %v755 = vpop.permute.xlu0 %754
    %756 = vrot.lane.b32.xlu0 %v556, 112
    %v757 = vpop.permute.xlu0 %756
    %v758 = vsel %vm559, %v751, 0
    %v760 = vsel %vm559, %v753, 0
    %v762 = vsel %vm559, %v755, 0
    %v764 = vsel %vm559, %v757, 0
    %766 = vmatprep.subr.mxu0 0.0
    %767 = vmatpush1.xpose.msra.mxu0 %v762
    %768 = vmatprep.subr.mxu0 0.0
    %769 = vmatpush1.xpose.msra.mxu0 %v764
    %770 = vmatprep.subr.mxu0 0.0
    %771 = vmatpush1.xpose.msra.mxu0 0.0
    %772 = vmatprep.subr.mxu0 0.0
    %773 = vmatpush1.xpose.msra.mxu0 0.0
    %774 = vmatprep.subr.mxu0 0.0
    %775 = vmatpush1.xpose.msra.mxu0 0.0
    %776 = vmatprep.subr.mxu0 0.0
    %777 = vmatpush1.xpose.msra.mxu0 0.0
    %778 = vmatprep.subr.mxu0 0.0
    %779 = vmatpush1.xpose.msra.mxu0 0.0
    %780 = vmatprep.subr.mxu0 0.0
    %781 = vmatpush1.xpose.msra.mxu0 0.0
    %782 = vmatprep.subr.mxu0 0.0
    %783 = vmatpush1.xpose.msra.mxu0 0.0
    %784 = vmatprep.subr.mxu0 0.0
    %785 = vmatpush1.xpose.msra.mxu0 0.0
    %786 = vmatprep.subr.mxu0 0.0
    %787 = vmatpush1.xpose.msra.mxu0 0.0
    %788 = vmatprep.subr.mxu0 0.0
    %789 = vmatpush1.xpose.msra.mxu0 0.0
    %790 = vmatprep.subr.mxu0 0.0
    %791 = vmatpush1.xpose.msra.mxu0 0.0
    %792 = vmatprep.subr.mxu0 0.0
    %793 = vmatpush1.xpose.msra.mxu0 0.0
    %794 = vmatprep.subr.mxu0 0.0
    %795 = vmatpush1.xpose.msra.mxu0 0.0
    %796 = vmatprep.subr.mxu0 0.0
    %797 = vmatpush1.xpose.msra.mxu0 0.0
    %798 = vmatprep.subr.mxu0 0.0
    %799 = vmatpush1.xpose.msra.mxu0 0.0
    %800 = vmatprep.subr.mxu0 0.0
    %801 = vmatpush1.xpose.msra.mxu0 0.0
    %802 = vmatprep.subr.mxu0 0.0
    %803 = vmatpush1.xpose.msra.mxu0 0.0
    %804 = vmatprep.subr.mxu0 0.0
    %805 = vmatpush1.xpose.msra.mxu0 0.0
    %806 = vmatprep.subr.mxu0 0.0
    %807 = vmatpush1.xpose.msra.mxu0 0.0
    %808 = vmatprep.subr.mxu0 0.0
    %809 = vmatpush1.xpose.msra.mxu0 0.0
    %810 = vmatprep.subr.mxu0 0.0
    %811 = vmatpush1.xpose.msra.mxu0 0.0
    %812 = vmatprep.subr.mxu0 0.0
    %813 = vmatpush1.xpose.msra.mxu0 0.0
    %814 = vmatprep.subr.mxu0 0.0
    %815 = vmatpush1.xpose.msra.mxu0 0.0
    %816 = vmatprep.subr.mxu0 0.0
    %817 = vmatpush1.xpose.msra.mxu0 0.0
    %818 = vmatprep.subr.mxu0 0.0
    %819 = vmatpush1.xpose.msra.mxu0 0.0
    %820 = vmatprep.subr.mxu0 0.0
    %821 = vmatpush1.xpose.msra.mxu0 0.0
    %822 = vmatprep.subr.mxu0 0.0
    %823 = vmatpush1.xpose.msra.mxu0 0.0
    %824 = vmatprep.subr.mxu0 0.0
    %825 = vmatpush1.xpose.msra.mxu0 0.0
    %826 = vmatprep.subr.mxu0 0.0
    %827 = vmatpush1.xpose.msra.mxu0 0.0
    %828 = vmatprep.subr.mxu0 0.0
    %829 = vmatpush1.xpose.msra.mxu0 0.0
    %830 = vmatprep.mubr.f32.mxu0 0.0
    %831 = vmatmul.mubr.f32.gmra.mrb[0].mxu0 %v758
    %v832 = vpop.f32.mrb[0].mxu0
    %v833 = vadd.f32 %v557, %v832
    %v834 = vpop.f32.mrb[0].mxu0
    %835 = vmatprep.mubr.f32.mxu0 0.0
    %836 = vmatmul.mubr.f32.gmra.mrb[0].mxu0 %v760
    %v837 = vpop.f32.mrb[0].mxu0
    %v838 = vadd.f32 %v558, %v837
    %v839 = vpop.f32.mrb[0].mxu0
    %840 = vdwg.mxu0
    %v841 = vsel %vm559, %v833, -inf
    %842 = vmax.xlane.f32.xlu0 %v841
    %v843 = vpop.xlane.xlu0 %842
    %v844 = vsel %vm559, %v838, -inf
    %845 = vmax.xlane.f32.xlu0 %v844
    %v846 = vpop.xlane.xlu0 %845
    %v847 = vsub.f32 %v833, %v843
    %v848 = vsub.f32 %v838, %v846
    %v849 = vmul.f32 %v847, 1.442695
    %v850 = vpow.pop %v849
    %v851 = vmul.f32 %v848, 1.442695
    %v852 = vpow.pop %v851
    %v853 = vsel %vm559, %v850, 0.0
    %854 = vadd.xlane.f32.xlu0 %v853
    %v855 = vpop.xlane.xlu0 %854
    %v856 = vsel %vm559, %v852, 0.0
    %857 = vadd.xlane.f32.xlu0 %v856
    %v858 = vpop.xlane.xlu0 %857
    %v859 = vrcp.pop %v855
    %v860 = vmul.f32 %v850, %v859
    %v861 = vrcp.pop %v858
    %v862 = vmul.f32 %v852, %v861
    %865 = vrot.lane.b32.xlu0 %v533, 112
    %v866 = vpop.permute.xlu0 %865
    %867 = vrot.lane.b32.xlu0 %v538, 112
    %v868 = vpop.permute.xlu0 %867
    %v872 = vsel %vm559, %v860, 0
    %v875 = vsel %vm559, %v862, 0
    %877 = vmatprep.subr.mxu0 0.0
    %878 = vmatpush1.msra.mxu0 %v866
    %879 = vmatprep.subr.mxu0 0.0
    %880 = vmatpush1.msra.mxu0 %v868
    %881 = vmatprep.subr.mxu0 0.0
    %882 = vmatpush1.msra.mxu0 0.0
    %883 = vmatprep.subr.mxu0 0.0
    %884 = vmatpush1.msra.mxu0 0.0
    %885 = vmatprep.subr.mxu0 0.0
    %886 = vmatpush1.msra.mxu0 0.0
    %887 = vmatprep.subr.mxu0 0.0
    %888 = vmatpush1.msra.mxu0 0.0
    %889 = vmatprep.subr.mxu0 0.0
    %890 = vmatpush1.msra.mxu0 0.0
    %891 = vmatprep.subr.mxu0 0.0
    %892 = vmatpush1.msra.mxu0 0.0
    %893 = vmatprep.subr.mxu0 0.0
    %894 = vmatpush1.msra.mxu0 0.0
    %895 = vmatprep.subr.mxu0 0.0
    %896 = vmatpush1.msra.mxu0 0.0
    %897 = vmatprep.subr.mxu0 0.0
    %898 = vmatpush1.msra.mxu0 0.0
    %899 = vmatprep.subr.mxu0 0.0
    %900 = vmatpush1.msra.mxu0 0.0
    %901 = vmatprep.subr.mxu0 0.0
    %902 = vmatpush1.msra.mxu0 0.0
    %903 = vmatprep.subr.mxu0 0.0
    %904 = vmatpush1.msra.mxu0 0.0
    %905 = vmatprep.subr.mxu0 0.0
    %906 = vmatpush1.msra.mxu0 0.0
    %907 = vmatprep.subr.mxu0 0.0
    %908 = vmatpush1.msra.mxu0 0.0
    %909 = vmatprep.subr.mxu0 0.0
    %910 = vmatpush1.msra.mxu0 0.0
    %911 = vmatprep.subr.mxu0 0.0
    %912 = vmatpush1.msra.mxu0 0.0
    %913 = vmatprep.subr.mxu0 0.0
    %914 = vmatpush1.msra.mxu0 0.0
    %915 = vmatprep.subr.mxu0 0.0
    %916 = vmatpush1.msra.mxu0 0.0
    %917 = vmatprep.subr.mxu0 0.0
    %918 = vmatpush1.msra.mxu0 0.0
    %919 = vmatprep.subr.mxu0 0.0
    %920 = vmatpush1.msra.mxu0 0.0
    %921 = vmatprep.subr.mxu0 0.0
    %922 = vmatpush1.msra.mxu0 0.0
    %923 = vmatprep.subr.mxu0 0.0
    %924 = vmatpush1.msra.mxu0 0.0
    %925 = vmatprep.subr.mxu0 0.0
    %926 = vmatpush1.msra.mxu0 0.0
    %927 = vmatprep.subr.mxu0 0.0
    %928 = vmatpush1.msra.mxu0 0.0
    %929 = vmatprep.subr.mxu0 0.0
    %930 = vmatpush1.msra.mxu0 0.0
    %931 = vmatprep.subr.mxu0 0.0
    %932 = vmatpush1.msra.mxu0 0.0
    %933 = vmatprep.subr.mxu0 0.0
    %934 = vmatpush1.msra.mxu0 0.0
    %935 = vmatprep.subr.mxu0 0.0
    %936 = vmatpush1.msra.mxu0 0.0
    %937 = vmatprep.subr.mxu0 0.0
    %938 = vmatpush1.msra.mxu0 0.0
    %939 = vmatprep.subr.mxu0 0.0
    %940 = vmatpush1.msra.mxu0 0.0
    %941 = vmatprep.mubr.f32.mxu0 0.0
    %942 = vmatmul.mubr.f32.gmra.mrb[0].mxu0 %v872
    %v943 = vpop.f32.mrb[0].mxu0
    %v944 = vadd.f32 0.0, %v943
    %v945 = vpop.f32.mrb[0].mxu0
    %946 = vmatprep.mubr.f32.mxu0 0.0
    %947 = vmatmul.mubr.f32.gmra.mrb[0].mxu0 %v875
    %v948 = vpop.f32.mrb[0].mxu0
    %v949 = vadd.f32 0.0, %v948
    %v950 = vpop.f32.mrb[0].mxu0
    %951 = vdwg.mxu0
    %952 = vrot.lane.b32.xlu0 %v549, 96
    %v953 = vpop.permute.xlu0 %952
    %954 = vrot.lane.b32.xlu0 %v550, 96
    %v955 = vpop.permute.xlu0 %954
    %956 = vrot.lane.b32.xlu0 %v555, 96
    %v957 = vpop.permute.xlu0 %956
    %958 = vrot.lane.b32.xlu0 %v556, 96
    %v959 = vpop.permute.xlu0 %958
    %v960 = vsel %vm559, %v953, 0
    %v962 = vsel %vm559, %v955, 0
    %v964 = vsel %vm559, %v957, 0
    %v966 = vsel %vm559, %v959, 0
    %968 = vmatprep.subr.mxu0 0.0
    %969 = vmatpush1.xpose.msra.mxu0 %v964
    %970 = vmatprep.subr.mxu0 0.0
    %971 = vmatpush1.xpose.msra.mxu0 %v966
    %972 = vmatprep.subr.mxu0 0.0
    %973 = vmatpush1.xpose.msra.mxu0 0.0
    %974 = vmatprep.subr.mxu0 0.0
    %975 = vmatpush1.xpose.msra.mxu0 0.0
    %976 = vmatprep.subr.mxu0 0.0
    %977 = vmatpush1.xpose.msra.mxu0 0.0
    %978 = vmatprep.subr.mxu0 0.0
    %979 = vmatpush1.xpose.msra.mxu0 0.0
    %980 = vmatprep.subr.mxu0 0.0
    %981 = vmatpush1.xpose.msra.mxu0 0.0
    %982 = vmatprep.subr.mxu0 0.0
    %983 = vmatpush1.xpose.msra.mxu0 0.0
    %984 = vmatprep.subr.mxu0 0.0
    %985 = vmatpush1.xpose.msra.mxu0 0.0
    %986 = vmatprep.subr.mxu0 0.0
    %987 = vmatpush1.xpose.msra.mxu0 0.0
    %988 = vmatprep.subr.mxu0 0.0
    %989 = vmatpush1.xpose.msra.mxu0 0.0
    %990 = vmatprep.subr.mxu0 0.0
    %991 = vmatpush1.xpose.msra.mxu0 0.0
    %992 = vmatprep.subr.mxu0 0.0
    %993 = vmatpush1.xpose.msra.mxu0 0.0
    %994 = vmatprep.subr.mxu0 0.0
    %995 = vmatpush1.xpose.msra.mxu0 0.0
    %996 = vmatprep.subr.mxu0 0.0
    %997 = vmatpush1.xpose.msra.mxu0 0.0
    %998 = vmatprep.subr.mxu0 0.0
    %999 = vmatpush1.xpose.msra.mxu0 0.0
    %1000 = vmatprep.subr.mxu0 0.0
    %1001 = vmatpush1.xpose.msra.mxu0 0.0
    %1002 = vmatprep.subr.mxu0 0.0
    %1003 = vmatpush1.xpose.msra.mxu0 0.0
    %1004 = vmatprep.subr.mxu0 0.0
    %1005 = vmatpush1.xpose.msra.mxu0 0.0
    %1006 = vmatprep.subr.mxu0 0.0
    %1007 = vmatpush1.xpose.msra.mxu0 0.0
    %1008 = vmatprep.subr.mxu0 0.0
    %1009 = vmatpush1.xpose.msra.mxu0 0.0
    %1010 = vmatprep.subr.mxu0 0.0
    %1011 = vmatpush1.xpose.msra.mxu0 0.0
    %1012 = vmatprep.subr.mxu0 0.0
    %1013 = vmatpush1.xpose.msra.mxu0 0.0
    %1014 = vmatprep.subr.mxu0 0.0
    %1015 = vmatpush1.xpose.msra.mxu0 0.0
    %1016 = vmatprep.subr.mxu0 0.0
    %1017 = vmatpush1.xpose.msra.mxu0 0.0
    %1018 = vmatprep.subr.mxu0 0.0
    %1019 = vmatpush1.xpose.msra.mxu0 0.0
    %1020 = vmatprep.subr.mxu0 0.0
    %1021 = vmatpush1.xpose.msra.mxu0 0.0
    %1022 = vmatprep.subr.mxu0 0.0
    %1023 = vmatpush1.xpose.msra.mxu0 0.0
    %1024 = vmatprep.subr.mxu0 0.0
    %1025 = vmatpush1.xpose.msra.mxu0 0.0
    %1026 = vmatprep.subr.mxu0 0.0
    %1027 = vmatpush1.xpose.msra.mxu0 0.0
    %1028 = vmatprep.subr.mxu0 0.0
    %1029 = vmatpush1.xpose.msra.mxu0 0.0
    %1030 = vmatprep.subr.mxu0 0.0
    %1031 = vmatpush1.xpose.msra.mxu0 0.0
    %1032 = vmatprep.mubr.f32.mxu0 0.0
    %1033 = vmatmul.mubr.f32.gmra.mrb[0].mxu0 %v960
    %v1034 = vpop.f32.mrb[0].mxu0
    %v1035 = vadd.f32 %v557, %v1034
    %v1036 = vpop.f32.mrb[0].mxu0
    %1037 = vmatprep.mubr.f32.mxu0 0.0
    %1038 = vmatmul.mubr.f32.gmra.mrb[0].mxu0 %v962
    %v1039 = vpop.f32.mrb[0].mxu0
    %v1040 = vadd.f32 %v558, %v1039
    %v1041 = vpop.f32.mrb[0].mxu0
    %1042 = vdwg.mxu0
    %v1043 = vsel %vm559, %v1035, -inf
    %1044 = vmax.xlane.f32.xlu0 %v1043
    %v1045 = vpop.xlane.xlu0 %1044
    %v1046 = vsel %vm559, %v1040, -inf
    %1047 = vmax.xlane.f32.xlu0 %v1046
    %v1048 = vpop.xlane.xlu0 %1047
    %v1049 = vsub.f32 %v1035, %v1045
    %v1050 = vsub.f32 %v1040, %v1048
    %v1051 = vmul.f32 %v1049, 1.442695
    %v1052 = vpow.pop %v1051
    %v1053 = vmul.f32 %v1050, 1.442695
    %v1054 = vpow.pop %v1053
    %v1055 = vsel %vm559, %v1052, 0.0
    %1056 = vadd.xlane.f32.xlu0 %v1055
    %v1057 = vpop.xlane.xlu0 %1056
    %v1058 = vsel %vm559, %v1054, 0.0
    %1059 = vadd.xlane.f32.xlu0 %v1058
    %v1060 = vpop.xlane.xlu0 %1059
    %v1061 = vrcp.pop %v1057
    %v1062 = vmul.f32 %v1052, %v1061
    %v1063 = vrcp.pop %v1060
    %v1064 = vmul.f32 %v1054, %v1063
    %1065 = vrot.lane.b32.xlu0 %v533, 96
    %v1066 = vpop.permute.xlu0 %1065
    %1067 = vrot.lane.b32.xlu0 %v538, 96
    %v1068 = vpop.permute.xlu0 %1067
    %v1072 = vsel %vm559, %v1062, 0
    %v1075 = vsel %vm559, %v1064, 0
    %1077 = vmatprep.subr.mxu0 0.0
    %1078 = vmatpush1.msra.mxu0 %v1066
    %1079 = vmatprep.subr.mxu0 0.0
    %1080 = vmatpush1.msra.mxu0 %v1068
    %1081 = vmatprep.subr.mxu0 0.0
    %1082 = vmatpush1.msra.mxu0 0.0
    %1083 = vmatprep.subr.mxu0 0.0
    %1084 = vmatpush1.msra.mxu0 0.0
    %1085 = vmatprep.subr.mxu0 0.0
    %1086 = vmatpush1.msra.mxu0 0.0
    %1087 = vmatprep.subr.mxu0 0.0
    %1088 = vmatpush1.msra.mxu0 0.0
    %1089 = vmatprep.subr.mxu0 0.0
    %1090 = vmatpush1.msra.mxu0 0.0
    %1091 = vmatprep.subr.mxu0 0.0
    %1092 = vmatpush1.msra.mxu0 0.0
    %1093 = vmatprep.subr.mxu0 0.0
    %1094 = vmatpush1.msra.mxu0 0.0
    %1095 = vmatprep.subr.mxu0 0.0
    %1096 = vmatpush1.msra.mxu0 0.0
    %1097 = vmatprep.subr.mxu0 0.0
    %1098 = vmatpush1.msra.mxu0 0.0
    %1099 = vmatprep.subr.mxu0 0.0
    %1100 = vmatpush1.msra.mxu0 0.0
    %1101 = vmatprep.subr.mxu0 0.0
    %1102 = vmatpush1.msra.mxu0 0.0
    %1103 = vmatprep.subr.mxu0 0.0
    %1104 = vmatpush1.msra.mxu0 0.0
    %1105 = vmatprep.subr.mxu0 0.0
    %1106 = vmatpush1.msra.mxu0 0.0
    %1107 = vmatprep.subr.mxu0 0.0
    %1108 = vmatpush1.msra.mxu0 0.0
    %1109 = vmatprep.subr.mxu0 0.0
    %1110 = vmatpush1.msra.mxu0 0.0
    %1111 = vmatprep.subr.mxu0 0.0
    %1112 = vmatpush1.msra.mxu0 0.0
    %1113 = vmatprep.subr.mxu0 0.0
    %1114 = vmatpush1.msra.mxu0 0.0
    %1115 = vmatprep.subr.mxu0 0.0
    %1116 = vmatpush1.msra.mxu0 0.0
    %1117 = vmatprep.subr.mxu0 0.0
    %1118 = vmatpush1.msra.mxu0 0.0
    %1119 = vmatprep.subr.mxu0 0.0
    %1120 = vmatpush1.msra.mxu0 0.0
    %1121 = vmatprep.subr.mxu0 0.0
    %1122 = vmatpush1.msra.mxu0 0.0
    %1123 = vmatprep.subr.mxu0 0.0
    %1124 = vmatpush1.msra.mxu0 0.0
    %1125 = vmatprep.subr.mxu0 0.0
    %1126 = vmatpush1.msra.mxu0 0.0
    %1127 = vmatprep.subr.mxu0 0.0
    %1128 = vmatpush1.msra.mxu0 0.0
    %1129 = vmatprep.subr.mxu0 0.0
    %1130 = vmatpush1.msra.mxu0 0.0
    %1131 = vmatprep.subr.mxu0 0.0
    %1132 = vmatpush1.msra.mxu0 0.0
    %1133 = vmatprep.subr.mxu0 0.0
    %1134 = vmatpush1.msra.mxu0 0.0
    %1135 = vmatprep.subr.mxu0 0.0
    %1136 = vmatpush1.msra.mxu0 0.0
    %1137 = vmatprep.subr.mxu0 0.0
    %1138 = vmatpush1.msra.mxu0 0.0
    %1139 = vmatprep.subr.mxu0 0.0
    %1140 = vmatpush1.msra.mxu0 0.0
    %1141 = vmatprep.mubr.f32.mxu0 0.0
    %1142 = vmatmul.mubr.f32.gmra.mrb[0].mxu0 %v1072
    %v1143 = vpop.f32.mrb[0].mxu0
    %v1144 = vadd.f32 0.0, %v1143
    %v1145 = vpop.f32.mrb[0].mxu0
    %1146 = vmatprep.mubr.f32.mxu0 0.0
    %1147 = vmatmul.mubr.f32.gmra.mrb[0].mxu0 %v1075
    %v1148 = vpop.f32.mrb[0].mxu0
    %v1149 = vadd.f32 0.0, %v1148
    %v1150 = vpop.f32.mrb[0].mxu0
    %1151 = vdwg.mxu0
    %1152 = vrot.lane.b32.xlu0 %v549, 80
    %v1153 = vpop.permute.xlu0 %1152
    %1154 = vrot.lane.b32.xlu0 %v550, 80
    %v1155 = vpop.permute.xlu0 %1154
    %1156 = vrot.lane.b32.xlu0 %v555, 80
    %v1157 = vpop.permute.xlu0 %1156
    %1158 = vrot.lane.b32.xlu0 %v556, 80
    %v1159 = vpop.permute.xlu0 %1158
    %v1160 = vsel %vm559, %v1153, 0
    %v1162 = vsel %vm559, %v1155, 0
    %v1164 = vsel %vm559, %v1157, 0
    %v1166 = vsel %vm559, %v1159, 0
    %1168 = vmatprep.subr.mxu0 0.0
    %1169 = vmatpush1.xpose.msra.mxu0 %v1164
    %1170 = vmatprep.subr.mxu0 0.0
    %1171 = vmatpush1.xpose.msra.mxu0 %v1166
    %1172 = vmatprep.subr.mxu0 0.0
    %1173 = vmatpush1.xpose.msra.mxu0 0.0
    %1174 = vmatprep.subr.mxu0 0.0
    %1175 = vmatpush1.xpose.msra.mxu0 0.0
    %1176 = vmatprep.subr.mxu0 0.0
    %1177 = vmatpush1.xpose.msra.mxu0 0.0
    %1178 = vmatprep.subr.mxu0 0.0
    %1179 = vmatpush1.xpose.msra.mxu0 0.0
    %1180 = vmatprep.subr.mxu0 0.0
    %1181 = vmatpush1.xpose.msra.mxu0 0.0
    %1182 = vmatprep.subr.mxu0 0.0
    %1183 = vmatpush1.xpose.msra.mxu0 0.0
    %1184 = vmatprep.subr.mxu0 0.0
    %1185 = vmatpush1.xpose.msra.mxu0 0.0
    %1186 = vmatprep.subr.mxu0 0.0
    %1187 = vmatpush1.xpose.msra.mxu0 0.0
    %1188 = vmatprep.subr.mxu0 0.0
    %1189 = vmatpush1.xpose.msra.mxu0 0.0
    %1190 = vmatprep.subr.mxu0 0.0
    %1191 = vmatpush1.xpose.msra.mxu0 0.0
    %1192 = vmatprep.subr.mxu0 0.0
    %1193 = vmatpush1.xpose.msra.mxu0 0.0
    %1194 = vmatprep.subr.mxu0 0.0
    %1195 = vmatpush1.xpose.msra.mxu0 0.0
    %1196 = vmatprep.subr.mxu0 0.0
    %1197 = vmatpush1.xpose.msra.mxu0 0.0
    %1198 = vmatprep.subr.mxu0 0.0
    %1199 = vmatpush1.xpose.msra.mxu0 0.0
    %1200 = vmatprep.subr.mxu0 0.0
    %1201 = vmatpush1.xpose.msra.mxu0 0.0
    %1202 = vmatprep.subr.mxu0 0.0
    %1203 = vmatpush1.xpose.msra.mxu0 0.0
    %1204 = vmatprep.subr.mxu0 0.0
    %1205 = vmatpush1.xpose.msra.mxu0 0.0
    %1206 = vmatprep.subr.mxu0 0.0
    %1207 = vmatpush1.xpose.msra.mxu0 0.0
    %1208 = vmatprep.subr.mxu0 0.0
    %1209 = vmatpush1.xpose.msra.mxu0 0.0
    %1210 = vmatprep.subr.mxu0 0.0
    %1211 = vmatpush1.xpose.msra.mxu0 0.0
    %1212 = vmatprep.subr.mxu0 0.0
    %1213 = vmatpush1.xpose.msra.mxu0 0.0
    %1214 = vmatprep.subr.mxu0 0.0
    %1215 = vmatpush1.xpose.msra.mxu0 0.0
    %1216 = vmatprep.subr.mxu0 0.0
    %1217 = vmatpush1.xpose.msra.mxu0 0.0
    %1218 = vmatprep.subr.mxu0 0.0
    %1219 = vmatpush1.xpose.msra.mxu0 0.0
    %1220 = vmatprep.subr.mxu0 0.0
    %1221 = vmatpush1.xpose.msra.mxu0 0.0
    %1222 = vmatprep.subr.mxu0 0.0
    %1223 = vmatpush1.xpose.msra.mxu0 0.0
    %1224 = vmatprep.subr.mxu0 0.0
    %1225 = vmatpush1.xpose.msra.mxu0 0.0
    %1226 = vmatprep.subr.mxu0 0.0
    %1227 = vmatpush1.xpose.msra.mxu0 0.0
    %1228 = vmatprep.subr.mxu0 0.0
    %1229 = vmatpush1.xpose.msra.mxu0 0.0
    %1230 = vmatprep.subr.mxu0 0.0
    %1231 = vmatpush1.xpose.msra.mxu0 0.0
    %1232 = vmatprep.mubr.f32.mxu0 0.0
    %1233 = vmatmul.mubr.f32.gmra.mrb[0].mxu0 %v1160
    %v1234 = vpop.f32.mrb[0].mxu0
    %v1235 = vadd.f32 %v557, %v1234
    %v1236 = vpop.f32.mrb[0].mxu0
    %1237 = vmatprep.mubr.f32.mxu0 0.0
    %1238 = vmatmul.mubr.f32.gmra.mrb[0].mxu0 %v1162
    %v1239 = vpop.f32.mrb[0].mxu0
    %v1240 = vadd.f32 %v558, %v1239
    %v1241 = vpop.f32.mrb[0].mxu0
    %1242 = vdwg.mxu0
    %v1243 = vsel %vm559, %v1235, -inf
    %1244 = vmax.xlane.f32.xlu0 %v1243
    %v1245 = vpop.xlane.xlu0 %1244
    %v1246 = vsel %vm559, %v1240, -inf
    %1247 = vmax.xlane.f32.xlu0 %v1246
    %v1248 = vpop.xlane.xlu0 %1247
    %v1249 = vsub.f32 %v1235, %v1245
    %v1250 = vsub.f32 %v1240, %v1248
    %v1251 = vmul.f32 %v1249, 1.442695
    %v1252 = vpow.pop %v1251
    %v1253 = vmul.f32 %v1250, 1.442695
    %v1254 = vpow.pop %v1253
    %v1255 = vsel %vm559, %v1252, 0.0
    %1256 = vadd.xlane.f32.xlu0 %v1255
    %v1257 = vpop.xlane.xlu0 %1256
    %v1258 = vsel %vm559, %v1254, 0.0
    %1259 = vadd.xlane.f32.xlu0 %v1258
    %v1260 = vpop.xlane.xlu0 %1259
    %v1261 = vrcp.pop %v1257
    %v1262 = vmul.f32 %v1252, %v1261
    %v1263 = vrcp.pop %v1260
    %v1264 = vmul.f32 %v1254, %v1263
    %1265 = vrot.lane.b32.xlu0 %v533, 80
    %v1266 = vpop.permute.xlu0 %1265
    %1267 = vrot.lane.b32.xlu0 %v538, 80
    %v1268 = vpop.permute.xlu0 %1267
    %v1272 = vsel %vm559, %v1262, 0
    %v1275 = vsel %vm559, %v1264, 0
    %1277 = vmatprep.subr.mxu0 0.0
    %1278 = vmatpush1.msra.mxu0 %v1266
    %1279 = vmatprep.subr.mxu0 0.0
    %1280 = vmatpush1.msra.mxu0 %v1268
    %1281 = vmatprep.subr.mxu0 0.0
    %1282 = vmatpush1.msra.mxu0 0.0
    %1283 = vmatprep.subr.mxu0 0.0
    %1284 = vmatpush1.msra.mxu0 0.0
    %1285 = vmatprep.subr.mxu0 0.0
    %1286 = vmatpush1.msra.mxu0 0.0
    %1287 = vmatprep.subr.mxu0 0.0
    %1288 = vmatpush1.msra.mxu0 0.0
    %1289 = vmatprep.subr.mxu0 0.0
    %1290 = vmatpush1.msra.mxu0 0.0
    %1291 = vmatprep.subr.mxu0 0.0
    %1292 = vmatpush1.msra.mxu0 0.0
    %1293 = vmatprep.subr.mxu0 0.0
    %1294 = vmatpush1.msra.mxu0 0.0
    %1295 = vmatprep.subr.mxu0 0.0
    %1296 = vmatpush1.msra.mxu0 0.0
    %1297 = vmatprep.subr.mxu0 0.0
    %1298 = vmatpush1.msra.mxu0 0.0
    %1299 = vmatprep.subr.mxu0 0.0
    %1300 = vmatpush1.msra.mxu0 0.0
    %1301 = vmatprep.subr.mxu0 0.0
    %1302 = vmatpush1.msra.mxu0 0.0
    %1303 = vmatprep.subr.mxu0 0.0
    %1304 = vmatpush1.msra.mxu0 0.0
    %1305 = vmatprep.subr.mxu0 0.0
    %1306 = vmatpush1.msra.mxu0 0.0
    %1307 = vmatprep.subr.mxu0 0.0
    %1308 = vmatpush1.msra.mxu0 0.0
    %1309 = vmatprep.subr.mxu0 0.0
    %1310 = vmatpush1.msra.mxu0 0.0
    %1311 = vmatprep.subr.mxu0 0.0
    %1312 = vmatpush1.msra.mxu0 0.0
    %1313 = vmatprep.subr.mxu0 0.0
    %1314 = vmatpush1.msra.mxu0 0.0
    %1315 = vmatprep.subr.mxu0 0.0
    %1316 = vmatpush1.msra.mxu0 0.0
    %1317 = vmatprep.subr.mxu0 0.0
    %1318 = vmatpush1.msra.mxu0 0.0
    %1319 = vmatprep.subr.mxu0 0.0
    %1320 = vmatpush1.msra.mxu0 0.0
    %1321 = vmatprep.subr.mxu0 0.0
    %1322 = vmatpush1.msra.mxu0 0.0
    %1323 = vmatprep.subr.mxu0 0.0
    %1324 = vmatpush1.msra.mxu0 0.0
    %1325 = vmatprep.subr.mxu0 0.0
    %1326 = vmatpush1.msra.mxu0 0.0
    %1327 = vmatprep.subr.mxu0 0.0
    %1328 = vmatpush1.msra.mxu0 0.0
    %1329 = vmatprep.subr.mxu0 0.0
    %1330 = vmatpush1.msra.mxu0 0.0
    %1331 = vmatprep.subr.mxu0 0.0
    %1332 = vmatpush1.msra.mxu0 0.0
    %1333 = vmatprep.subr.mxu0 0.0
    %1334 = vmatpush1.msra.mxu0 0.0
    %1335 = vmatprep.subr.mxu0 0.0
    %1336 = vmatpush1.msra.mxu0 0.0
    %1337 = vmatprep.subr.mxu0 0.0
    %1338 = vmatpush1.msra.mxu0 0.0
    %1339 = vmatprep.subr.mxu0 0.0
    %1340 = vmatpush1.msra.mxu0 0.0
    %1341 = vmatprep.mubr.f32.mxu0 0.0
    %1342 = vmatmul.mubr.f32.gmra.mrb[0].mxu0 %v1272
    %v1343 = vpop.f32.mrb[0].mxu0
    %v1344 = vadd.f32 0.0, %v1343
    %v1345 = vpop.f32.mrb[0].mxu0
    %1346 = vmatprep.mubr.f32.mxu0 0.0
    %1347 = vmatmul.mubr.f32.gmra.mrb[0].mxu0 %v1275
    %v1348 = vpop.f32.mrb[0].mxu0
    %v1349 = vadd.f32 0.0, %v1348
    %v1350 = vpop.f32.mrb[0].mxu0
    %1351 = vdwg.mxu0
    %1352 = vrot.lane.b32.xlu0 %v549, 64
    %v1353 = vpop.permute.xlu0 %1352
    %1354 = vrot.lane.b32.xlu0 %v550, 64
    %v1355 = vpop.permute.xlu0 %1354
    %1356 = vrot.lane.b32.xlu0 %v555, 64
    %v1357 = vpop.permute.xlu0 %1356
    %1358 = vrot.lane.b32.xlu0 %v556, 64
    %v1359 = vpop.permute.xlu0 %1358
    %v1360 = vsel %vm559, %v1353, 0
    %v1362 = vsel %vm559, %v1355, 0
    %v1364 = vsel %vm559, %v1357, 0
    %v1366 = vsel %vm559, %v1359, 0
    %1368 = vmatprep.subr.mxu0 0.0
    %1369 = vmatpush1.xpose.msra.mxu0 %v1364
    %1370 = vmatprep.subr.mxu0 0.0
    %1371 = vmatpush1.xpose.msra.mxu0 %v1366
    %1372 = vmatprep.subr.mxu0 0.0
    %1373 = vmatpush1.xpose.msra.mxu0 0.0
    %1374 = vmatprep.subr.mxu0 0.0
    %1375 = vmatpush1.xpose.msra.mxu0 0.0
    %1376 = vmatprep.subr.mxu0 0.0
    %1377 = vmatpush1.xpose.msra.mxu0 0.0
    %1378 = vmatprep.subr.mxu0 0.0
    %1379 = vmatpush1.xpose.msra.mxu0 0.0
    %1380 = vmatprep.subr.mxu0 0.0
    %1381 = vmatpush1.xpose.msra.mxu0 0.0
    %1382 = vmatprep.subr.mxu0 0.0
    %1383 = vmatpush1.xpose.msra.mxu0 0.0
    %1384 = vmatprep.subr.mxu0 0.0
    %1385 = vmatpush1.xpose.msra.mxu0 0.0
    %1386 = vmatprep.subr.mxu0 0.0
    %1387 = vmatpush1.xpose.msra.mxu0 0.0
    %1388 = vmatprep.subr.mxu0 0.0
    %1389 = vmatpush1.xpose.msra.mxu0 0.0
    %1390 = vmatprep.subr.mxu0 0.0
    %1391 = vmatpush1.xpose.msra.mxu0 0.0
    %1392 = vmatprep.subr.mxu0 0.0
    %1393 = vmatpush1.xpose.msra.mxu0 0.0
    %1394 = vmatprep.subr.mxu0 0.0
    %1395 = vmatpush1.xpose.msra.mxu0 0.0
    %1396 = vmatprep.subr.mxu0 0.0
    %1397 = vmatpush1.xpose.msra.mxu0 0.0
    %1398 = vmatprep.subr.mxu0 0.0
    %1399 = vmatpush1.xpose.msra.mxu0 0.0
    %1400 = vmatprep.subr.mxu0 0.0
    %1401 = vmatpush1.xpose.msra.mxu0 0.0
    %1402 = vmatprep.subr.mxu0 0.0
    %1403 = vmatpush1.xpose.msra.mxu0 0.0
    %1404 = vmatprep.subr.mxu0 0.0
    %1405 = vmatpush1.xpose.msra.mxu0 0.0
    %1406 = vmatprep.subr.mxu0 0.0
    %1407 = vmatpush1.xpose.msra.mxu0 0.0
    %1408 = vmatprep.subr.mxu0 0.0
    %1409 = vmatpush1.xpose.msra.mxu0 0.0
    %1410 = vmatprep.subr.mxu0 0.0
    %1411 = vmatpush1.xpose.msra.mxu0 0.0
    %1412 = vmatprep.subr.mxu0 0.0
    %1413 = vmatpush1.xpose.msra.mxu0 0.0
    %1414 = vmatprep.subr.mxu0 0.0
    %1415 = vmatpush1.xpose.msra.mxu0 0.0
    %1416 = vmatprep.subr.mxu0 0.0
    %1417 = vmatpush1.xpose.msra.mxu0 0.0
    %1418 = vmatprep.subr.mxu0 0.0
    %1419 = vmatpush1.xpose.msra.mxu0 0.0
    %1420 = vmatprep.subr.mxu0 0.0
    %1421 = vmatpush1.xpose.msra.mxu0 0.0
    %1422 = vmatprep.subr.mxu0 0.0
    %1423 = vmatpush1.xpose.msra.mxu0 0.0
    %1424 = vmatprep.subr.mxu0 0.0
    %1425 = vmatpush1.xpose.msra.mxu0 0.0
    %1426 = vmatprep.subr.mxu0 0.0
    %1427 = vmatpush1.xpose.msra.mxu0 0.0
    %1428 = vmatprep.subr.mxu0 0.0
    %1429 = vmatpush1.xpose.msra.mxu0 0.0
    %1430 = vmatprep.subr.mxu0 0.0
    %1431 = vmatpush1.xpose.msra.mxu0 0.0
    %1432 = vmatprep.mubr.f32.mxu0 0.0
    %1433 = vmatmul.mubr.f32.gmra.mrb[0].mxu0 %v1360
    %v1434 = vpop.f32.mrb[0].mxu0
    %v1435 = vadd.f32 %v557, %v1434
    %v1436 = vpop.f32.mrb[0].mxu0
    %1437 = vmatprep.mubr.f32.mxu0 0.0
    %1438 = vmatmul.mubr.f32.gmra.mrb[0].mxu0 %v1362
    %v1439 = vpop.f32.mrb[0].mxu0
    %v1440 = vadd.f32 %v558, %v1439
    %v1441 = vpop.f32.mrb[0].mxu0
    %1442 = vdwg.mxu0
    %v1443 = vsel %vm559, %v1435, -inf
    %1444 = vmax.xlane.f32.xlu0 %v1443
    %v1445 = vpop.xlane.xlu0 %1444
    %v1446 = vsel %vm559, %v1440, -inf
    %1447 = vmax.xlane.f32.xlu0 %v1446
    %v1448 = vpop.xlane.xlu0 %1447
    %v1449 = vsub.f32 %v1435, %v1445
    %v1450 = vsub.f32 %v1440, %v1448
    %v1451 = vmul.f32 %v1449, 1.442695
    %v1452 = vpow.pop %v1451
    %v1453 = vmul.f32 %v1450, 1.442695
    %v1454 = vpow.pop %v1453
    %v1455 = vsel %vm559, %v1452, 0.0
    %1456 = vadd.xlane.f32.xlu0 %v1455
    %v1457 = vpop.xlane.xlu0 %1456
    %v1458 = vsel %vm559, %v1454, 0.0
    %1459 = vadd.xlane.f32.xlu0 %v1458
    %v1460 = vpop.xlane.xlu0 %1459
    %v1461 = vrcp.pop %v1457
    %v1462 = vmul.f32 %v1452, %v1461
    %v1463 = vrcp.pop %v1460
    %v1464 = vmul.f32 %v1454, %v1463
    %1465 = vrot.lane.b32.xlu0 %v533, 64
    %v1466 = vpop.permute.xlu0 %1465
    %1467 = vrot.lane.b32.xlu0 %v538, 64
    %v1468 = vpop.permute.xlu0 %1467
    %v1472 = vsel %vm559, %v1462, 0
    %v1475 = vsel %vm559, %v1464, 0
    %1477 = vmatprep.subr.mxu0 0.0
    %1478 = vmatpush1.msra.mxu0 %v1466
    %1479 = vmatprep.subr.mxu0 0.0
    %1480 = vmatpush1.msra.mxu0 %v1468
    %1481 = vmatprep.subr.mxu0 0.0
    %1482 = vmatpush1.msra.mxu0 0.0
    %1483 = vmatprep.subr.mxu0 0.0
    %1484 = vmatpush1.msra.mxu0 0.0
    %1485 = vmatprep.subr.mxu0 0.0
    %1486 = vmatpush1.msra.mxu0 0.0
    %1487 = vmatprep.subr.mxu0 0.0
    %1488 = vmatpush1.msra.mxu0 0.0
    %1489 = vmatprep.subr.mxu0 0.0
    %1490 = vmatpush1.msra.mxu0 0.0
    %1491 = vmatprep.subr.mxu0 0.0
    %1492 = vmatpush1.msra.mxu0 0.0
    %1493 = vmatprep.subr.mxu0 0.0
    %1494 = vmatpush1.msra.mxu0 0.0
    %1495 = vmatprep.subr.mxu0 0.0
    %1496 = vmatpush1.msra.mxu0 0.0
    %1497 = vmatprep.subr.mxu0 0.0
    %1498 = vmatpush1.msra.mxu0 0.0
    %1499 = vmatprep.subr.mxu0 0.0
    %1500 = vmatpush1.msra.mxu0 0.0
    %1501 = vmatprep.subr.mxu0 0.0
    %1502 = vmatpush1.msra.mxu0 0.0
    %1503 = vmatprep.subr.mxu0 0.0
    %1504 = vmatpush1.msra.mxu0 0.0
    %1505 = vmatprep.subr.mxu0 0.0
    %1506 = vmatpush1.msra.mxu0 0.0
    %1507 = vmatprep.subr.mxu0 0.0
    %1508 = vmatpush1.msra.mxu0 0.0
    %1509 = vmatprep.subr.mxu0 0.0
    %1510 = vmatpush1.msra.mxu0 0.0
    %1511 = vmatprep.subr.mxu0 0.0
    %1512 = vmatpush1.msra.mxu0 0.0
    %1513 = vmatprep.subr.mxu0 0.0
    %1514 = vmatpush1.msra.mxu0 0.0
    %1515 = vmatprep.subr.mxu0 0.0
    %1516 = vmatpush1.msra.mxu0 0.0
    %1517 = vmatprep.subr.mxu0 0.0
    %1518 = vmatpush1.msra.mxu0 0.0
    %1519 = vmatprep.subr.mxu0 0.0
    %1520 = vmatpush1.msra.mxu0 0.0
    %1521 = vmatprep.subr.mxu0 0.0
    %1522 = vmatpush1.msra.mxu0 0.0
    %1523 = vmatprep.subr.mxu0 0.0
    %1524 = vmatpush1.msra.mxu0 0.0
    %1525 = vmatprep.subr.mxu0 0.0
    %1526 = vmatpush1.msra.mxu0 0.0
    %1527 = vmatprep.subr.mxu0 0.0
    %1528 = vmatpush1.msra.mxu0 0.0
    %1529 = vmatprep.subr.mxu0 0.0
    %1530 = vmatpush1.msra.mxu0 0.0
    %1531 = vmatprep.subr.mxu0 0.0
    %1532 = vmatpush1.msra.mxu0 0.0
    %1533 = vmatprep.subr.mxu0 0.0
    %1534 = vmatpush1.msra.mxu0 0.0
    %1535 = vmatprep.subr.mxu0 0.0
    %1536 = vmatpush1.msra.mxu0 0.0
    %1537 = vmatprep.subr.mxu0 0.0
    %1538 = vmatpush1.msra.mxu0 0.0
    %1539 = vmatprep.subr.mxu0 0.0
    %1540 = vmatpush1.msra.mxu0 0.0
    %1541 = vmatprep.mubr.f32.mxu0 0.0
    %1542 = vmatmul.mubr.f32.gmra.mrb[0].mxu0 %v1472
    %v1543 = vpop.f32.mrb[0].mxu0
    %v1544 = vadd.f32 0.0, %v1543
    %v1545 = vpop.f32.mrb[0].mxu0
    %1546 = vmatprep.mubr.f32.mxu0 0.0
    %1547 = vmatmul.mubr.f32.gmra.mrb[0].mxu0 %v1475
    %v1548 = vpop.f32.mrb[0].mxu0
    %v1549 = vadd.f32 0.0, %v1548
    %v1550 = vpop.f32.mrb[0].mxu0
    %1551 = vdwg.mxu0
    %1552 = vrot.lane.b32.xlu0 %v549, 48
    %v1553 = vpop.permute.xlu0 %1552
    %1554 = vrot.lane.b32.xlu0 %v550, 48
    %v1555 = vpop.permute.xlu0 %1554
    %1556 = vrot.lane.b32.xlu0 %v555, 48
    %v1557 = vpop.permute.xlu0 %1556
    %1558 = vrot.lane.b32.xlu0 %v556, 48
    %v1559 = vpop.permute.xlu0 %1558
    %v1560 = vsel %vm559, %v1553, 0
    %v1562 = vsel %vm559, %v1555, 0
    %v1564 = vsel %vm559, %v1557, 0
    %v1566 = vsel %vm559, %v1559, 0
    %1568 = vmatprep.subr.mxu0 0.0
    %1569 = vmatpush1.xpose.msra.mxu0 %v1564
    %1570 = vmatprep.subr.mxu0 0.0
    %1571 = vmatpush1.xpose.msra.mxu0 %v1566
    %1572 = vmatprep.subr.mxu0 0.0
    %1573 = vmatpush1.xpose.msra.mxu0 0.0
    %1574 = vmatprep.subr.mxu0 0.0
    %1575 = vmatpush1.xpose.msra.mxu0 0.0
    %1576 = vmatprep.subr.mxu0 0.0
    %1577 = vmatpush1.xpose.msra.mxu0 0.0
    %1578 = vmatprep.subr.mxu0 0.0
    %1579 = vmatpush1.xpose.msra.mxu0 0.0
    %1580 = vmatprep.subr.mxu0 0.0
    %1581 = vmatpush1.xpose.msra.mxu0 0.0
    %1582 = vmatprep.subr.mxu0 0.0
    %1583 = vmatpush1.xpose.msra.mxu0 0.0
    %1584 = vmatprep.subr.mxu0 0.0
    %1585 = vmatpush1.xpose.msra.mxu0 0.0
    %1586 = vmatprep.subr.mxu0 0.0
    %1587 = vmatpush1.xpose.msra.mxu0 0.0
    %1588 = vmatprep.subr.mxu0 0.0
    %1589 = vmatpush1.xpose.msra.mxu0 0.0
    %1590 = vmatprep.subr.mxu0 0.0
    %1591 = vmatpush1.xpose.msra.mxu0 0.0
    %1592 = vmatprep.subr.mxu0 0.0
    %1593 = vmatpush1.xpose.msra.mxu0 0.0
    %1594 = vmatprep.subr.mxu0 0.0
    %1595 = vmatpush1.xpose.msra.mxu0 0.0
    %1596 = vmatprep.subr.mxu0 0.0
    %1597 = vmatpush1.xpose.msra.mxu0 0.0
    %1598 = vmatprep.subr.mxu0 0.0
    %1599 = vmatpush1.xpose.msra.mxu0 0.0
    %1600 = vmatprep.subr.mxu0 0.0
    %1601 = vmatpush1.xpose.msra.mxu0 0.0
    %1602 = vmatprep.subr.mxu0 0.0
    %1603 = vmatpush1.xpose.msra.mxu0 0.0
    %1604 = vmatprep.subr.mxu0 0.0
    %1605 = vmatpush1.xpose.msra.mxu0 0.0
    %1606 = vmatprep.subr.mxu0 0.0
    %1607 = vmatpush1.xpose.msra.mxu0 0.0
    %1608 = vmatprep.subr.mxu0 0.0
    %1609 = vmatpush1.xpose.msra.mxu0 0.0
    %1610 = vmatprep.subr.mxu0 0.0
    %1611 = vmatpush1.xpose.msra.mxu0 0.0
    %1612 = vmatprep.subr.mxu0 0.0
    %1613 = vmatpush1.xpose.msra.mxu0 0.0
    %1614 = vmatprep.subr.mxu0 0.0
    %1615 = vmatpush1.xpose.msra.mxu0 0.0
    %1616 = vmatprep.subr.mxu0 0.0
    %1617 = vmatpush1.xpose.msra.mxu0 0.0
    %1618 = vmatprep.subr.mxu0 0.0
    %1619 = vmatpush1.xpose.msra.mxu0 0.0
    %1620 = vmatprep.subr.mxu0 0.0
    %1621 = vmatpush1.xpose.msra.mxu0 0.0
    %1622 = vmatprep.subr.mxu0 0.0
    %1623 = vmatpush1.xpose.msra.mxu0 0.0
    %1624 = vmatprep.subr.mxu0 0.0
    %1625 = vmatpush1.xpose.msra.mxu0 0.0
    %1626 = vmatprep.subr.mxu0 0.0
    %1627 = vmatpush1.xpose.msra.mxu0 0.0
    %1628 = vmatprep.subr.mxu0 0.0
    %1629 = vmatpush1.xpose.msra.mxu0 0.0
    %1630 = vmatprep.subr.mxu0 0.0
    %1631 = vmatpush1.xpose.msra.mxu0 0.0
    %1632 = vmatprep.mubr.f32.mxu0 0.0
    %1633 = vmatmul.mubr.f32.gmra.mrb[0].mxu0 %v1560
    %v1634 = vpop.f32.mrb[0].mxu0
    %v1635 = vadd.f32 %v557, %v1634
    %v1636 = vpop.f32.mrb[0].mxu0
    %1637 = vmatprep.mubr.f32.mxu0 0.0
    %1638 = vmatmul.mubr.f32.gmra.mrb[0].mxu0 %v1562
    %v1639 = vpop.f32.mrb[0].mxu0
    %v1640 = vadd.f32 %v558, %v1639
    %v1641 = vpop.f32.mrb[0].mxu0
    %1642 = vdwg.mxu0
    %v1643 = vsel %vm559, %v1635, -inf
    %1644 = vmax.xlane.f32.xlu0 %v1643
    %v1645 = vpop.xlane.xlu0 %1644
    %v1646 = vsel %vm559, %v1640, -inf
    %1647 = vmax.xlane.f32.xlu0 %v1646
    %v1648 = vpop.xlane.xlu0 %1647
    %v1649 = vsub.f32 %v1635, %v1645
    %v1650 = vsub.f32 %v1640, %v1648
    %v1651 = vmul.f32 %v1649, 1.442695
    %v1652 = vpow.pop %v1651
    %v1653 = vmul.f32 %v1650, 1.442695
    %v1654 = vpow.pop %v1653
    %v1655 = vsel %vm559, %v1652, 0.0
    %1656 = vadd.xlane.f32.xlu0 %v1655
    %v1657 = vpop.xlane.xlu0 %1656
    %v1658 = vsel %vm559, %v1654, 0.0
    %1659 = vadd.xlane.f32.xlu0 %v1658
    %v1660 = vpop.xlane.xlu0 %1659
    %v1661 = vrcp.pop %v1657
    %v1662 = vmul.f32 %v1652, %v1661
    %v1663 = vrcp.pop %v1660
    %v1664 = vmul.f32 %v1654, %v1663
    %1665 = vrot.lane.b32.xlu0 %v533, 48
    %v1666 = vpop.permute.xlu0 %1665
    %1667 = vrot.lane.b32.xlu0 %v538, 48
    %v1668 = vpop.permute.xlu0 %1667
    %v1672 = vsel %vm559, %v1662, 0
    %v1675 = vsel %vm559, %v1664, 0
    %1677 = vmatprep.subr.mxu0 0.0
    %1678 = vmatpush1.msra.mxu0 %v1666
    %1679 = vmatprep.subr.mxu0 0.0
    %1680 = vmatpush1.msra.mxu0 %v1668
    %1681 = vmatprep.subr.mxu0 0.0
    %1682 = vmatpush1.msra.mxu0 0.0
    %1683 = vmatprep.subr.mxu0 0.0
    %1684 = vmatpush1.msra.mxu0 0.0
    %1685 = vmatprep.subr.mxu0 0.0
    %1686 = vmatpush1.msra.mxu0 0.0
    %1687 = vmatprep.subr.mxu0 0.0
    %1688 = vmatpush1.msra.mxu0 0.0
    %1689 = vmatprep.subr.mxu0 0.0
    %1690 = vmatpush1.msra.mxu0 0.0
    %1691 = vmatprep.subr.mxu0 0.0
    %1692 = vmatpush1.msra.mxu0 0.0
    %1693 = vmatprep.subr.mxu0 0.0
    %1694 = vmatpush1.msra.mxu0 0.0
    %1695 = vmatprep.subr.mxu0 0.0
    %1696 = vmatpush1.msra.mxu0 0.0
    %1697 = vmatprep.subr.mxu0 0.0
    %1698 = vmatpush1.msra.mxu0 0.0
    %1699 = vmatprep.subr.mxu0 0.0
    %1700 = vmatpush1.msra.mxu0 0.0
    %1701 = vmatprep.subr.mxu0 0.0
    %1702 = vmatpush1.msra.mxu0 0.0
    %1703 = vmatprep.subr.mxu0 0.0
    %1704 = vmatpush1.msra.mxu0 0.0
    %1705 = vmatprep.subr.mxu0 0.0
    %1706 = vmatpush1.msra.mxu0 0.0
    %1707 = vmatprep.subr.mxu0 0.0
    %1708 = vmatpush1.msra.mxu0 0.0
    %1709 = vmatprep.subr.mxu0 0.0
    %1710 = vmatpush1.msra.mxu0 0.0
    %1711 = vmatprep.subr.mxu0 0.0
    %1712 = vmatpush1.msra.mxu0 0.0
    %1713 = vmatprep.subr.mxu0 0.0
    %1714 = vmatpush1.msra.mxu0 0.0
    %1715 = vmatprep.subr.mxu0 0.0
    %1716 = vmatpush1.msra.mxu0 0.0
    %1717 = vmatprep.subr.mxu0 0.0
    %1718 = vmatpush1.msra.mxu0 0.0
    %1719 = vmatprep.subr.mxu0 0.0
    %1720 = vmatpush1.msra.mxu0 0.0
    %1721 = vmatprep.subr.mxu0 0.0
    %1722 = vmatpush1.msra.mxu0 0.0
    %1723 = vmatprep.subr.mxu0 0.0
    %1724 = vmatpush1.msra.mxu0 0.0
    %1725 = vmatprep.subr.mxu0 0.0
    %1726 = vmatpush1.msra.mxu0 0.0
    %1727 = vmatprep.subr.mxu0 0.0
    %1728 = vmatpush1.msra.mxu0 0.0
    %1729 = vmatprep.subr.mxu0 0.0
    %1730 = vmatpush1.msra.mxu0 0.0
    %1731 = vmatprep.subr.mxu0 0.0
    %1732 = vmatpush1.msra.mxu0 0.0
    %1733 = vmatprep.subr.mxu0 0.0
    %1734 = vmatpush1.msra.mxu0 0.0
    %1735 = vmatprep.subr.mxu0 0.0
    %1736 = vmatpush1.msra.mxu0 0.0
    %1737 = vmatprep.subr.mxu0 0.0
    %1738 = vmatpush1.msra.mxu0 0.0
    %1739 = vmatprep.subr.mxu0 0.0
    %1740 = vmatpush1.msra.mxu0 0.0
    %1741 = vmatprep.mubr.f32.mxu0 0.0
    %1742 = vmatmul.mubr.f32.gmra.mrb[0].mxu0 %v1672
    %v1743 = vpop.f32.mrb[0].mxu0
    %v1744 = vadd.f32 0.0, %v1743
    %v1745 = vpop.f32.mrb[0].mxu0
    %1746 = vmatprep.mubr.f32.mxu0 0.0
    %1747 = vmatmul.mubr.f32.gmra.mrb[0].mxu0 %v1675
    %v1748 = vpop.f32.mrb[0].mxu0
    %v1749 = vadd.f32 0.0, %v1748
    %v1750 = vpop.f32.mrb[0].mxu0
    %1751 = vdwg.mxu0
    %1752 = vrot.lane.b32.xlu0 %v549, 32
    %v1753 = vpop.permute.xlu0 %1752
    %1754 = vrot.lane.b32.xlu0 %v550, 32
    %v1755 = vpop.permute.xlu0 %1754
    %1756 = vrot.lane.b32.xlu0 %v555, 32
    %v1757 = vpop.permute.xlu0 %1756
    %1758 = vrot.lane.b32.xlu0 %v556, 32
    %v1759 = vpop.permute.xlu0 %1758
    %v1760 = vsel %vm559, %v1753, 0
    %v1762 = vsel %vm559, %v1755, 0
    %v1764 = vsel %vm559, %v1757, 0
    %v1766 = vsel %vm559, %v1759, 0
    %1768 = vmatprep.subr.mxu0 0.0
    %1769 = vmatpush1.xpose.msra.mxu0 %v1764
    %1770 = vmatprep.subr.mxu0 0.0
    %1771 = vmatpush1.xpose.msra.mxu0 %v1766
    %1772 = vmatprep.subr.mxu0 0.0
    %1773 = vmatpush1.xpose.msra.mxu0 0.0
    %1774 = vmatprep.subr.mxu0 0.0
    %1775 = vmatpush1.xpose.msra.mxu0 0.0
    %1776 = vmatprep.subr.mxu0 0.0
    %1777 = vmatpush1.xpose.msra.mxu0 0.0
    %1778 = vmatprep.subr.mxu0 0.0
    %1779 = vmatpush1.xpose.msra.mxu0 0.0
    %1780 = vmatprep.subr.mxu0 0.0
    %1781 = vmatpush1.xpose.msra.mxu0 0.0
    %1782 = vmatprep.subr.mxu0 0.0
    %1783 = vmatpush1.xpose.msra.mxu0 0.0
    %1784 = vmatprep.subr.mxu0 0.0
    %1785 = vmatpush1.xpose.msra.mxu0 0.0
    %1786 = vmatprep.subr.mxu0 0.0
    %1787 = vmatpush1.xpose.msra.mxu0 0.0
    %1788 = vmatprep.subr.mxu0 0.0
    %1789 = vmatpush1.xpose.msra.mxu0 0.0
    %1790 = vmatprep.subr.mxu0 0.0
    %1791 = vmatpush1.xpose.msra.mxu0 0.0
    %1792 = vmatprep.subr.mxu0 0.0
    %1793 = vmatpush1.xpose.msra.mxu0 0.0
    %1794 = vmatprep.subr.mxu0 0.0
    %1795 = vmatpush1.xpose.msra.mxu0 0.0
    %1796 = vmatprep.subr.mxu0 0.0
    %1797 = vmatpush1.xpose.msra.mxu0 0.0
    %1798 = vmatprep.subr.mxu0 0.0
    %1799 = vmatpush1.xpose.msra.mxu0 0.0
    %1800 = vmatprep.subr.mxu0 0.0
    %1801 = vmatpush1.xpose.msra.mxu0 0.0
    %1802 = vmatprep.subr.mxu0 0.0
    %1803 = vmatpush1.xpose.msra.mxu0 0.0
    %1804 = vmatprep.subr.mxu0 0.0
    %1805 = vmatpush1.xpose.msra.mxu0 0.0
    %1806 = vmatprep.subr.mxu0 0.0
    %1807 = vmatpush1.xpose.msra.mxu0 0.0
    %1808 = vmatprep.subr.mxu0 0.0
    %1809 = vmatpush1.xpose.msra.mxu0 0.0
    %1810 = vmatprep.subr.mxu0 0.0
    %1811 = vmatpush1.xpose.msra.mxu0 0.0
    %1812 = vmatprep.subr.mxu0 0.0
    %1813 = vmatpush1.xpose.msra.mxu0 0.0
    %1814 = vmatprep.subr.mxu0 0.0
    %1815 = vmatpush1.xpose.msra.mxu0 0.0
    %1816 = vmatprep.subr.mxu0 0.0
    %1817 = vmatpush1.xpose.msra.mxu0 0.0
    %1818 = vmatprep.subr.mxu0 0.0
    %1819 = vmatpush1.xpose.msra.mxu0 0.0
    %1820 = vmatprep.subr.mxu0 0.0
    %1821 = vmatpush1.xpose.msra.mxu0 0.0
    %1822 = vmatprep.subr.mxu0 0.0
    %1823 = vmatpush1.xpose.msra.mxu0 0.0
    %1824 = vmatprep.subr.mxu0 0.0
    %1825 = vmatpush1.xpose.msra.mxu0 0.0
    %1826 = vmatprep.subr.mxu0 0.0
    %1827 = vmatpush1.xpose.msra.mxu0 0.0
    %1828 = vmatprep.subr.mxu0 0.0
    %1829 = vmatpush1.xpose.msra.mxu0 0.0
    %1830 = vmatprep.subr.mxu0 0.0
    %1831 = vmatpush1.xpose.msra.mxu0 0.0
    %1832 = vmatprep.mubr.f32.mxu0 0.0
    %1833 = vmatmul.mubr.f32.gmra.mrb[0].mxu0 %v1760
    %v1834 = vpop.f32.mrb[0].mxu0
    %v1835 = vadd.f32 %v557, %v1834
    %v1836 = vpop.f32.mrb[0].mxu0
    %1837 = vmatprep.mubr.f32.mxu0 0.0
    %1838 = vmatmul.mubr.f32.gmra.mrb[0].mxu0 %v1762
    %v1839 = vpop.f32.mrb[0].mxu0
    %v1840 = vadd.f32 %v558, %v1839
    %v1841 = vpop.f32.mrb[0].mxu0
    %1842 = vdwg.mxu0
    %v1843 = vsel %vm559, %v1835, -inf
    %1844 = vmax.xlane.f32.xlu0 %v1843
    %v1845 = vpop.xlane.xlu0 %1844
    %v1846 = vsel %vm559, %v1840, -inf
    %1847 = vmax.xlane.f32.xlu0 %v1846
    %v1848 = vpop.xlane.xlu0 %1847
    %v1849 = vsub.f32 %v1835, %v1845
    %v1850 = vsub.f32 %v1840, %v1848
    %v1851 = vmul.f32 %v1849, 1.442695
    %v1852 = vpow.pop %v1851
    %v1853 = vmul.f32 %v1850, 1.442695
    %v1854 = vpow.pop %v1853
    %v1855 = vsel %vm559, %v1852, 0.0
    %1856 = vadd.xlane.f32.xlu0 %v1855
    %v1857 = vpop.xlane.xlu0 %1856
    %v1858 = vsel %vm559, %v1854, 0.0
    %1859 = vadd.xlane.f32.xlu0 %v1858
    %v1860 = vpop.xlane.xlu0 %1859
    %v1861 = vrcp.pop %v1857
    %v1862 = vmul.f32 %v1852, %v1861
    %v1863 = vrcp.pop %v1860
    %v1864 = vmul.f32 %v1854, %v1863
    %1865 = vrot.lane.b32.xlu0 %v533, 32
    %v1866 = vpop.permute.xlu0 %1865
    %1867 = vrot.lane.b32.xlu0 %v538, 32
    %v1868 = vpop.permute.xlu0 %1867
    %v1872 = vsel %vm559, %v1862, 0
    %v1875 = vsel %vm559, %v1864, 0
    %1877 = vmatprep.subr.mxu0 0.0
    %1878 = vmatpush1.msra.mxu0 %v1866
    %1879 = vmatprep.subr.mxu0 0.0
    %1880 = vmatpush1.msra.mxu0 %v1868
    %1881 = vmatprep.subr.mxu0 0.0
    %1882 = vmatpush1.msra.mxu0 0.0
    %1883 = vmatprep.subr.mxu0 0.0
    %1884 = vmatpush1.msra.mxu0 0.0
    %1885 = vmatprep.subr.mxu0 0.0
    %1886 = vmatpush1.msra.mxu0 0.0
    %1887 = vmatprep.subr.mxu0 0.0
    %1888 = vmatpush1.msra.mxu0 0.0
    %1889 = vmatprep.subr.mxu0 0.0
    %1890 = vmatpush1.msra.mxu0 0.0
    %1891 = vmatprep.subr.mxu0 0.0
    %1892 = vmatpush1.msra.mxu0 0.0
    %1893 = vmatprep.subr.mxu0 0.0
    %1894 = vmatpush1.msra.mxu0 0.0
    %1895 = vmatprep.subr.mxu0 0.0
    %1896 = vmatpush1.msra.mxu0 0.0
    %1897 = vmatprep.subr.mxu0 0.0
    %1898 = vmatpush1.msra.mxu0 0.0
    %1899 = vmatprep.subr.mxu0 0.0
    %1900 = vmatpush1.msra.mxu0 0.0
    %1901 = vmatprep.subr.mxu0 0.0
    %1902 = vmatpush1.msra.mxu0 0.0
    %1903 = vmatprep.subr.mxu0 0.0
    %1904 = vmatpush1.msra.mxu0 0.0
    %1905 = vmatprep.subr.mxu0 0.0
    %1906 = vmatpush1.msra.mxu0 0.0
    %1907 = vmatprep.subr.mxu0 0.0
    %1908 = vmatpush1.msra.mxu0 0.0
    %1909 = vmatprep.subr.mxu0 0.0
    %1910 = vmatpush1.msra.mxu0 0.0
    %1911 = vmatprep.subr.mxu0 0.0
    %1912 = vmatpush1.msra.mxu0 0.0
    %1913 = vmatprep.subr.mxu0 0.0
    %1914 = vmatpush1.msra.mxu0 0.0
    %1915 = vmatprep.subr.mxu0 0.0
    %1916 = vmatpush1.msra.mxu0 0.0
    %1917 = vmatprep.subr.mxu0 0.0
    %1918 = vmatpush1.msra.mxu0 0.0
    %1919 = vmatprep.subr.mxu0 0.0
    %1920 = vmatpush1.msra.mxu0 0.0
    %1921 = vmatprep.subr.mxu0 0.0
    %1922 = vmatpush1.msra.mxu0 0.0
    %1923 = vmatprep.subr.mxu0 0.0
    %1924 = vmatpush1.msra.mxu0 0.0
    %1925 = vmatprep.subr.mxu0 0.0
    %1926 = vmatpush1.msra.mxu0 0.0
    %1927 = vmatprep.subr.mxu0 0.0
    %1928 = vmatpush1.msra.mxu0 0.0
    %1929 = vmatprep.subr.mxu0 0.0
    %1930 = vmatpush1.msra.mxu0 0.0
    %1931 = vmatprep.subr.mxu0 0.0
    %1932 = vmatpush1.msra.mxu0 0.0
    %1933 = vmatprep.subr.mxu0 0.0
    %1934 = vmatpush1.msra.mxu0 0.0
    %1935 = vmatprep.subr.mxu0 0.0
    %1936 = vmatpush1.msra.mxu0 0.0
    %1937 = vmatprep.subr.mxu0 0.0
    %1938 = vmatpush1.msra.mxu0 0.0
    %1939 = vmatprep.subr.mxu0 0.0
    %1940 = vmatpush1.msra.mxu0 0.0
    %1941 = vmatprep.mubr.f32.mxu0 0.0
    %1942 = vmatmul.mubr.f32.gmra.mrb[0].mxu0 %v1872
    %v1943 = vpop.f32.mrb[0].mxu0
    %v1944 = vadd.f32 0.0, %v1943
    %v1945 = vpop.f32.mrb[0].mxu0
    %1946 = vmatprep.mubr.f32.mxu0 0.0
    %1947 = vmatmul.mubr.f32.gmra.mrb[0].mxu0 %v1875
    %v1948 = vpop.f32.mrb[0].mxu0
    %v1949 = vadd.f32 0.0, %v1948
    %v1950 = vpop.f32.mrb[0].mxu0
    %1951 = vdwg.mxu0
    %1952 = vrot.lane.b32.xlu0 %v549, 16
    %v1953 = vpop.permute.xlu0 %1952
    %1954 = vrot.lane.b32.xlu0 %v550, 16
    %v1955 = vpop.permute.xlu0 %1954
    %1956 = vrot.lane.b32.xlu0 %v555, 16
    %v1957 = vpop.permute.xlu0 %1956
    %1958 = vrot.lane.b32.xlu0 %v556, 16
    %v1959 = vpop.permute.xlu0 %1958
    %v1960 = vsel %vm559, %v1953, 0
    %v1962 = vsel %vm559, %v1955, 0
    %v1964 = vsel %vm559, %v1957, 0
    %v1966 = vsel %vm559, %v1959, 0
    %1968 = vmatprep.subr.mxu0 0.0
    %1969 = vmatpush1.xpose.msra.mxu0 %v1964
    %1970 = vmatprep.subr.mxu0 0.0
    %1971 = vmatpush1.xpose.msra.mxu0 %v1966
    %1972 = vmatprep.subr.mxu0 0.0
    %1973 = vmatpush1.xpose.msra.mxu0 0.0
    %1974 = vmatprep.subr.mxu0 0.0
    %1975 = vmatpush1.xpose.msra.mxu0 0.0
    %1976 = vmatprep.subr.mxu0 0.0
    %1977 = vmatpush1.xpose.msra.mxu0 0.0
    %1978 = vmatprep.subr.mxu0 0.0
    %1979 = vmatpush1.xpose.msra.mxu0 0.0
    %1980 = vmatprep.subr.mxu0 0.0
    %1981 = vmatpush1.xpose.msra.mxu0 0.0
    %1982 = vmatprep.subr.mxu0 0.0
    %1983 = vmatpush1.xpose.msra.mxu0 0.0
    %1984 = vmatprep.subr.mxu0 0.0
    %1985 = vmatpush1.xpose.msra.mxu0 0.0
    %1986 = vmatprep.subr.mxu0 0.0
    %1987 = vmatpush1.xpose.msra.mxu0 0.0
    %1988 = vmatprep.subr.mxu0 0.0
    %1989 = vmatpush1.xpose.msra.mxu0 0.0
    %1990 = vmatprep.subr.mxu0 0.0
    %1991 = vmatpush1.xpose.msra.mxu0 0.0
    %1992 = vmatprep.subr.mxu0 0.0
    %1993 = vmatpush1.xpose.msra.mxu0 0.0
    %1994 = vmatprep.subr.mxu0 0.0
    %1995 = vmatpush1.xpose.msra.mxu0 0.0
    %1996 = vmatprep.subr.mxu0 0.0
    %1997 = vmatpush1.xpose.msra.mxu0 0.0
    %1998 = vmatprep.subr.mxu0 0.0
    %1999 = vmatpush1.xpose.msra.mxu0 0.0
    %2000 = vmatprep.subr.mxu0 0.0
    %2001 = vmatpush1.xpose.msra.mxu0 0.0
    %2002 = vmatprep.subr.mxu0 0.0
    %2003 = vmatpush1.xpose.msra.mxu0 0.0
    %2004 = vmatprep.subr.mxu0 0.0
    %2005 = vmatpush1.xpose.msra.mxu0 0.0
    %2006 = vmatprep.subr.mxu0 0.0
    %2007 = vmatpush1.xpose.msra.mxu0 0.0
    %2008 = vmatprep.subr.mxu0 0.0
    %2009 = vmatpush1.xpose.msra.mxu0 0.0
    %2010 = vmatprep.subr.mxu0 0.0
    %2011 = vmatpush1.xpose.msra.mxu0 0.0
    %2012 = vmatprep.subr.mxu0 0.0
    %2013 = vmatpush1.xpose.msra.mxu0 0.0
    %2014 = vmatprep.subr.mxu0 0.0
    %2015 = vmatpush1.xpose.msra.mxu0 0.0
    %2016 = vmatprep.subr.mxu0 0.0
    %2017 = vmatpush1.xpose.msra.mxu0 0.0
    %2018 = vmatprep.subr.mxu0 0.0
    %2019 = vmatpush1.xpose.msra.mxu0 0.0
    %2020 = vmatprep.subr.mxu0 0.0
    %2021 = vmatpush1.xpose.msra.mxu0 0.0
    %2022 = vmatprep.subr.mxu0 0.0
    %2023 = vmatpush1.xpose.msra.mxu0 0.0
    %2024 = vmatprep.subr.mxu0 0.0
    %2025 = vmatpush1.xpose.msra.mxu0 0.0
    %2026 = vmatprep.subr.mxu0 0.0
    %2027 = vmatpush1.xpose.msra.mxu0 0.0
    %2028 = vmatprep.subr.mxu0 0.0
    %2029 = vmatpush1.xpose.msra.mxu0 0.0
    %2030 = vmatprep.subr.mxu0 0.0
    %2031 = vmatpush1.xpose.msra.mxu0 0.0
    %2032 = vmatprep.mubr.f32.mxu0 0.0
    %2033 = vmatmul.mubr.f32.gmra.mrb[0].mxu0 %v1960
    %v2034 = vpop.f32.mrb[0].mxu0
    %v2035 = vadd.f32 %v557, %v2034
    %v2036 = vpop.f32.mrb[0].mxu0
    %2037 = vmatprep.mubr.f32.mxu0 0.0
    %2038 = vmatmul.mubr.f32.gmra.mrb[0].mxu0 %v1962
    %v2039 = vpop.f32.mrb[0].mxu0
    %v2040 = vadd.f32 %v558, %v2039
    %v2041 = vpop.f32.mrb[0].mxu0
    %2042 = vdwg.mxu0
    %v2043 = vsel %vm559, %v2035, -inf
    %2044 = vmax.xlane.f32.xlu0 %v2043
    %v2045 = vpop.xlane.xlu0 %2044
    %v2046 = vsel %vm559, %v2040, -inf
    %2047 = vmax.xlane.f32.xlu0 %v2046
    %v2048 = vpop.xlane.xlu0 %2047
    %v2049 = vsub.f32 %v2035, %v2045
    %v2050 = vsub.f32 %v2040, %v2048
    %v2051 = vmul.f32 %v2049, 1.442695
    %v2052 = vpow.pop %v2051
    %v2053 = vmul.f32 %v2050, 1.442695
    %v2054 = vpow.pop %v2053
    %v2055 = vsel %vm559, %v2052, 0.0
    %2056 = vadd.xlane.f32.xlu0 %v2055
    %v2057 = vpop.xlane.xlu0 %2056
    %v2058 = vsel %vm559, %v2054, 0.0
    %2059 = vadd.xlane.f32.xlu0 %v2058
    %v2060 = vpop.xlane.xlu0 %2059
    %v2061 = vrcp.pop %v2057
    %v2062 = vmul.f32 %v2052, %v2061
    %v2063 = vrcp.pop %v2060
    %v2064 = vmul.f32 %v2054, %v2063
    %2065 = vrot.lane.b32.xlu0 %v533, 16
    %v2066 = vpop.permute.xlu0 %2065
    %2067 = vrot.lane.b32.xlu0 %v538, 16
    %v2068 = vpop.permute.xlu0 %2067
    %v2072 = vsel %vm559, %v2062, 0
    %v2075 = vsel %vm559, %v2064, 0
    %2077 = vmatprep.subr.mxu0 0.0
    %2078 = vmatpush1.msra.mxu0 %v2066
    %2079 = vmatprep.subr.mxu0 0.0
    %2080 = vmatpush1.msra.mxu0 %v2068
    %2081 = vmatprep.subr.mxu0 0.0
    %2082 = vmatpush1.msra.mxu0 0.0
    %2083 = vmatprep.subr.mxu0 0.0
    %2084 = vmatpush1.msra.mxu0 0.0
    %2085 = vmatprep.subr.mxu0 0.0
    %2086 = vmatpush1.msra.mxu0 0.0
    %2087 = vmatprep.subr.mxu0 0.0
    %2088 = vmatpush1.msra.mxu0 0.0
    %2089 = vmatprep.subr.mxu0 0.0
    %2090 = vmatpush1.msra.mxu0 0.0
    %2091 = vmatprep.subr.mxu0 0.0
    %2092 = vmatpush1.msra.mxu0 0.0
    %2093 = vmatprep.subr.mxu0 0.0
    %2094 = vmatpush1.msra.mxu0 0.0
    %2095 = vmatprep.subr.mxu0 0.0
    %2096 = vmatpush1.msra.mxu0 0.0
    %2097 = vmatprep.subr.mxu0 0.0
    %2098 = vmatpush1.msra.mxu0 0.0
    %2099 = vmatprep.subr.mxu0 0.0
    %2100 = vmatpush1.msra.mxu0 0.0
    %2101 = vmatprep.subr.mxu0 0.0
    %2102 = vmatpush1.msra.mxu0 0.0
    %2103 = vmatprep.subr.mxu0 0.0
    %2104 = vmatpush1.msra.mxu0 0.0
    %2105 = vmatprep.subr.mxu0 0.0
    %2106 = vmatpush1.msra.mxu0 0.0
    %2107 = vmatprep.subr.mxu0 0.0
    %2108 = vmatpush1.msra.mxu0 0.0
    %2109 = vmatprep.subr.mxu0 0.0
    %2110 = vmatpush1.msra.mxu0 0.0
    %2111 = vmatprep.subr.mxu0 0.0
    %2112 = vmatpush1.msra.mxu0 0.0
    %2113 = vmatprep.subr.mxu0 0.0
    %2114 = vmatpush1.msra.mxu0 0.0
    %2115 = vmatprep.subr.mxu0 0.0
    %2116 = vmatpush1.msra.mxu0 0.0
    %2117 = vmatprep.subr.mxu0 0.0
    %2118 = vmatpush1.msra.mxu0 0.0
    %2119 = vmatprep.subr.mxu0 0.0
    %2120 = vmatpush1.msra.mxu0 0.0
    %2121 = vmatprep.subr.mxu0 0.0
    %2122 = vmatpush1.msra.mxu0 0.0
    %2123 = vmatprep.subr.mxu0 0.0
    %2124 = vmatpush1.msra.mxu0 0.0
    %2125 = vmatprep.subr.mxu0 0.0
    %2126 = vmatpush1.msra.mxu0 0.0
    %2127 = vmatprep.subr.mxu0 0.0
    %2128 = vmatpush1.msra.mxu0 0.0
    %2129 = vmatprep.subr.mxu0 0.0
    %2130 = vmatpush1.msra.mxu0 0.0
    %2131 = vmatprep.subr.mxu0 0.0
    %2132 = vmatpush1.msra.mxu0 0.0
    %2133 = vmatprep.subr.mxu0 0.0
    %2134 = vmatpush1.msra.mxu0 0.0
    %2135 = vmatprep.subr.mxu0 0.0
    %2136 = vmatpush1.msra.mxu0 0.0
    %2137 = vmatprep.subr.mxu0 0.0
    %2138 = vmatpush1.msra.mxu0 0.0
    %2139 = vmatprep.subr.mxu0 0.0
    %2140 = vmatpush1.msra.mxu0 0.0
    %2141 = vmatprep.mubr.f32.mxu0 0.0
    %2142 = vmatmul.mubr.f32.gmra.mrb[0].mxu0 %v2072
    %v2143 = vpop.f32.mrb[0].mxu0
    %v2144 = vadd.f32 0.0, %v2143
    %v2145 = vpop.f32.mrb[0].mxu0
    %2146 = vmatprep.mubr.f32.mxu0 0.0
    %2147 = vmatmul.mubr.f32.gmra.mrb[0].mxu0 %v2075
    %v2148 = vpop.f32.mrb[0].mxu0
    %v2149 = vadd.f32 0.0, %v2148
    %v2150 = vpop.f32.mrb[0].mxu0
    %2151 = vdwg.mxu0
    %2154 = vrot.lane.b32.xlu0 %v944, 16
    %v2155 = vpop.permute.xlu0 %2154
    %2156 = vrot.lane.b32.xlu0 %v949, 16
    %v2157 = vpop.permute.xlu0 %2156
    %2162 = vrot.lane.b32.xlu0 %v1144, 32
    %v2163 = vpop.permute.xlu0 %2162
    %2164 = vrot.lane.b32.xlu0 %v1149, 32
    %v2165 = vpop.permute.xlu0 %2164
    %2170 = vrot.lane.b32.xlu0 %v1344, 48
    %v2171 = vpop.permute.xlu0 %2170
    %2172 = vrot.lane.b32.xlu0 %v1349, 48
    %v2173 = vpop.permute.xlu0 %2172
    %2178 = vrot.lane.b32.xlu0 %v1544, 64
    %v2179 = vpop.permute.xlu0 %2178
    %2180 = vrot.lane.b32.xlu0 %v1549, 64
    %v2181 = vpop.permute.xlu0 %2180
    %2186 = vrot.lane.b32.xlu0 %v1744, 80
    %v2187 = vpop.permute.xlu0 %2186
    %2188 = vrot.lane.b32.xlu0 %v1749, 80
    %v2189 = vpop.permute.xlu0 %2188
    %2194 = vrot.lane.b32.xlu0 %v1944, 96
    %v2195 = vpop.permute.xlu0 %2194
    %2196 = vrot.lane.b32.xlu0 %v1949, 96
    %v2197 = vpop.permute.xlu0 %2196
    %2202 = vrot.lane.b32.xlu0 %v2144, 112
    %v2203 = vpop.permute.xlu0 %2202
    %2204 = vrot.lane.b32.xlu0 %v2149, 112
    %v2205 = vpop.permute.xlu0 %2204
    %v2208 = vsel %vm559, %v742, %v2155
    %v2209 = vsel %vm559, %v747, %v2157
    %vm2210 = vcmask 261120
    %v2211 = vsel %vm2210, %v2208, %v2163
    %v2212 = vsel %vm2210, %v2209, %v2165
    %vm2213 = vcmask 392192
    %v2214 = vsel %vm2213, %v2211, %v2171
    %v2215 = vsel %vm2213, %v2212, %v2173
    %vm2216 = vcmask 523264
    %v2217 = vsel %vm2216, %v2214, %v2179
    %v2218 = vsel %vm2216, %v2215, %v2181
    %vm2219 = vcmask 654336
    %v2220 = vsel %vm2219, %v2217, %v2187
    %v2221 = vsel %vm2219, %v2218, %v2189
    %vm2222 = vcmask 785408
    %v2223 = vsel %vm2222, %v2220, %v2195
    %v2224 = vsel %vm2222, %v2221, %v2197
    %vm2225 = vcmask 916480
    %v2226 = vsel %vm2225, %v2223, %v2203
    %v2227 = vsel %vm2225, %v2224, %v2205
    %v2228 = vld [vmem:[%s7] sm:$0xff]
    %v2229 = vld [vmem:[%s7 + $0x8] sm:$0xff]
    %v2230 = vld [vmem:[%s7 + $0x10] sm:$0xff]
    %v2231 = vld [vmem:[%s7 + $0x18] sm:$0xff]
    %v2232 = vld [vmem:[%s7 + $0x20] sm:$0xff]
    %v2233 = vld [vmem:[%s7 + $0x28] sm:$0xff]
    %v2234 = vld [vmem:[%s7 + $0x30] sm:$0xff]
    %v2235 = vld [vmem:[%s7 + $0x38] sm:$0xff]
    %v2236 = vld [vmem:[%s7 + $0x40] sm:$0xff]
    %v2237 = vld [vmem:[%s7 + $0x48] sm:$0xff]
    %v2238 = vld [vmem:[%s7 + $0x50] sm:$0xff]
    %v2239 = vld [vmem:[%s7 + $0x58] sm:$0xff]
    %v2240 = vld [vmem:[%s7 + $0x60] sm:$0xff]
    %v2241 = vld [vmem:[%s7 + $0x68] sm:$0xff]
    %v2242 = vld [vmem:[%s7 + $0x70] sm:$0xff]
    %v2243 = vld [vmem:[%s7 + $0x78] sm:$0xff]
    %2244 = vmatprep.subr.mxu0 0.0
    %2245 = vmatpush1.msra.mxu0 %v2228
    %2246 = vmatprep.subr.mxu0 0.0
    %2247 = vmatpush1.msra.mxu0 %v2229
    %2248 = vmatprep.subr.mxu0 0.0
    %2249 = vmatpush1.msra.mxu0 %v2230
    %2250 = vmatprep.subr.mxu0 0.0
    %2251 = vmatpush1.msra.mxu0 %v2231
    %2252 = vmatprep.subr.mxu0 0.0
    %2253 = vmatpush1.msra.mxu0 %v2232
    %2254 = vmatprep.subr.mxu0 0.0
    %2255 = vmatpush1.msra.mxu0 %v2233
    %2256 = vmatprep.subr.mxu0 0.0
    %2257 = vmatpush1.msra.mxu0 %v2234
    %2258 = vmatprep.subr.mxu0 0.0
    %2259 = vmatpush1.msra.mxu0 %v2235
    %2260 = vmatprep.subr.mxu0 0.0
    %2261 = vmatpush1.msra.mxu0 %v2236
    %2262 = vmatprep.subr.mxu0 0.0
    %2263 = vmatpush1.msra.mxu0 %v2237
    %2264 = vmatprep.subr.mxu0 0.0
    %2265 = vmatpush1.msra.mxu0 %v2238
    %2266 = vmatprep.subr.mxu0 0.0
    %2267 = vmatpush1.msra.mxu0 %v2239
    %2268 = vmatprep.subr.mxu0 0.0
    %2269 = vmatpush1.msra.mxu0 %v2240
    %2270 = vmatprep.subr.mxu0 0.0
    %2271 = vmatpush1.msra.mxu0 %v2241
    %2272 = vmatprep.subr.mxu0 0.0
    %2273 = vmatpush1.msra.mxu0 %v2242
    %2274 = vmatprep.subr.mxu0 0.0
    %2275 = vmatpush1.msra.mxu0 %v2243
    %2276 = vmatprep.subr.mxu0 0.0
    %2277 = vmatpush1.msra.mxu0 0.0
    %2278 = vmatprep.subr.mxu0 0.0
    %2279 = vmatpush1.msra.mxu0 0.0
    %2280 = vmatprep.subr.mxu0 0.0
    %2281 = vmatpush1.msra.mxu0 0.0
    %2282 = vmatprep.subr.mxu0 0.0
    %2283 = vmatpush1.msra.mxu0 0.0
    %2284 = vmatprep.subr.mxu0 0.0
    %2285 = vmatpush1.msra.mxu0 0.0
    %2286 = vmatprep.subr.mxu0 0.0
    %2287 = vmatpush1.msra.mxu0 0.0
    %2288 = vmatprep.subr.mxu0 0.0
    %2289 = vmatpush1.msra.mxu0 0.0
    %2290 = vmatprep.subr.mxu0 0.0
    %2291 = vmatpush1.msra.mxu0 0.0
    %2292 = vmatprep.subr.mxu0 0.0
    %2293 = vmatpush1.msra.mxu0 0.0
    %2294 = vmatprep.subr.mxu0 0.0
    %2295 = vmatpush1.msra.mxu0 0.0
    %2296 = vmatprep.subr.mxu0 0.0
    %2297 = vmatpush1.msra.mxu0 0.0
    %2298 = vmatprep.subr.mxu0 0.0
    %2299 = vmatpush1.msra.mxu0 0.0
    %2300 = vmatprep.subr.mxu0 0.0
    %2301 = vmatpush1.msra.mxu0 0.0
    %2302 = vmatprep.subr.mxu0 0.0
    %2303 = vmatpush1.msra.mxu0 0.0
    %2304 = vmatprep.subr.mxu0 0.0
    %2305 = vmatpush1.msra.mxu0 0.0
    %2306 = vmatprep.subr.mxu0 0.0
    %2307 = vmatpush1.msra.mxu0 0.0
    %2308 = vmatprep.mubr.f32.mxu0 0.0
    %2309 = vmatmul.mubr.f32.gmra.mrb[0].mxu0 %v2226
    %v2310 = vpop.f32.mrb[0].mxu0
    %v2311 = vadd.f32 0.0, %v2310
    %v2312 = vpop.f32.mrb[0].mxu0
    %2313 = vmatprep.mubr.f32.mxu0 0.0
    %2314 = vmatmul.mubr.f32.gmra.mrb[0].mxu0 %v2227
    %v2315 = vpop.f32.mrb[0].mxu0
    %v2316 = vadd.f32 0.0, %v2315
    %v2317 = vpop.f32.mrb[0].mxu0
    %2318 = vdwg.mxu0
    %v2319 = vadd.f32 %v179, %v2311
    %v2320 = vadd.f32 %v180, %v2316
    %v2321 = vld [vmem:[#allocation13] sm:$0x1]
    %v2323 = vlaneseq
    %v2324 = vshrl.u32 %v2323, 7
    %v2325 = vsub.s32 0, %v2324
    %v2326 = vrot.slane %v2321, %v2325
    %v2328 = vadd.f32 %v2319, %v2326
    %v2329 = vadd.f32 %v2320, %v2326
    %v2330 = vmul.f32 %v2328, %v2328
    %v2331 = vmul.f32 %v2329, %v2329
    %2332 = vadd.xlane.f32.xlu0 %v2330
    %v2333 = vpop.xlane.xlu0 %2332
    %2334 = vadd.xlane.f32.xlu0 %v2331
    %v2335 = vpop.xlane.xlu0 %2334
    %v2336 = vmul.f32 %v2333, %v187
    %v2337 = vmul.f32 %v2335, %v187
    %v2338 = vadd.f32 %v2336, 1e-06
    %v2339 = vadd.f32 %v2337, 1e-06
    %v2340 = vrsqrt.pop %v2338
    %v2341 = vrsqrt.pop %v2339
    %v2342 = vmul.f32 %v2328, %v2340
    %v2343 = vmul.f32 %v2329, %v2341
    %v2344 = vld [vmem:[#allocation14] sm:$0x1]
    %v2346 = vlaneseq
    %v2347 = vshrl.u32 %v2346, 7
    %v2348 = vsub.s32 0, %v2347
    %v2349 = vrot.slane %v2344, %v2348
    %v2351 = vmul.f32 %v2342, %v2349
    %v2352 = vmul.f32 %v2343, %v2349
    %v2353 = vld [vmem:[%s10] sm:$0xff]
    %v2354 = vld [vmem:[%s10 + $0x8] sm:$0xff]
    %v2355 = vld [vmem:[%s10 + $0x10] sm:$0xff]
    %v2356 = vld [vmem:[%s10 + $0x18] sm:$0xff]
    %v2357 = vld [vmem:[%s10 + $0x20] sm:$0xff]
    %v2358 = vld [vmem:[%s10 + $0x28] sm:$0xff]
    %v2359 = vld [vmem:[%s10 + $0x30] sm:$0xff]
    %v2360 = vld [vmem:[%s10 + $0x38] sm:$0xff]
    %v2361 = vld [vmem:[%s10 + $0x40] sm:$0xff]
    %v2362 = vld [vmem:[%s10 + $0x48] sm:$0xff]
    %v2363 = vld [vmem:[%s10 + $0x50] sm:$0xff]
    %v2364 = vld [vmem:[%s10 + $0x58] sm:$0xff]
    %v2365 = vld [vmem:[%s10 + $0x60] sm:$0xff]
    %v2366 = vld [vmem:[%s10 + $0x68] sm:$0xff]
    %v2367 = vld [vmem:[%s10 + $0x70] sm:$0xff]
    %v2368 = vld [vmem:[%s10 + $0x78] sm:$0xff]
    %v2369 = vld [vmem:[#allocation16] sm:$0x1]
    %v2371 = vlaneseq
    %v2372 = vshrl.u32 %v2371, 7
    %v2373 = vsub.s32 0, %v2372
    %v2374 = vrot.slane %v2369, %v2373
    %2376 = vmatprep.subr.mxu0 0.0
    %2377 = vmatpush1.msra.mxu0 %v2353
    %2378 = vmatprep.subr.mxu0 0.0
    %2379 = vmatpush1.msra.mxu0 %v2354
    %2380 = vmatprep.subr.mxu0 0.0
    %2381 = vmatpush1.msra.mxu0 %v2355
    %2382 = vmatprep.subr.mxu0 0.0
    %2383 = vmatpush1.msra.mxu0 %v2356
    %2384 = vmatprep.subr.mxu0 0.0
    %2385 = vmatpush1.msra.mxu0 %v2357
    %2386 = vmatprep.subr.mxu0 0.0
    %2387 = vmatpush1.msra.mxu0 %v2358
    %2388 = vmatprep.subr.mxu0 0.0
    %2389 = vmatpush1.msra.mxu0 %v2359
    %2390 = vmatprep.subr.mxu0 0.0
    %2391 = vmatpush1.msra.mxu0 %v2360
    %2392 = vmatprep.subr.mxu0 0.0
    %2393 = vmatpush1.msra.mxu0 %v2361
    %2394 = vmatprep.subr.mxu0 0.0
    %2395 = vmatpush1.msra.mxu0 %v2362
    %2396 = vmatprep.subr.mxu0 0.0
    %2397 = vmatpush1.msra.mxu0 %v2363
    %2398 = vmatprep.subr.mxu0 0.0
    %2399 = vmatpush1.msra.mxu0 %v2364
    %2400 = vmatprep.subr.mxu0 0.0
    %2401 = vmatpush1.msra.mxu0 %v2365
    %2402 = vmatprep.subr.mxu0 0.0
    %2403 = vmatpush1.msra.mxu0 %v2366
    %2404 = vmatprep.subr.mxu0 0.0
    %2405 = vmatpush1.msra.mxu0 %v2367
    %2406 = vmatprep.subr.mxu0 0.0
    %2407 = vmatpush1.msra.mxu0 %v2368
    %2408 = vmatprep.subr.mxu0 0.0
    %2409 = vmatpush1.msra.mxu0 0.0
    %2410 = vmatprep.subr.mxu0 0.0
    %2411 = vmatpush1.msra.mxu0 0.0
    %2412 = vmatprep.subr.mxu0 0.0
    %2413 = vmatpush1.msra.mxu0 0.0
    %2414 = vmatprep.subr.mxu0 0.0
    %2415 = vmatpush1.msra.mxu0 0.0
    %2416 = vmatprep.subr.mxu0 0.0
    %2417 = vmatpush1.msra.mxu0 0.0
    %2418 = vmatprep.subr.mxu0 0.0
    %2419 = vmatpush1.msra.mxu0 0.0
    %2420 = vmatprep.subr.mxu0 0.0
    %2421 = vmatpush1.msra.mxu0 0.0
    %2422 = vmatprep.subr.mxu0 0.0
    %2423 = vmatpush1.msra.mxu0 0.0
    %2424 = vmatprep.subr.mxu0 0.0
    %2425 = vmatpush1.msra.mxu0 0.0
    %2426 = vmatprep.subr.mxu0 0.0
    %2427 = vmatpush1.msra.mxu0 0.0
    %2428 = vmatprep.subr.mxu0 0.0
    %2429 = vmatpush1.msra.mxu0 0.0
    %2430 = vmatprep.subr.mxu0 0.0
    %2431 = vmatpush1.msra.mxu0 0.0
    %2432 = vmatprep.subr.mxu0 0.0
    %2433 = vmatpush1.msra.mxu0 0.0
    %2434 = vmatprep.subr.mxu0 0.0
    %2435 = vmatpush1.msra.mxu0 0.0
    %2436 = vmatprep.subr.mxu0 0.0
    %2437 = vmatpush1.msra.mxu0 0.0
    %2438 = vmatprep.subr.mxu0 0.0
    %2439 = vmatpush1.msra.mxu0 0.0
    %2440 = vmatprep.mubr.f32.mxu0 0.0
    %2441 = vmatmul.mubr.f32.gmra.mrb[0].mxu0 %v2351
    %v2442 = vpop.f32.mrb[0].mxu0
    %v2443 = vadd.f32 %v2374, %v2442
    %v2444 = vpop.f32.mrb[0].mxu0
    %2445 = vmatprep.mubr.f32.mxu0 0.0
    %2446 = vmatmul.mubr.f32.gmra.mrb[0].mxu0 %v2352
    %v2447 = vpop.f32.mrb[0].mxu0
    %v2448 = vadd.f32 %v2374, %v2447
    %v2449 = vpop.f32.mrb[0].mxu0
    %2450 = vdwg.mxu0
    %vm2451 = vcmask 48128
    %v2452 = vsel %vm2451, %v2443, -inf
    %2453 = vmax.xlane.f32.xlu0 %v2452
    %v2454 = vpop.xlane.xlu0 %2453
    %v2455 = vsel %vm2451, %v2448, -inf
    %2456 = vmax.xlane.f32.xlu0 %v2455
    %v2457 = vpop.xlane.xlu0 %2456
    %v2458 = vsub.f32 %v2443, %v2454
    %v2459 = vsub.f32 %v2448, %v2457
    %v2460 = vmul.f32 %v2458, 1.442695
    %v2461 = vpow.pop %v2460
    %v2462 = vmul.f32 %v2459, 1.442695
    %v2463 = vpow.pop %v2462
    %v2464 = vsel %vm2451, %v2461, 0.0
    %2465 = vadd.xlane.f32.xlu0 %v2464
    %v2466 = vpop.xlane.xlu0 %2465
    %v2467 = vsel %vm2451, %v2463, 0.0
    %2468 = vadd.xlane.f32.xlu0 %v2467
    %v2469 = vpop.xlane.xlu0 %2468
    %v2470 = vrcp.pop %v2466
    %v2471 = vmul.f32 %v2461, %v2470
    %v2472 = vrcp.pop %v2469
    %v2473 = vmul.f32 %v2463, %v2472
    %v2474 = vlaneseq
    %v2475 = vand.u32 %v2474, 127
    %v2476 = vsel %vm2451, %v2471, -inf
    %2477 = vmax.xlane.f32.xlu0 %v2476
    %v2478 = vpop.xlane.xlu0 %2477
    %v2479 = vsel %vm2451, %v2473, -inf
    %2480 = vmax.xlane.f32.xlu0 %v2479
    %v2481 = vpop.xlane.xlu0 %2480
    %vm2482 = vcmp.eq.f32.partialorder %v2471, %v2478
    %vm2483 = vcmp.eq.f32.partialorder %v2473, %v2481
    %v2484 = vsel %vm2482, %v2475, 6
    %v2485 = vsel %vm2483, %v2475, 6
    %v2486 = vsel %vm2451, %v2484, 2147483647
    %v2487 = vand.u32 %v2486, 65535
    %v2488 = vshra.s32 %v2486, 16
    %v2489 = vcvt.s32.f32 %v2487
    %v2490 = vcvt.s32.f32 %v2488
    %2491 = vmin.xlane.f32.xlu0 %v2490
    %v2492 = vpop.xlane.xlu0 %2491
    %vm2493 = vcmp.eq.f32.partialorder %v2490, %v2492
    %v2494 = vsel %vm2493, %v2489, inf
    %2495 = vmin.xlane.f32.xlu0 %v2494
    %v2496 = vpop.xlane.xlu0 %2495
    %v2497 = vcvt.f32.s32 %v2496
    %v2498 = vcvt.f32.s32 %v2492
    %v2499 = vshll.u32 %v2498, 16
    %v2500 = vadd.s32 %v2499, %v2497
    %v2501 = vsel %vm2451, %v2485, 2147483647
    %v2502 = vand.u32 %v2501, 65535
    %v2503 = vshra.s32 %v2501, 16
    %v2504 = vcvt.s32.f32 %v2502
    %v2505 = vcvt.s32.f32 %v2503
    %2506 = vmin.xlane.f32.xlu0 %v2505
    %v2507 = vpop.xlane.xlu0 %2506
    %vm2508 = vcmp.eq.f32.partialorder %v2505, %v2507
    %v2509 = vsel %vm2508, %v2504, inf
    %2510 = vmin.xlane.f32.xlu0 %v2509
    %v2511 = vpop.xlane.xlu0 %2510
    %v2512 = vcvt.f32.s32 %v2511
    %v2513 = vcvt.f32.s32 %v2507
    %v2514 = vshll.u32 %v2513, 16
    %v2515 = vadd.s32 %v2514, %v2512
    %vm2516 = vcmp.eq.s32.totalorder %v2475, %v2500
    %vm2517 = vcmp.eq.s32.totalorder %v2475, %v2515
    %v2518 = vsel %vm2516, -1.0, %v2471
    %v2519 = vsel %vm2517, -1.0, %v2473
    %v2520 = vsel %vm2451, %v2518, -inf
    %2521 = vmax.xlane.f32.xlu0 %v2520
    %v2522 = vpop.xlane.xlu0 %2521
    %v2523 = vsel %vm2451, %v2519, -inf
    %2524 = vmax.xlane.f32.xlu0 %v2523
    %v2525 = vpop.xlane.xlu0 %2524
    %vm2526 = vcmp.eq.f32.partialorder %v2518, %v2522
    %vm2527 = vcmp.eq.f32.partialorder %v2519, %v2525
    %v2528 = vsel %vm2526, %v2475, 6
    %v2529 = vsel %vm2527, %v2475, 6
    %v2530 = vsel %vm2451, %v2528, 2147483647
    %v2531 = vand.u32 %v2530, 65535
    %v2532 = vshra.s32 %v2530, 16
    %v2533 = vcvt.s32.f32 %v2531
    %v2534 = vcvt.s32.f32 %v2532
    %2535 = vmin.xlane.f32.xlu0 %v2534
    %v2536 = vpop.xlane.xlu0 %2535
    %vm2537 = vcmp.eq.f32.partialorder %v2534, %v2536
    %v2538 = vsel %vm2537, %v2533, inf
    %2539 = vmin.xlane.f32.xlu0 %v2538
    %v2540 = vpop.xlane.xlu0 %2539
    %v2541 = vcvt.f32.s32 %v2540
    %v2542 = vcvt.f32.s32 %v2536
    %v2543 = vshll.u32 %v2542, 16
    %v2544 = vadd.s32 %v2543, %v2541
    %v2545 = vsel %vm2451, %v2529, 2147483647
    %v2546 = vand.u32 %v2545, 65535
    %v2547 = vshra.s32 %v2545, 16
    %v2548 = vcvt.s32.f32 %v2546
    %v2549 = vcvt.s32.f32 %v2547
    %2550 = vmin.xlane.f32.xlu0 %v2549
    %v2551 = vpop.xlane.xlu0 %2550
    %vm2552 = vcmp.eq.f32.partialorder %v2549, %v2551
    %v2553 = vsel %vm2552, %v2548, inf
    %2554 = vmin.xlane.f32.xlu0 %v2553
    %v2555 = vpop.xlane.xlu0 %2554
    %v2556 = vcvt.f32.s32 %v2555
    %v2557 = vcvt.f32.s32 %v2551
    %v2558 = vshll.u32 %v2557, 16
    %v2559 = vadd.s32 %v2558, %v2556
    %vm2560 = vcmp.eq.s32.totalorder %v2475, %v2544
    %vm2561 = vcmp.eq.s32.totalorder %v2475, %v2559
    %vm2562 = vmor %vm2516, %vm2560
    %vm2563 = vmor %vm2517, %vm2561
    %v2564 = vsel %vm2562, %v2471, 0.0
    %v2565 = vsel %vm2563, %v2473, 0.0
    %v2566 = vld [vmem:[#allocation17] sm:$0xff]
    %v2567 = vld [vmem:[#allocation17 + $0x8] sm:$0xff]
    %v2568 = vld [vmem:[#allocation17 + $0x10] sm:$0xff]
    %v2569 = vld [vmem:[#allocation17 + $0x18] sm:$0xff]
    %v2570 = vld [vmem:[#allocation17 + $0x20] sm:$0xff]
    %v2571 = vld [vmem:[#allocation17 + $0x28] sm:$0xff]
    %v2572 = vld [vmem:[#allocation17 + $0x30] sm:$0xff]
    %v2573 = vld [vmem:[#allocation17 + $0x38] sm:$0xff]
    %v2574 = vld [vmem:[#allocation17 + $0x40] sm:$0xff]
    %v2575 = vld [vmem:[#allocation17 + $0x48] sm:$0xff]
    %v2576 = vld [vmem:[#allocation17 + $0x50] sm:$0xff]
    %v2577 = vld [vmem:[#allocation17 + $0x58] sm:$0xff]
    %v2578 = vld [vmem:[#allocation17 + $0x60] sm:$0xff]
    %v2579 = vld [vmem:[#allocation17 + $0x68] sm:$0xff]
    %v2580 = vld [vmem:[#allocation17 + $0x70] sm:$0xff]
    %v2581 = vld [vmem:[#allocation17 + $0x78] sm:$0xff]
    %v2582 = vld [vmem:[#allocation17 + $0x80] sm:$0xff]
    %v2583 = vld [vmem:[#allocation17 + $0x88] sm:$0xff]
    %v2584 = vld [vmem:[#allocation17 + $0x90] sm:$0xff]
    %v2585 = vld [vmem:[#allocation17 + $0x98] sm:$0xff]
    %v2586 = vld [vmem:[#allocation17 + $0xa0] sm:$0xff]
    %v2587 = vld [vmem:[#allocation17 + $0xa8] sm:$0xff]
    %v2588 = vld [vmem:[#allocation17 + $0xb0] sm:$0xff]
    %v2589 = vld [vmem:[#allocation17 + $0xb8] sm:$0xff]
    %v2590 = vld [vmem:[#allocation17 + $0xc0] sm:$0xff]
    %v2591 = vld [vmem:[#allocation17 + $0xc8] sm:$0xff]
    %v2592 = vld [vmem:[#allocation17 + $0xd0] sm:$0xff]
    %v2593 = vld [vmem:[#allocation17 + $0xd8] sm:$0xff]
    %v2594 = vld [vmem:[#allocation17 + $0xe0] sm:$0xff]
    %v2595 = vld [vmem:[#allocation17 + $0xe8] sm:$0xff]
    %v2596 = vld [vmem:[#allocation17 + $0xf0] sm:$0xff]
    %v2597 = vld [vmem:[#allocation17 + $0xf8] sm:$0xff]
    %v2598 = vld [vmem:[#allocation17 + $0x100] sm:$0xff]
    %v2599 = vld [vmem:[#allocation17 + $0x108] sm:$0xff]
    %v2600 = vld [vmem:[#allocation17 + $0x110] sm:$0xff]
    %v2601 = vld [vmem:[#allocation17 + $0x118] sm:$0xff]
    %v2602 = vld [vmem:[#allocation17 + $0x120] sm:$0xff]
    %v2603 = vld [vmem:[#allocation17 + $0x128] sm:$0xff]
    %v2604 = vld [vmem:[#allocation17 + $0x130] sm:$0xff]
    %v2605 = vld [vmem:[#allocation17 + $0x138] sm:$0xff]
    %v2606 = vld [vmem:[#allocation17 + $0x140] sm:$0xff]
    %v2607 = vld [vmem:[#allocation17 + $0x148] sm:$0xff]
    %v2608 = vld [vmem:[#allocation17 + $0x150] sm:$0xff]
    %v2609 = vld [vmem:[#allocation17 + $0x158] sm:$0xff]
    %v2610 = vld [vmem:[#allocation17 + $0x160] sm:$0xff]
    %v2611 = vld [vmem:[#allocation17 + $0x168] sm:$0xff]
    %v2612 = vld [vmem:[#allocation17 + $0x170] sm:$0xff]
    %v2613 = vld [vmem:[#allocation17 + $0x178] sm:$0xff]
    %v2614 = vld [vmem:[#allocation17 + $0x180] sm:$0xff]
    %v2615 = vld [vmem:[#allocation17 + $0x188] sm:$0xff]
    %v2616 = vld [vmem:[#allocation17 + $0x190] sm:$0xff]
    %v2617 = vld [vmem:[#allocation17 + $0x198] sm:$0xff]
    %v2618 = vld [vmem:[#allocation17 + $0x1a0] sm:$0xff]
    %v2619 = vld [vmem:[#allocation17 + $0x1a8] sm:$0xff]
    %v2620 = vld [vmem:[#allocation17 + $0x1b0] sm:$0xff]
    %v2621 = vld [vmem:[#allocation17 + $0x1b8] sm:$0xff]
    %v2622 = vld [vmem:[#allocation17 + $0x1c0] sm:$0xff]
    %v2623 = vld [vmem:[#allocation17 + $0x1c8] sm:$0xff]
    %v2624 = vld [vmem:[#allocation17 + $0x1d0] sm:$0xff]
    %v2625 = vld [vmem:[#allocation17 + $0x1d8] sm:$0xff]
    %v2626 = vld [vmem:[#allocation17 + $0x1e0] sm:$0xff]
    %v2627 = vld [vmem:[#allocation17 + $0x1e8] sm:$0xff]
    %v2628 = vld [vmem:[#allocation17 + $0x1f0] sm:$0xff]
    %v2629 = vld [vmem:[#allocation17 + $0x1f8] sm:$0xff]
    %v2630 = vld [vmem:[#allocation17 + $0x200] sm:$0xff]
    %v2631 = vld [vmem:[#allocation17 + $0x208] sm:$0xff]
    %v2632 = vld [vmem:[#allocation17 + $0x210] sm:$0xff]
    %v2633 = vld [vmem:[#allocation17 + $0x218] sm:$0xff]
    %v2634 = vld [vmem:[#allocation17 + $0x220] sm:$0xff]
    %v2635 = vld [vmem:[#allocation17 + $0x228] sm:$0xff]
    %v2636 = vld [vmem:[#allocation17 + $0x230] sm:$0xff]
    %v2637 = vld [vmem:[#allocation17 + $0x238] sm:$0xff]
    %v2638 = vld [vmem:[#allocation17 + $0x240] sm:$0xff]
    %v2639 = vld [vmem:[#allocation17 + $0x248] sm:$0xff]
    %v2640 = vld [vmem:[#allocation17 + $0x250] sm:$0xff]
    %v2641 = vld [vmem:[#allocation17 + $0x258] sm:$0xff]
    %v2642 = vld [vmem:[#allocation17 + $0x260] sm:$0xff]
    %v2643 = vld [vmem:[#allocation17 + $0x268] sm:$0xff]
    %v2644 = vld [vmem:[#allocation17 + $0x270] sm:$0xff]
    %v2645 = vld [vmem:[#allocation17 + $0x278] sm:$0xff]
    %v2646 = vld [vmem:[#allocation17 + $0x280] sm:$0xff]
    %v2647 = vld [vmem:[#allocation17 + $0x288] sm:$0xff]
    %v2648 = vld [vmem:[#allocation17 + $0x290] sm:$0xff]
    %v2649 = vld [vmem:[#allocation17 + $0x298] sm:$0xff]
    %v2650 = vld [vmem:[#allocation17 + $0x2a0] sm:$0xff]
    %v2651 = vld [vmem:[#allocation17 + $0x2a8] sm:$0xff]
    %v2652 = vld [vmem:[#allocation17 + $0x2b0] sm:$0xff]
    %v2653 = vld [vmem:[#allocation17 + $0x2b8] sm:$0xff]
    %v2654 = vld [vmem:[#allocation17 + $0x2c0] sm:$0xff]
    %v2655 = vld [vmem:[#allocation17 + $0x2c8] sm:$0xff]
    %v2656 = vld [vmem:[#allocation17 + $0x2d0] sm:$0xff]
    %v2657 = vld [vmem:[#allocation17 + $0x2d8] sm:$0xff]
    %v2658 = vld [vmem:[#allocation17 + $0x2e0] sm:$0xff]
    %v2659 = vld [vmem:[#allocation17 + $0x2e8] sm:$0xff]
    %v2660 = vld [vmem:[#allocation17 + $0x2f0] sm:$0xff]
    %v2661 = vld [vmem:[#allocation17 + $0x2f8] sm:$0xff]
    %v2662 = vld [vmem:[%s13] sm:$0x3f]
    %v2664 = vlaneseq
    %v2665 = vshrl.u32 %v2664, 7
    %v2666 = vsub.s32 0, %v2665
    %v2667 = vrot.slane %v2662, %v2666
    %v2668 = vlaneseq
    %v2669 = vshrl.u32 %v2668, 7
    %v2670 = vsub.s32 1, %v2669
    %v2671 = vrot.slane %v2662, %v2670
    %v2672 = vlaneseq
    %v2673 = vshrl.u32 %v2672, 7
    %v2674 = vsub.s32 2, %v2673
    %v2675 = vrot.slane %v2662, %v2674
    %v2676 = vlaneseq
    %v2677 = vshrl.u32 %v2676, 7
    %v2678 = vsub.s32 3, %v2677
    %v2679 = vrot.slane %v2662, %v2678
    %v2680 = vlaneseq
    %v2681 = vshrl.u32 %v2680, 7
    %v2682 = vsub.s32 4, %v2681
    %v2683 = vrot.slane %v2662, %v2682
    %v2684 = vlaneseq
    %v2685 = vshrl.u32 %v2684, 7
    %v2686 = vsub.s32 5, %v2685
    %v2687 = vrot.slane %v2662, %v2686
    %2694 = vmatprep.subr.mxu0 %v2567
    %2695 = vmatpush1.msra.mxu0 %v2566
    %2696 = vmatprep.subr.mxu0 %v2573
    %2697 = vmatpush1.msra.mxu0 %v2572
    %2698 = vmatprep.subr.mxu0 %v2579
    %2699 = vmatpush1.msra.mxu0 %v2578
    %2700 = vmatprep.subr.mxu0 %v2585
    %2701 = vmatpush1.msra.mxu0 %v2584
    %2702 = vmatprep.subr.mxu0 %v2591
    %2703 = vmatpush1.msra.mxu0 %v2590
    %2704 = vmatprep.subr.mxu0 %v2597
    %2705 = vmatpush1.msra.mxu0 %v2596
    %2706 = vmatprep.subr.mxu0 %v2603
    %2707 = vmatpush1.msra.mxu0 %v2602
    %2708 = vmatprep.subr.mxu0 %v2609
    %2709 = vmatpush1.msra.mxu0 %v2608
    %2710 = vmatprep.subr.mxu0 %v2615
    %2711 = vmatpush1.msra.mxu0 %v2614
    %2712 = vmatprep.subr.mxu0 %v2621
    %2713 = vmatpush1.msra.mxu0 %v2620
    %2714 = vmatprep.subr.mxu0 %v2627
    %2715 = vmatpush1.msra.mxu0 %v2626
    %2716 = vmatprep.subr.mxu0 %v2633
    %2717 = vmatpush1.msra.mxu0 %v2632
    %2718 = vmatprep.subr.mxu0 %v2639
    %2719 = vmatpush1.msra.mxu0 %v2638
    %2720 = vmatprep.subr.mxu0 %v2645
    %2721 = vmatpush1.msra.mxu0 %v2644
    %2722 = vmatprep.subr.mxu0 %v2651
    %2723 = vmatpush1.msra.mxu0 %v2650
    %2724 = vmatprep.subr.mxu0 %v2657
    %2725 = vmatpush1.msra.mxu0 %v2656
    %2726 = vmatprep.subr.mxu0 0.0
    %2727 = vmatpush1.msra.mxu0 0.0
    %2728 = vmatprep.subr.mxu0 0.0
    %2729 = vmatpush1.msra.mxu0 0.0
    %2730 = vmatprep.subr.mxu0 0.0
    %2731 = vmatpush1.msra.mxu0 0.0
    %2732 = vmatprep.subr.mxu0 0.0
    %2733 = vmatpush1.msra.mxu0 0.0
    %2734 = vmatprep.subr.mxu0 0.0
    %2735 = vmatpush1.msra.mxu0 0.0
    %2736 = vmatprep.subr.mxu0 0.0
    %2737 = vmatpush1.msra.mxu0 0.0
    %2738 = vmatprep.subr.mxu0 0.0
    %2739 = vmatpush1.msra.mxu0 0.0
    %2740 = vmatprep.subr.mxu0 0.0
    %2741 = vmatpush1.msra.mxu0 0.0
    %2742 = vmatprep.subr.mxu0 0.0
    %2743 = vmatpush1.msra.mxu0 0.0
    %2744 = vmatprep.subr.mxu0 0.0
    %2745 = vmatpush1.msra.mxu0 0.0
    %2746 = vmatprep.subr.mxu0 0.0
    %2747 = vmatpush1.msra.mxu0 0.0
    %2748 = vmatprep.subr.mxu0 0.0
    %2749 = vmatpush1.msra.mxu0 0.0
    %2750 = vmatprep.subr.mxu0 0.0
    %2751 = vmatpush1.msra.mxu0 0.0
    %2752 = vmatprep.subr.mxu0 0.0
    %2753 = vmatpush1.msra.mxu0 0.0
    %2754 = vmatprep.subr.mxu0 0.0
    %2755 = vmatpush1.msra.mxu0 0.0
    %2756 = vmatprep.subr.mxu0 0.0
    %2757 = vmatpush1.msra.mxu0 0.0
    %2758 = vmatprep.mubr.f32.mxu0 0.0
    %2759 = vmatmul.mubr.f32.gmra.mrb[0].mxu0 %v2351
    %v2760 = vpop.f32.mrb[0].mxu0
    %v2761 = vadd.f32 %v2667, %v2760
    %v2762 = vpop.f32.mrb[0].mxu0
    %v2763 = vadd.f32 %v2671, %v2762
    %2764 = vmatprep.mubr.f32.mxu0 0.0
    %2765 = vmatmul.mubr.f32.gmra.mrb[0].mxu0 %v2352
    %v2766 = vpop.f32.mrb[0].mxu0
    %v2767 = vadd.f32 %v2667, %v2766
    %v2768 = vpop.f32.mrb[0].mxu0
    %v2769 = vadd.f32 %v2671, %v2768
    %2770 = vdwg.mxu0
    %2771 = vmatprep.subr.mxu0 %v2569
    %2772 = vmatpush1.msra.mxu0 %v2568
    %2773 = vmatprep.subr.mxu0 %v2575
    %2774 = vmatpush1.msra.mxu0 %v2574
    %2775 = vmatprep.subr.mxu0 %v2581
    %2776 = vmatpush1.msra.mxu0 %v2580
    %2777 = vmatprep.subr.mxu0 %v2587
    %2778 = vmatpush1.msra.mxu0 %v2586
    %2779 = vmatprep.subr.mxu0 %v2593
    %2780 = vmatpush1.msra.mxu0 %v2592
    %2781 = vmatprep.subr.mxu0 %v2599
    %2782 = vmatpush1.msra.mxu0 %v2598
    %2783 = vmatprep.subr.mxu0 %v2605
    %2784 = vmatpush1.msra.mxu0 %v2604
    %2785 = vmatprep.subr.mxu0 %v2611
    %2786 = vmatpush1.msra.mxu0 %v2610
    %2787 = vmatprep.subr.mxu0 %v2617
    %2788 = vmatpush1.msra.mxu0 %v2616
    %2789 = vmatprep.subr.mxu0 %v2623
    %2790 = vmatpush1.msra.mxu0 %v2622
    %2791 = vmatprep.subr.mxu0 %v2629
    %2792 = vmatpush1.msra.mxu0 %v2628
    %2793 = vmatprep.subr.mxu0 %v2635
    %2794 = vmatpush1.msra.mxu0 %v2634
    %2795 = vmatprep.subr.mxu0 %v2641
    %2796 = vmatpush1.msra.mxu0 %v2640
    %2797 = vmatprep.subr.mxu0 %v2647
    %2798 = vmatpush1.msra.mxu0 %v2646
    %2799 = vmatprep.subr.mxu0 %v2653
    %2800 = vmatpush1.msra.mxu0 %v2652
    %2801 = vmatprep.subr.mxu0 %v2659
    %2802 = vmatpush1.msra.mxu0 %v2658
    %2803 = vmatprep.subr.mxu0 0.0
    %2804 = vmatpush1.msra.mxu0 0.0
    %2805 = vmatprep.subr.mxu0 0.0
    %2806 = vmatpush1.msra.mxu0 0.0
    %2807 = vmatprep.subr.mxu0 0.0
    %2808 = vmatpush1.msra.mxu0 0.0
    %2809 = vmatprep.subr.mxu0 0.0
    %2810 = vmatpush1.msra.mxu0 0.0
    %2811 = vmatprep.subr.mxu0 0.0
    %2812 = vmatpush1.msra.mxu0 0.0
    %2813 = vmatprep.subr.mxu0 0.0
    %2814 = vmatpush1.msra.mxu0 0.0
    %2815 = vmatprep.subr.mxu0 0.0
    %2816 = vmatpush1.msra.mxu0 0.0
    %2817 = vmatprep.subr.mxu0 0.0
    %2818 = vmatpush1.msra.mxu0 0.0
    %2819 = vmatprep.subr.mxu0 0.0
    %2820 = vmatpush1.msra.mxu0 0.0
    %2821 = vmatprep.subr.mxu0 0.0
    %2822 = vmatpush1.msra.mxu0 0.0
    %2823 = vmatprep.subr.mxu0 0.0
    %2824 = vmatpush1.msra.mxu0 0.0
    %2825 = vmatprep.subr.mxu0 0.0
    %2826 = vmatpush1.msra.mxu0 0.0
    %2827 = vmatprep.subr.mxu0 0.0
    %2828 = vmatpush1.msra.mxu0 0.0
    %2829 = vmatprep.subr.mxu0 0.0
    %2830 = vmatpush1.msra.mxu0 0.0
    %2831 = vmatprep.subr.mxu0 0.0
    %2832 = vmatpush1.msra.mxu0 0.0
    %2833 = vmatprep.subr.mxu0 0.0
    %2834 = vmatpush1.msra.mxu0 0.0
    %2835 = vmatprep.mubr.f32.mxu0 0.0
    %2836 = vmatmul.mubr.f32.gmra.mrb[0].mxu0 %v2351
    %v2837 = vpop.f32.mrb[0].mxu0
    %v2838 = vadd.f32 %v2675, %v2837
    %v2839 = vpop.f32.mrb[0].mxu0
    %v2840 = vadd.f32 %v2679, %v2839
    %2841 = vmatprep.mubr.f32.mxu0 0.0
    %2842 = vmatmul.mubr.f32.gmra.mrb[0].mxu0 %v2352
    %v2843 = vpop.f32.mrb[0].mxu0
    %v2844 = vadd.f32 %v2675, %v2843
    %v2845 = vpop.f32.mrb[0].mxu0
    %v2846 = vadd.f32 %v2679, %v2845
    %2847 = vdwg.mxu0
    %2848 = vmatprep.subr.mxu0 %v2571
    %2849 = vmatpush1.msra.mxu0 %v2570
    %2850 = vmatprep.subr.mxu0 %v2577
    %2851 = vmatpush1.msra.mxu0 %v2576
    %2852 = vmatprep.subr.mxu0 %v2583
    %2853 = vmatpush1.msra.mxu0 %v2582
    %2854 = vmatprep.subr.mxu0 %v2589
    %2855 = vmatpush1.msra.mxu0 %v2588
    %2856 = vmatprep.subr.mxu0 %v2595
    %2857 = vmatpush1.msra.mxu0 %v2594
    %2858 = vmatprep.subr.mxu0 %v2601
    %2859 = vmatpush1.msra.mxu0 %v2600
    %2860 = vmatprep.subr.mxu0 %v2607
    %2861 = vmatpush1.msra.mxu0 %v2606
    %2862 = vmatprep.subr.mxu0 %v2613
    %2863 = vmatpush1.msra.mxu0 %v2612
    %2864 = vmatprep.subr.mxu0 %v2619
    %2865 = vmatpush1.msra.mxu0 %v2618
    %2866 = vmatprep.subr.mxu0 %v2625
    %2867 = vmatpush1.msra.mxu0 %v2624
    %2868 = vmatprep.subr.mxu0 %v2631
    %2869 = vmatpush1.msra.mxu0 %v2630
    %2870 = vmatprep.subr.mxu0 %v2637
    %2871 = vmatpush1.msra.mxu0 %v2636
    %2872 = vmatprep.subr.mxu0 %v2643
    %2873 = vmatpush1.msra.mxu0 %v2642
    %2874 = vmatprep.subr.mxu0 %v2649
    %2875 = vmatpush1.msra.mxu0 %v2648
    %2876 = vmatprep.subr.mxu0 %v2655
    %2877 = vmatpush1.msra.mxu0 %v2654
    %2878 = vmatprep.subr.mxu0 %v2661
    %2879 = vmatpush1.msra.mxu0 %v2660
    %2880 = vmatprep.subr.mxu0 0.0
    %2881 = vmatpush1.msra.mxu0 0.0
    %2882 = vmatprep.subr.mxu0 0.0
    %2883 = vmatpush1.msra.mxu0 0.0
    %2884 = vmatprep.subr.mxu0 0.0
    %2885 = vmatpush1.msra.mxu0 0.0
    %2886 = vmatprep.subr.mxu0 0.0
    %2887 = vmatpush1.msra.mxu0 0.0
    %2888 = vmatprep.subr.mxu0 0.0
    %2889 = vmatpush1.msra.mxu0 0.0
    %2890 = vmatprep.subr.mxu0 0.0
    %2891 = vmatpush1.msra.mxu0 0.0
    %2892 = vmatprep.subr.mxu0 0.0
    %2893 = vmatpush1.msra.mxu0 0.0
    %2894 = vmatprep.subr.mxu0 0.0
    %2895 = vmatpush1.msra.mxu0 0.0
    %2896 = vmatprep.subr.mxu0 0.0
    %2897 = vmatpush1.msra.mxu0 0.0
    %2898 = vmatprep.subr.mxu0 0.0
    %2899 = vmatpush1.msra.mxu0 0.0
    %2900 = vmatprep.subr.mxu0 0.0
    %2901 = vmatpush1.msra.mxu0 0.0
    %2902 = vmatprep.subr.mxu0 0.0
    %2903 = vmatpush1.msra.mxu0 0.0
    %2904 = vmatprep.subr.mxu0 0.0
    %2905 = vmatpush1.msra.mxu0 0.0
    %2906 = vmatprep.subr.mxu0 0.0
    %2907 = vmatpush1.msra.mxu0 0.0
    %2908 = vmatprep.subr.mxu0 0.0
    %2909 = vmatpush1.msra.mxu0 0.0
    %2910 = vmatprep.subr.mxu0 0.0
    %2911 = vmatpush1.msra.mxu0 0.0
    %2912 = vmatprep.mubr.f32.mxu0 0.0
    %2913 = vmatmul.mubr.f32.gmra.mrb[0].mxu0 %v2351
    %v2914 = vpop.f32.mrb[0].mxu0
    %v2915 = vadd.f32 %v2683, %v2914
    %v2916 = vpop.f32.mrb[0].mxu0
    %v2917 = vadd.f32 %v2687, %v2916
    %2918 = vmatprep.mubr.f32.mxu0 0.0
    %2919 = vmatmul.mubr.f32.gmra.mrb[0].mxu0 %v2352
    %v2920 = vpop.f32.mrb[0].mxu0
    %v2921 = vadd.f32 %v2683, %v2920
    %v2922 = vpop.f32.mrb[0].mxu0
    %v2923 = vadd.f32 %v2687, %v2922
    %2924 = vdwg.mxu0
    %v2925 = vld [vmem:[%s14] sm:$0x3f]
    %v2926 = vld [vmem:[%s14 + $0x8] sm:$0x3f]
    %v2927 = vld [vmem:[%s14 + $0x10] sm:$0x3f]
    %v2928 = vld [vmem:[%s14 + $0x18] sm:$0x3f]
    %v2929 = vld [vmem:[%s14 + $0x20] sm:$0x3f]
    %v2930 = vld [vmem:[%s14 + $0x28] sm:$0x3f]
    %v2932 = vsel %vm2451, %v2564, 0
    %v2935 = vsel %vm2451, %v2565, 0
    %vm2937 = vcmask 1045504
    %v2939 = vsel %vm2937, %v2925, 0
    %v2942 = vsel %vm2937, %v2926, 0
    %v2945 = vsel %vm2937, %v2927, 0
    %v2948 = vsel %vm2937, %v2928, 0
    %v2951 = vsel %vm2937, %v2929, 0
    %v2954 = vsel %vm2937, %v2930, 0
    %2956 = vmatprep.subr.mxu0 %v2942
    %2957 = vmatpush1.msra.mxu0 %v2939
    %2958 = vmatprep.subr.mxu0 0.0
    %2959 = vmatpush1.msra.mxu0 0.0
    %2960 = vmatprep.subr.mxu0 0.0
    %2961 = vmatpush1.msra.mxu0 0.0
    %2962 = vmatprep.subr.mxu0 0.0
    %2963 = vmatpush1.msra.mxu0 0.0
    %2964 = vmatprep.subr.mxu0 0.0
    %2965 = vmatpush1.msra.mxu0 0.0
    %2966 = vmatprep.subr.mxu0 0.0
    %2967 = vmatpush1.msra.mxu0 0.0
    %2968 = vmatprep.subr.mxu0 0.0
    %2969 = vmatpush1.msra.mxu0 0.0
    %2970 = vmatprep.subr.mxu0 0.0
    %2971 = vmatpush1.msra.mxu0 0.0
    %2972 = vmatprep.subr.mxu0 0.0
    %2973 = vmatpush1.msra.mxu0 0.0
    %2974 = vmatprep.subr.mxu0 0.0
    %2975 = vmatpush1.msra.mxu0 0.0
    %2976 = vmatprep.subr.mxu0 0.0
    %2977 = vmatpush1.msra.mxu0 0.0
    %2978 = vmatprep.subr.mxu0 0.0
    %2979 = vmatpush1.msra.mxu0 0.0
    %2980 = vmatprep.subr.mxu0 0.0
    %2981 = vmatpush1.msra.mxu0 0.0
    %2982 = vmatprep.subr.mxu0 0.0
    %2983 = vmatpush1.msra.mxu0 0.0
    %2984 = vmatprep.subr.mxu0 0.0
    %2985 = vmatpush1.msra.mxu0 0.0
    %2986 = vmatprep.subr.mxu0 0.0
    %2987 = vmatpush1.msra.mxu0 0.0
    %2988 = vmatprep.subr.mxu0 0.0
    %2989 = vmatpush1.msra.mxu0 0.0
    %2990 = vmatprep.subr.mxu0 0.0
    %2991 = vmatpush1.msra.mxu0 0.0
    %2992 = vmatprep.subr.mxu0 0.0
    %2993 = vmatpush1.msra.mxu0 0.0
    %2994 = vmatprep.subr.mxu0 0.0
    %2995 = vmatpush1.msra.mxu0 0.0
    %2996 = vmatprep.subr.mxu0 0.0
    %2997 = vmatpush1.msra.mxu0 0.0
    %2998 = vmatprep.subr.mxu0 0.0
    %2999 = vmatpush1.msra.mxu0 0.0
    %3000 = vmatprep.subr.mxu0 0.0
    %3001 = vmatpush1.msra.mxu0 0.0
    %3002 = vmatprep.subr.mxu0 0.0
    %3003 = vmatpush1.msra.mxu0 0.0
    %3004 = vmatprep.subr.mxu0 0.0
    %3005 = vmatpush1.msra.mxu0 0.0
    %3006 = vmatprep.subr.mxu0 0.0
    %3007 = vmatpush1.msra.mxu0 0.0
    %3008 = vmatprep.subr.mxu0 0.0
    %3009 = vmatpush1.msra.mxu0 0.0
    %3010 = vmatprep.subr.mxu0 0.0
    %3011 = vmatpush1.msra.mxu0 0.0
    %3012 = vmatprep.subr.mxu0 0.0
    %3013 = vmatpush1.msra.mxu0 0.0
    %3014 = vmatprep.subr.mxu0 0.0
    %3015 = vmatpush1.msra.mxu0 0.0
    %3016 = vmatprep.subr.mxu0 0.0
    %3017 = vmatpush1.msra.mxu0 0.0
    %3018 = vmatprep.subr.mxu0 0.0
    %3019 = vmatpush1.msra.mxu0 0.0
    %3020 = vmatprep.mubr.f32.mxu0 0.0
    %3021 = vmatmul.mubr.f32.gmra.mrb[0].mxu0 %v2932
    %v3022 = vpop.f32.mrb[0].mxu0
    %v3023 = vadd.f32 0.0, %v3022
    %v3024 = vpop.f32.mrb[0].mxu0
    %v3025 = vadd.f32 0.0, %v3024
    %3026 = vmatprep.mubr.f32.mxu0 0.0
    %3027 = vmatmul.mubr.f32.gmra.mrb[0].mxu0 %v2935
    %v3028 = vpop.f32.mrb[0].mxu0
    %v3029 = vadd.f32 0.0, %v3028
    %v3030 = vpop.f32.mrb[0].mxu0
    %v3031 = vadd.f32 0.0, %v3030
    %3032 = vdwg.mxu0
    %3033 = vmatprep.subr.mxu0 %v2948
    %3034 = vmatpush1.msra.mxu0 %v2945
    %3035 = vmatprep.subr.mxu0 0.0
    %3036 = vmatpush1.msra.mxu0 0.0
    %3037 = vmatprep.subr.mxu0 0.0
    %3038 = vmatpush1.msra.mxu0 0.0
    %3039 = vmatprep.subr.mxu0 0.0
    %3040 = vmatpush1.msra.mxu0 0.0
    %3041 = vmatprep.subr.mxu0 0.0
    %3042 = vmatpush1.msra.mxu0 0.0
    %3043 = vmatprep.subr.mxu0 0.0
    %3044 = vmatpush1.msra.mxu0 0.0
    %3045 = vmatprep.subr.mxu0 0.0
    %3046 = vmatpush1.msra.mxu0 0.0
    %3047 = vmatprep.subr.mxu0 0.0
    %3048 = vmatpush1.msra.mxu0 0.0
    %3049 = vmatprep.subr.mxu0 0.0
    %3050 = vmatpush1.msra.mxu0 0.0
    %3051 = vmatprep.subr.mxu0 0.0
    %3052 = vmatpush1.msra.mxu0 0.0
    %3053 = vmatprep.subr.mxu0 0.0
    %3054 = vmatpush1.msra.mxu0 0.0
    %3055 = vmatprep.subr.mxu0 0.0
    %3056 = vmatpush1.msra.mxu0 0.0
    %3057 = vmatprep.subr.mxu0 0.0
    %3058 = vmatpush1.msra.mxu0 0.0
    %3059 = vmatprep.subr.mxu0 0.0
    %3060 = vmatpush1.msra.mxu0 0.0
    %3061 = vmatprep.subr.mxu0 0.0
    %3062 = vmatpush1.msra.mxu0 0.0
    %3063 = vmatprep.subr.mxu0 0.0
    %3064 = vmatpush1.msra.mxu0 0.0
    %3065 = vmatprep.subr.mxu0 0.0
    %3066 = vmatpush1.msra.mxu0 0.0
    %3067 = vmatprep.subr.mxu0 0.0
    %3068 = vmatpush1.msra.mxu0 0.0
    %3069 = vmatprep.subr.mxu0 0.0
    %3070 = vmatpush1.msra.mxu0 0.0
    %3071 = vmatprep.subr.mxu0 0.0
    %3072 = vmatpush1.msra.mxu0 0.0
    %3073 = vmatprep.subr.mxu0 0.0
    %3074 = vmatpush1.msra.mxu0 0.0
    %3075 = vmatprep.subr.mxu0 0.0
    %3076 = vmatpush1.msra.mxu0 0.0
    %3077 = vmatprep.subr.mxu0 0.0
    %3078 = vmatpush1.msra.mxu0 0.0
    %3079 = vmatprep.subr.mxu0 0.0
    %3080 = vmatpush1.msra.mxu0 0.0
    %3081 = vmatprep.subr.mxu0 0.0
    %3082 = vmatpush1.msra.mxu0 0.0
    %3083 = vmatprep.subr.mxu0 0.0
    %3084 = vmatpush1.msra.mxu0 0.0
    %3085 = vmatprep.subr.mxu0 0.0
    %3086 = vmatpush1.msra.mxu0 0.0
    %3087 = vmatprep.subr.mxu0 0.0
    %3088 = vmatpush1.msra.mxu0 0.0
    %3089 = vmatprep.subr.mxu0 0.0
    %3090 = vmatpush1.msra.mxu0 0.0
    %3091 = vmatprep.subr.mxu0 0.0
    %3092 = vmatpush1.msra.mxu0 0.0
    %3093 = vmatprep.subr.mxu0 0.0
    %3094 = vmatpush1.msra.mxu0 0.0
    %3095 = vmatprep.subr.mxu0 0.0
    %3096 = vmatpush1.msra.mxu0 0.0
    %3097 = vmatprep.mubr.f32.mxu0 0.0
    %3098 = vmatmul.mubr.f32.gmra.mrb[0].mxu0 %v2932
    %v3099 = vpop.f32.mrb[0].mxu0
    %v3100 = vadd.f32 0.0, %v3099
    %v3101 = vpop.f32.mrb[0].mxu0
    %v3102 = vadd.f32 0.0, %v3101
    %3103 = vmatprep.mubr.f32.mxu0 0.0
    %3104 = vmatmul.mubr.f32.gmra.mrb[0].mxu0 %v2935
    %v3105 = vpop.f32.mrb[0].mxu0
    %v3106 = vadd.f32 0.0, %v3105
    %v3107 = vpop.f32.mrb[0].mxu0
    %v3108 = vadd.f32 0.0, %v3107
    %3109 = vdwg.mxu0
    %3110 = vmatprep.subr.mxu0 %v2954
    %3111 = vmatpush1.msra.mxu0 %v2951
    %3112 = vmatprep.subr.mxu0 0.0
    %3113 = vmatpush1.msra.mxu0 0.0
    %3114 = vmatprep.subr.mxu0 0.0
    %3115 = vmatpush1.msra.mxu0 0.0
    %3116 = vmatprep.subr.mxu0 0.0
    %3117 = vmatpush1.msra.mxu0 0.0
    %3118 = vmatprep.subr.mxu0 0.0
    %3119 = vmatpush1.msra.mxu0 0.0
    %3120 = vmatprep.subr.mxu0 0.0
    %3121 = vmatpush1.msra.mxu0 0.0
    %3122 = vmatprep.subr.mxu0 0.0
    %3123 = vmatpush1.msra.mxu0 0.0
    %3124 = vmatprep.subr.mxu0 0.0
    %3125 = vmatpush1.msra.mxu0 0.0
    %3126 = vmatprep.subr.mxu0 0.0
    %3127 = vmatpush1.msra.mxu0 0.0
    %3128 = vmatprep.subr.mxu0 0.0
    %3129 = vmatpush1.msra.mxu0 0.0
    %3130 = vmatprep.subr.mxu0 0.0
    %3131 = vmatpush1.msra.mxu0 0.0
    %3132 = vmatprep.subr.mxu0 0.0
    %3133 = vmatpush1.msra.mxu0 0.0
    %3134 = vmatprep.subr.mxu0 0.0
    %3135 = vmatpush1.msra.mxu0 0.0
    %3136 = vmatprep.subr.mxu0 0.0
    %3137 = vmatpush1.msra.mxu0 0.0
    %3138 = vmatprep.subr.mxu0 0.0
    %3139 = vmatpush1.msra.mxu0 0.0
    %3140 = vmatprep.subr.mxu0 0.0
    %3141 = vmatpush1.msra.mxu0 0.0
    %3142 = vmatprep.subr.mxu0 0.0
    %3143 = vmatpush1.msra.mxu0 0.0
    %3144 = vmatprep.subr.mxu0 0.0
    %3145 = vmatpush1.msra.mxu0 0.0
    %3146 = vmatprep.subr.mxu0 0.0
    %3147 = vmatpush1.msra.mxu0 0.0
    %3148 = vmatprep.subr.mxu0 0.0
    %3149 = vmatpush1.msra.mxu0 0.0
    %3150 = vmatprep.subr.mxu0 0.0
    %3151 = vmatpush1.msra.mxu0 0.0
    %3152 = vmatprep.subr.mxu0 0.0
    %3153 = vmatpush1.msra.mxu0 0.0
    %3154 = vmatprep.subr.mxu0 0.0
    %3155 = vmatpush1.msra.mxu0 0.0
    %3156 = vmatprep.subr.mxu0 0.0
    %3157 = vmatpush1.msra.mxu0 0.0
    %3158 = vmatprep.subr.mxu0 0.0
    %3159 = vmatpush1.msra.mxu0 0.0
    %3160 = vmatprep.subr.mxu0 0.0
    %3161 = vmatpush1.msra.mxu0 0.0
    %3162 = vmatprep.subr.mxu0 0.0
    %3163 = vmatpush1.msra.mxu0 0.0
    %3164 = vmatprep.subr.mxu0 0.0
    %3165 = vmatpush1.msra.mxu0 0.0
    %3166 = vmatprep.subr.mxu0 0.0
    %3167 = vmatpush1.msra.mxu0 0.0
    %3168 = vmatprep.subr.mxu0 0.0
    %3169 = vmatpush1.msra.mxu0 0.0
    %3170 = vmatprep.subr.mxu0 0.0
    %3171 = vmatpush1.msra.mxu0 0.0
    %3172 = vmatprep.subr.mxu0 0.0
    %3173 = vmatpush1.msra.mxu0 0.0
    %3174 = vmatprep.mubr.f32.mxu0 0.0
    %3175 = vmatmul.mubr.f32.gmra.mrb[0].mxu0 %v2932
    %v3176 = vpop.f32.mrb[0].mxu0
    %v3177 = vadd.f32 0.0, %v3176
    %v3178 = vpop.f32.mrb[0].mxu0
    %v3179 = vadd.f32 0.0, %v3178
    %3180 = vmatprep.mubr.f32.mxu0 0.0
    %3181 = vmatmul.mubr.f32.gmra.mrb[0].mxu0 %v2935
    %v3182 = vpop.f32.mrb[0].mxu0
    %v3183 = vadd.f32 0.0, %v3182
    %v3184 = vpop.f32.mrb[0].mxu0
    %v3185 = vadd.f32 0.0, %v3184
    %3186 = vdwg.mxu0
    %v3187 = vmul.f32 %v3023, %v2761
    %v3188 = vmul.f32 %v3025, %v2763
    %v3189 = vmul.f32 %v3100, %v2838
    %v3190 = vmul.f32 %v3102, %v2840
    %v3191 = vmul.f32 %v3177, %v2915
    %v3192 = vmul.f32 %v3179, %v2917
    %v3193 = vmul.f32 %v3029, %v2767
    %v3194 = vmul.f32 %v3031, %v2769
    %v3195 = vmul.f32 %v3106, %v2844
    %v3196 = vmul.f32 %v3108, %v2846
    %v3197 = vmul.f32 %v3183, %v2921
    %v3198 = vmul.f32 %v3185, %v2923
    %v3199 = vadd.f32 %v3187, %v3188
    %v3200 = vadd.f32 %v3193, %v3194
    %v3201 = vadd.f32 %v3199, %v3189
    %v3202 = vadd.f32 %v3200, %v3195
    %v3203 = vadd.f32 %v3201, %v3190
    %v3204 = vadd.f32 %v3202, %v3196
    %v3205 = vadd.f32 %v3203, %v3191
    %v3206 = vadd.f32 %v3204, %v3197
    %v3207 = vadd.f32 %v3205, %v3192
    %v3208 = vadd.f32 %v3206, %v3198
    %v3209 = vadd.f32 %v2328, %v3207
    %v3210 = vadd.f32 %v2329, %v3208
    %3211 = vst [vmem:[#allocation19] sm:$0xff] %v3209
    %3212 = vst [vmem:[#allocation19 + $0x8] sm:$0xff] %v3210
    // Predicated region
    $region102: #{tpu_custom_call.1} parent=1 // pred_check
      _
    $region103: #{tpu_custom_call.1} parent=1 // pred_check_branch
      %3214 = sbr.rel (0) target = $region105
    $region104: #{tpu_custom_call.1} parent=1 // pred_region
      %s3216 = ssub.s32 256, 256
      %3217 = vsyncadd [#allocation4], %s3216
      %s3218 = sshll.u32 [#allocation19], 4
      %s3219 = int_to_ptr.vmem [resolvable:$true] %s3218
      %3224 = dma.vmem_to_hbm [thread:$0]  %s3219, 256, %s15, [#allocation4], 128, 128, 8
    $region105: #{tpu_custom_call.1} parent=1 // pred_fallthru
      _
    // Predicated region
    $region106: #{tpu_custom_call.1} parent=1 // pred_check
      _
    $region107: #{tpu_custom_call.1} parent=1 // pred_check_branch
      %3226 = sbr.rel (0) target = $region109
    $region108: #{tpu_custom_call.1} parent=1 // pred_region
      %3227 = dma.done [#allocation4], 256
    $region109: #{tpu_custom_call.1} parent=1 // pred_fallthru
      _
    %3228 = vsyncpa [#allocation3], 1
    %3229 = vsyncpa [#allocation6], 1
    %3230 = vsyncpa [#allocation9], 1
    %3231 = vsyncpa [#allocation12], 1
    %3232 = vsyncpa [#allocation15], 1
    %3233 = vsyncpa [#allocation18], 1
    %3234 = vsyncpa [#allocation4], 1

</llo_original>
